<compile_context>
chip_gen: v5e
topology: v5e:2x2
jax: 0.10.0
libtpu: 0.0.40
codegen_flags: <defaults>
</compile_context>

<pallas_src>
import math
import functools

import numpy as np
import jax
import jax.numpy as jnp
from jax import lax
from jax.experimental import pallas as pl
from jax.experimental.pallas import tpu as pltpu

# ----------------------------- config (synthetic, small) --------------------
B = 8        # batch_size
N_NEWS = 2   # candidate news per user
HN = 16      # max_history_num
D = 128      # news_embedding_dim
A = 32       # attention_dim = max(config.attention_dim, D // 4)
C = 8        # self.category_num (= config.category_num + 1)


# ----------------------------- fused SUE kernel ------------------------------
def _sue_kernel(gcn_ref, cand_ref, member_ref, maskb_ref,
                wk_ref, wqcat_ref, bqcat_ref, wa_ref, ba_ref, wk2_ref,
                out_ref, *, inv_scalar):
    # gcn_ref   : (bb, H, D)   cand_ref : (bb, N, D)
    # member_ref: (bb, C, H)   f32 one-hot (history item h belongs to cat c)
    # maskb_ref : (bb, 1, C)   f32 additive mask bias (0 or -1e9)
    # weights   : wk (A,D), wqcat (2A,D), bqcat (1,2A), wa (D,D), ba (1,D),
    #             wk2 (A,D)
    # out_ref   : (bb, N, D)
    f32 = jnp.float32
    hi = lax.Precision.HIGHEST
    dn_t = (((1,), (1,)), ((), ()))        # x @ W^T (contract last dims)

    bb, H, Dd = gcn_ref.shape
    N = cand_ref.shape[1]
    Cc = member_ref.shape[1]
    Aa = wk_ref.shape[0]

    gcn = gcn_ref[...]                      # (bb, H, D)
    cand = cand_ref[...]                    # (bb, N, D)
    member = member_ref[...]                # (bb, C, H)

    # ---- stacked projections (one MXU matmul each) --------------------------
    k = lax.dot_general(gcn.reshape(bb * H, Dd), wk_ref[...], dn_t,
                        preferred_element_type=f32, precision=hi)     # (bb*H, A)
    qcat = lax.dot_general(cand.reshape(bb * N, Dd), wqcat_ref[...], dn_t,
                           preferred_element_type=f32, precision=hi)
    qcat = qcat + bqcat_ref[...]                                      # (bb*N, 2A)
    q = qcat[:, :Aa].reshape(bb, N, Aa)       # intraCluster_Q(cand)
    q2 = qcat[:, Aa:].reshape(bb, N, Aa)      # interCluster Q(cand)
    k3 = k.reshape(bb, H, Aa)

    # ---- intra-cluster logits a[b,n,h] = <Q_n, K_h> / sqrt(A) ----------------
    a = jnp.einsum('bna,bha->bnh', q, k3,
                   preferred_element_type=f32, precision=hi) * inv_scalar

    # ---- per-category (segment) softmax over the history axis ---------------
    mem4 = member[:, None, :, :]                       # (bb, 1, C, H)
    a4 = a[:, :, None, :]                              # (bb, N, 1, H)
    s = a4 - (1.0 - mem4) * f32(1e30)                  # mask-out non-members
    m = jnp.max(s, axis=-1, keepdims=True)             # (bb, N, C, 1)
    e = mem4 * jnp.exp(jnp.minimum(a4 - m, 0.0))       # (bb, N, C, H)
    den = jnp.sum(e, axis=-1, keepdims=True)           # (bb, N, C, 1)
    inv = jnp.where(den > 0.0, pl.reciprocal(den, approx=True), 0.0)
    alpha = e * inv                                    # (bb, N, C, H)

    # ---- intra-cluster features: batched (N*C, H) x (H, D) ------------------
    intra = jnp.einsum('bch,bhd->bcd', alpha.reshape(bb, N * Cc, H), gcn,
                       preferred_element_type=f32, precision=hi)
    intra_flat = intra.reshape(bb * N * Cc, Dd)

    # ---- clusterFeatureAffine + ReLU + residual (dropout = identity) --------
    z = lax.dot_general(intra_flat, wa_ref[...], dn_t,
                        preferred_element_type=f32, precision=hi) + ba_ref[...]
    cf = jnp.maximum(z, 0.0) + intra_flat              # (bb*N*C, D)

    # ---- inter-cluster scaled-dot-product candidate attention ---------------
    k2 = lax.dot_general(cf, wk2_ref[...], dn_t,
                         preferred_element_type=f32, precision=hi)    # (bb*N*C, A)
    k2_4 = k2.reshape(bb, N, Cc, Aa)
    # logits on the VPU: broadcast-multiply against q2, reduce over A
    a2 = jnp.sum(k2_4 * q2[:, :, None, :], axis=-1) * inv_scalar      # (bb, N, C)
    a2 = a2 + maskb_ref[...]                                          # masked_fill
    m2 = jnp.max(a2, axis=-1, keepdims=True)
    e2 = jnp.exp(a2 - m2)
    alpha2 = e2 * pl.reciprocal(jnp.sum(e2, axis=-1, keepdims=True), approx=True)

    # weighted sum over C on the VPU/XLU; single lane-dense store
    cf4 = cf.reshape(bb, N, Cc, Dd)
    out_ref[...] = jnp.sum(alpha2[..., None] * cf4, axis=2)           # (bb, N, D)


def sue_forward(params, gcn_feature, cand, cat_idx, cat_mask, *, num_steps=2):
    """SUE.forward from the intra/inter-cluster attention stage onward.

    gcn_feature: [B, H, D]  post-GCN history features (news_encoder/GCN external)
    cand       : [B, N, D]  candidate_news_representation
    cat_idx    : [B, H]     user_history_category_indices
    cat_mask   : [B, C]     user_history_category_mask
    num_steps  : grid length (2 keeps both v7x TensorCores busy; use 1 on v5e/v6e)
    returns    : [B, N, D]  inter_cluster_feature
    """
    b, h, d = gcn_feature.shape
    n = cand.shape[1]
    a_dim = params["wk"].shape[0]
    c = cat_mask.shape[-1]

    # torch: user_history_category_mask[:, -1] = 1 ; precompute additive bias
    cat_mask = cat_mask.astype(jnp.float32).at[:, -1].set(1.0)
    mask_bias = jnp.where(cat_mask == 0.0, jnp.float32(-1e9),
                          jnp.float32(0.0)).reshape(b, 1, c)

    # f32 one-hot membership of each history item in each category (wrapper-side)
    member = (cat_idx[:, None, :] ==
              jnp.arange(c, dtype=cat_idx.dtype)[None, :, None]).astype(jnp.float32)

    # fuse the two candidate projections into one matmul
    wq_cat = jnp.concatenate([params["wq"], params["wq2"]], axis=0)          # (2A, D)
    bq_cat = jnp.concatenate([params["bq"], params["bq2"]], axis=0).reshape(1, 2 * a_dim)

    # batch blocking: bb samples per grid step
    steps = max(1, min(int(num_steps), b))
    while b % steps:
        steps -= 1
    bb = b // steps

    kernel = functools.partial(_sue_kernel,
                               inv_scalar=1.0 / math.sqrt(float(a_dim)))
    return pl.pallas_call(
        kernel,
        out_shape=jax.ShapeDtypeStruct((b, n, d), jnp.float32),
        grid_spec=pltpu.PrefetchScalarGridSpec(
            num_scalar_prefetch=0,
            grid=(steps,),
            in_specs=[
                pl.BlockSpec((bb, h, d), lambda i: (i, 0, 0)),       # gcn_feature
                pl.BlockSpec((bb, n, d), lambda i: (i, 0, 0)),       # candidates
                pl.BlockSpec((bb, c, h), lambda i: (i, 0, 0)),       # one-hot membership
                pl.BlockSpec((bb, 1, c), lambda i: (i, 0, 0)),       # mask additive bias
                pl.BlockSpec((a_dim, d), lambda i: (0, 0)),          # intraCluster_K.weight
                pl.BlockSpec((2 * a_dim, d), lambda i: (0, 0)),      # [intra_Q; inter_Q].weight
                pl.BlockSpec((1, 2 * a_dim), lambda i: (0, 0)),      # [intra_Q; inter_Q].bias
                pl.BlockSpec((d, d), lambda i: (0, 0)),              # clusterFeatureAffine.weight
                pl.BlockSpec((1, d), lambda i: (0, 0)),              # clusterFeatureAffine.bias
                pl.BlockSpec((a_dim, d), lambda i: (0, 0)),          # interCluster K.weight
            ],
            out_specs=pl.BlockSpec((bb, n, d), lambda i: (i, 0, 0)),
        ),
        compiler_params=pltpu.CompilerParams(
            dimension_semantics=("parallel",)),
    )(gcn_feature, cand, member, mask_bias,
      params["wk"], wq_cat, bq_cat,
      params["wa"], params["ba"].reshape(1, d),
      params["wk2"])


# ----------------------------- pure-JAX reference ----------------------------
def sue_reference(params, gcn_feature, cand, cat_idx, cat_mask):
    hi = lax.Precision.HIGHEST
    B_, H_, D_ = gcn_feature.shape
    A_ = params["wk"].shape[0]
    C_ = cat_mask.shape[-1]
    scal = math.sqrt(float(A_))
    cat_mask = cat_mask.astype(jnp.float32).at[:, -1].set(1.0)

    k = jnp.einsum("bhd,ad->bha", gcn_feature, params["wk"], precision=hi)
    q = jnp.einsum("bnd,ad->bna", cand, params["wq"], precision=hi) + params["bq"]
    a = jnp.einsum("bna,bha->bnh", q, k, precision=hi) / scal            # [B,N,H]

    onehot = cat_idx[:, None, :] == jnp.arange(C_, dtype=cat_idx.dtype)[None, :, None]
    neg_big = jnp.float32(-1e30)
    s = jnp.where(onehot[:, None], a[:, :, None, :], neg_big)            # [B,N,C,H]
    m = jnp.max(s, axis=-1, keepdims=True)
    e = jnp.where(onehot[:, None],
                  jnp.exp(jnp.minimum(a[:, :, None, :] - m, 0.0)), 0.0)
    den = jnp.sum(e, axis=-1, keepdims=True)
    inv = jnp.where(den > 0.0, 1.0 / den, 0.0)
    alpha = e * inv                                                      # [B,N,C,H]
    intra = jnp.einsum("bnch,bhd->bncd", alpha, gcn_feature, precision=hi)

    z = jnp.einsum("bncd,ed->bnce", intra, params["wa"], precision=hi) + params["ba"]
    cf = jnp.maximum(z, 0.0) + intra                                     # [B,N,C,D]

    k2 = jnp.einsum("bncd,ad->bnca", cf, params["wk2"], precision=hi)
    q2 = jnp.einsum("bnd,ad->bna", cand, params["wq2"], precision=hi) + params["bq2"]
    a2 = jnp.einsum("bnca,bna->bnc", k2, q2, precision=hi) / scal
    a2 = jnp.where(cat_mask[:, None, :] == 0.0, jnp.float32(-1e9), a2)
    alpha2 = jax.nn.softmax(a2, axis=-1)
    return jnp.einsum("bnc,bncd->bnd", alpha2, cf, precision=hi)         # [B,N,D]


# ----------------------------- main ------------------------------------------
if __name__ == "__main__":
    key = jax.random.PRNGKey(0)
    ks = jax.random.split(key, 11)

    gcn_feature = jax.random.normal(ks[0], (B, HN, D), jnp.float32)
    cand = jax.random.normal(ks[1], (B, N_NEWS, D), jnp.float32)
    cat_idx = jax.random.randint(ks[2], (B, HN), 0, C, dtype=jnp.int32)
    # mask = 1 for categories actually present in the history (upstream builds
    # it this way); forward() additionally forces the last column to 1.
    counts = jnp.sum(cat_idx[:, :, None] == jnp.arange(C)[None, None, :], axis=1)
    cat_mask = (counts > 0).astype(jnp.float32)                          # [B, C]

    s = 1.0 / math.sqrt(float(D))
    params = {
        "wk":  jax.random.normal(ks[3], (A, D), jnp.float32) * s,
        "wq":  jax.random.normal(ks[4], (A, D), jnp.float32) * s,
        "bq":  jax.random.normal(ks[5], (A,), jnp.float32) * 0.1,
        "wa":  jax.random.normal(ks[6], (D, D), jnp.float32) * s,
        "ba":  jax.random.normal(ks[7], (D,), jnp.float32) * 0.1,
        "wk2": jax.random.normal(ks[8], (A, D), jnp.float32) * s,
        "wq2": jax.random.normal(ks[9], (A, D), jnp.float32) * s,
        "bq2": jax.random.normal(ks[10], (A,), jnp.float32) * 0.1,
    }

    out = jax.block_until_ready(
        sue_forward(params, gcn_feature, cand, cat_idx, cat_mask, num_steps=2))
    ref = jax.block_until_ready(
        sue_reference(params, gcn_feature, cand, cat_idx, cat_mask))

    assert out.shape == (B, N_NEWS, D), out.shape
    # HIGHEST-precision MXU matmuls; remaining slack covers the two
    # approx-reciprocal softmax denominators (EUP vrcp).
    np.testing.assert_allclose(np.asarray(out), np.asarray(ref),
                               rtol=5e-3, atol=5e-3)
    print("KERNEL_OK")
</pallas_src>

<mosaic_0001>
module attributes {stable_mosaic.version = 11 : i64} {
  func.func @_sue_kernel(%arg0: i32, %arg1: memref<4x16x128xf32, #tpu.memory_space<vmem>>, %arg2: memref<4x2x128xf32, #tpu.memory_space<vmem>>, %arg3: memref<4x8x16xf32, #tpu.memory_space<vmem>>, %arg4: memref<4x1x8xf32, #tpu.memory_space<vmem>>, %arg5: memref<32x128xf32, #tpu.memory_space<vmem>>, %arg6: memref<64x128xf32, #tpu.memory_space<vmem>>, %arg7: memref<1x64xf32, #tpu.memory_space<vmem>>, %arg8: memref<128x128xf32, #tpu.memory_space<vmem>>, %arg9: memref<1x128xf32, #tpu.memory_space<vmem>>, %arg10: memref<32x128xf32, #tpu.memory_space<vmem>>, %arg11: memref<4x2x128xf32, #tpu.memory_space<vmem>>) attributes {dimension_semantics = [#tpu.dimension_semantics<parallel>], iteration_bounds = array<i64: 2>, scalar_prefetch = 0 : i64, scratch_operands = 0 : i64, tpu.core_type = #tpu.core_type<tc>, window_params = [{transform_indices = @transform_0, window_bounds = array<i64: 4, 16, 128>}, {transform_indices = @transform_1, window_bounds = array<i64: 4, 2, 128>}, {transform_indices = @transform_2, window_bounds = array<i64: 4, 8, 16>}, {transform_indices = @transform_3, window_bounds = array<i64: 4, 1, 8>}, {pipeline_mode = #tpu.pipeline_mode<synchronous>, transform_indices = @transform_4, window_bounds = array<i64: 32, 128>}, {pipeline_mode = #tpu.pipeline_mode<synchronous>, transform_indices = @transform_5, window_bounds = array<i64: 64, 128>}, {pipeline_mode = #tpu.pipeline_mode<synchronous>, transform_indices = @transform_6, window_bounds = array<i64: 1, 64>}, {pipeline_mode = #tpu.pipeline_mode<synchronous>, transform_indices = @transform_7, window_bounds = array<i64: 128, 128>}, {pipeline_mode = #tpu.pipeline_mode<synchronous>, transform_indices = @transform_8, window_bounds = array<i64: 1, 128>}, {pipeline_mode = #tpu.pipeline_mode<synchronous>, transform_indices = @transform_9, window_bounds = array<i64: 32, 128>}, {transform_indices = @transform_10, window_bounds = array<i64: 4, 2, 128>}]} {
    %c0 = arith.constant 0 : index
    %c0_0 = arith.constant 0 : index
    %c0_1 = arith.constant 0 : index
    %0 = vector.load %arg1[%c0, %c0_0, %c0_1] : memref<4x16x128xf32, #tpu.memory_space<vmem>>, vector<4x16x128xf32>
    %c0_2 = arith.constant 0 : index
    %c0_3 = arith.constant 0 : index
    %c0_4 = arith.constant 0 : index
    %1 = vector.load %arg2[%c0_2, %c0_3, %c0_4] : memref<4x2x128xf32, #tpu.memory_space<vmem>>, vector<4x2x128xf32>
    %c0_5 = arith.constant 0 : index
    %c0_6 = arith.constant 0 : index
    %c0_7 = arith.constant 0 : index
    %2 = vector.load %arg3[%c0_5, %c0_6, %c0_7] : memref<4x8x16xf32, #tpu.memory_space<vmem>>, vector<4x8x16xf32>
    %3 = vector.shape_cast %0 : vector<4x16x128xf32> to vector<64x128xf32>
    %c0_8 = arith.constant 0 : index
    %c0_9 = arith.constant 0 : index
    %4 = vector.load %arg5[%c0_8, %c0_9] : memref<32x128xf32, #tpu.memory_space<vmem>>, vector<32x128xf32>
    %cst = arith.constant dense<0.000000e+00> : vector<64x32xf32>
    %5 = tpu.matmul %3, %4, %cst {dimension_numbers = #tpu.dot_dimension_numbers<[1], [1], [0], [0], [0, 0, 1, 0], [], []>, precision = #tpu.contract_precision<fp32>} : vector<64x128xf32>, vector<32x128xf32>, vector<64x32xf32> -> vector<64x32xf32>
    %6 = vector.shape_cast %1 : vector<4x2x128xf32> to vector<8x128xf32>
    %c0_10 = arith.constant 0 : index
    %c0_11 = arith.constant 0 : index
    %7 = vector.load %arg6[%c0_10, %c0_11] : memref<64x128xf32, #tpu.memory_space<vmem>>, vector<64x128xf32>
    %cst_12 = arith.constant dense<0.000000e+00> : vector<8x64xf32>
    %8 = tpu.matmul %6, %7, %cst_12 {dimension_numbers = #tpu.dot_dimension_numbers<[1], [1], [0], [0], [0, 0, 1, 0], [], []>, precision = #tpu.contract_precision<fp32>} : vector<8x128xf32>, vector<64x128xf32>, vector<8x64xf32> -> vector<8x64xf32>
    %c0_13 = arith.constant 0 : index
    %c0_14 = arith.constant 0 : index
    %9 = vector.load %arg7[%c0_13, %c0_14] : memref<1x64xf32, #tpu.memory_space<vmem>>, vector<1x64xf32>
    %10 = vector.broadcast %9 : vector<1x64xf32> to vector<8x64xf32>
    %11 = arith.addf %8, %10 : vector<8x64xf32>
    %12 = vector.extract_strided_slice %11 {offsets = [0, 0], sizes = [8, 32], strides = [1, 1]} : vector<8x64xf32> to vector<8x32xf32>
    %13 = vector.shape_cast %12 : vector<8x32xf32> to vector<4x2x32xf32>
    %14 = vector.extract_strided_slice %11 {offsets = [0, 32], sizes = [8, 32], strides = [1, 1]} : vector<8x64xf32> to vector<8x32xf32>
    %15 = vector.shape_cast %14 : vector<8x32xf32> to vector<4x2x32xf32>
    %16 = vector.shape_cast %5 : vector<64x32xf32> to vector<4x16x32xf32>
    "tpu.trace_start"() <{level = 10 : i32, message = "bna,bha->bnh"}> : () -> ()
    %cst_15 = arith.constant dense<0.000000e+00> : vector<4x2x16xf32>
    %17 = tpu.matmul %13, %16, %cst_15 {dimension_numbers = #tpu.dot_dimension_numbers<[2], [2], [1], [1], [0, 0, 0, 1, 1, 1], [0], [0]>, precision = #tpu.contract_precision<fp32>} : vector<4x2x32xf32>, vector<4x16x32xf32>, vector<4x2x16xf32> -> vector<4x2x16xf32>
    "tpu.trace_stop"() : () -> ()
    %cst_16 = arith.constant 0.176776692 : f32
    %18 = vector.broadcast %cst_16 : f32 to vector<4x2x16xf32>
    %19 = arith.mulf %17, %18 : vector<4x2x16xf32>
    %20 = vector.shape_cast %2 : vector<4x8x16xf32> to vector<4x1x8x16xf32>
    %21 = vector.shape_cast %19 : vector<4x2x16xf32> to vector<4x2x1x16xf32>
    %cst_17 = arith.constant 1.000000e+00 : f32
    %22 = vector.broadcast %cst_17 : f32 to vector<4x1x8x16xf32>
    %23 = arith.subf %22, %20 : vector<4x1x8x16xf32>
    %cst_18 = arith.constant 1.000000e+30 : f32
    %24 = vector.broadcast %cst_18 : f32 to vector<4x1x8x16xf32>
    %25 = arith.mulf %23, %24 : vector<4x1x8x16xf32>
    %26 = vector.broadcast %21 : vector<4x2x1x16xf32> to vector<4x2x8x16xf32>
    %27 = vector.broadcast %25 : vector<4x1x8x16xf32> to vector<4x2x8x16xf32>
    %28 = arith.subf %26, %27 : vector<4x2x8x16xf32>
    %cst_19 = arith.constant dense<0xFF800000> : vector<4x2x8xf32>
    %29 = vector.multi_reduction <maximumf>, %28, %cst_19 [3] : vector<4x2x8x16xf32> to vector<4x2x8xf32>
    %30 = vector.shape_cast %29 : vector<4x2x8xf32> to vector<4x2x8x1xf32>
    %31 = vector.broadcast %21 : vector<4x2x1x16xf32> to vector<4x2x8x16xf32>
    %32 = vector.broadcast %30 : vector<4x2x8x1xf32> to vector<4x2x8x16xf32>
    %33 = arith.subf %31, %32 : vector<4x2x8x16xf32>
    %cst_20 = arith.constant 0.000000e+00 : f32
    %34 = vector.broadcast %cst_20 : f32 to vector<4x2x8x16xf32>
    %35 = arith.minimumf %33, %34 : vector<4x2x8x16xf32>
    %36 = math.exp %35 : vector<4x2x8x16xf32>
    %37 = vector.broadcast %20 : vector<4x1x8x16xf32> to vector<4x2x8x16xf32>
    %38 = arith.mulf %37, %36 : vector<4x2x8x16xf32>
    %cst_21 = arith.constant dense<0.000000e+00> : vector<4x2x8xf32>
    %39 = vector.multi_reduction <add>, %38, %cst_21 [3] : vector<4x2x8x16xf32> to vector<4x2x8xf32>
    %40 = vector.shape_cast %39 : vector<4x2x8xf32> to vector<4x2x8x1xf32>
    %cst_22 = arith.constant 0.000000e+00 : f32
    %41 = vector.broadcast %cst_22 : f32 to vector<4x2x8x1xf32>
    %42 = arith.cmpf ogt, %40, %41 : vector<4x2x8x1xf32>
    %43 = tpu.reciprocal %40 {approx = true} : vector<4x2x8x1xf32> -> vector<4x2x8x1xf32>
    %cst_23 = arith.constant 0.000000e+00 : f32
    %44 = vector.broadcast %cst_23 : f32 to vector<4x2x8x1xf32>
    %45 = arith.select %42, %43, %44 : vector<4x2x8x1xi1>, vector<4x2x8x1xf32>
    %46 = vector.broadcast %45 : vector<4x2x8x1xf32> to vector<4x2x8x16xf32>
    %47 = arith.mulf %38, %46 : vector<4x2x8x16xf32>
    %48 = vector.shape_cast %47 : vector<4x2x8x16xf32> to vector<4x16x16xf32>
    "tpu.trace_start"() <{level = 10 : i32, message = "bch,bhd->bcd"}> : () -> ()
    %cst_24 = arith.constant dense<0.000000e+00> : vector<4x16x128xf32>
    %49 = tpu.matmul %48, %0, %cst_24 {dimension_numbers = #tpu.dot_dimension_numbers<[2], [1], [1], [2], [0, 0, 0, 1, 1, 2], [0], [0]>, precision = #tpu.contract_precision<fp32>} : vector<4x16x16xf32>, vector<4x16x128xf32>, vector<4x16x128xf32> -> vector<4x16x128xf32>
    "tpu.trace_stop"() : () -> ()
    %50 = vector.shape_cast %49 : vector<4x16x128xf32> to vector<64x128xf32>
    %c0_25 = arith.constant 0 : index
    %c0_26 = arith.constant 0 : index
    %51 = vector.load %arg8[%c0_25, %c0_26] : memref<128x128xf32, #tpu.memory_space<vmem>>, vector<128x128xf32>
    %cst_27 = arith.constant dense<0.000000e+00> : vector<64x128xf32>
    %52 = tpu.matmul %50, %51, %cst_27 {dimension_numbers = #tpu.dot_dimension_numbers<[1], [1], [0], [0], [0, 0, 1, 0], [], []>, precision = #tpu.contract_precision<fp32>} : vector<64x128xf32>, vector<128x128xf32>, vector<64x128xf32> -> vector<64x128xf32>
    %c0_28 = arith.constant 0 : index
    %c0_29 = arith.constant 0 : index
    %53 = vector.load %arg9[%c0_28, %c0_29] : memref<1x128xf32, #tpu.memory_space<vmem>>, vector<1x128xf32>
    %54 = vector.broadcast %53 : vector<1x128xf32> to vector<64x128xf32>
    %55 = arith.addf %52, %54 : vector<64x128xf32>
    %cst_30 = arith.constant 0.000000e+00 : f32
    %56 = vector.broadcast %cst_30 : f32 to vector<64x128xf32>
    %57 = arith.maximumf %55, %56 : vector<64x128xf32>
    %58 = arith.addf %57, %50 : vector<64x128xf32>
    %c0_31 = arith.constant 0 : index
    %c0_32 = arith.constant 0 : index
    %59 = vector.load %arg10[%c0_31, %c0_32] : memref<32x128xf32, #tpu.memory_space<vmem>>, vector<32x128xf32>
    %cst_33 = arith.constant dense<0.000000e+00> : vector<64x32xf32>
    %60 = tpu.matmul %58, %59, %cst_33 {dimension_numbers = #tpu.dot_dimension_numbers<[1], [1], [0], [0], [0, 0, 1, 0], [], []>, precision = #tpu.contract_precision<fp32>} : vector<64x128xf32>, vector<32x128xf32>, vector<64x32xf32> -> vector<64x32xf32>
    %61 = vector.shape_cast %60 : vector<64x32xf32> to vector<4x2x8x32xf32>
    %62 = vector.shape_cast %15 : vector<4x2x32xf32> to vector<4x2x1x32xf32>
    %63 = vector.broadcast %62 : vector<4x2x1x32xf32> to vector<4x2x8x32xf32>
    %64 = arith.mulf %61, %63 : vector<4x2x8x32xf32>
    %cst_34 = arith.constant dense<0.000000e+00> : vector<4x2x8xf32>
    %65 = vector.multi_reduction <add>, %64, %cst_34 [3] : vector<4x2x8x32xf32> to vector<4x2x8xf32>
    %cst_35 = arith.constant 0.176776692 : f32
    %66 = vector.broadcast %cst_35 : f32 to vector<4x2x8xf32>
    %67 = arith.mulf %65, %66 : vector<4x2x8xf32>
    %c0_36 = arith.constant 0 : index
    %c0_37 = arith.constant 0 : index
    %c0_38 = arith.constant 0 : index
    %68 = vector.load %arg4[%c0_36, %c0_37, %c0_38] : memref<4x1x8xf32, #tpu.memory_space<vmem>>, vector<4x1x8xf32>
    %69 = vector.broadcast %68 : vector<4x1x8xf32> to vector<4x2x8xf32>
    %70 = arith.addf %67, %69 : vector<4x2x8xf32>
    %cst_39 = arith.constant dense<0xFF800000> : vector<4x2xf32>
    %71 = vector.multi_reduction <maximumf>, %70, %cst_39 [2] : vector<4x2x8xf32> to vector<4x2xf32>
    %72 = vector.shape_cast %71 : vector<4x2xf32> to vector<4x2x1xf32>
    %73 = vector.broadcast %72 : vector<4x2x1xf32> to vector<4x2x8xf32>
    %74 = arith.subf %70, %73 : vector<4x2x8xf32>
    %75 = math.exp %74 : vector<4x2x8xf32>
    %cst_40 = arith.constant dense<0.000000e+00> : vector<4x2xf32>
    %76 = vector.multi_reduction <add>, %75, %cst_40 [2] : vector<4x2x8xf32> to vector<4x2xf32>
    %77 = vector.shape_cast %76 : vector<4x2xf32> to vector<4x2x1xf32>
    %78 = tpu.reciprocal %77 {approx = true} : vector<4x2x1xf32> -> vector<4x2x1xf32>
    %79 = vector.broadcast %78 : vector<4x2x1xf32> to vector<4x2x8xf32>
    %80 = arith.mulf %75, %79 : vector<4x2x8xf32>
    %81 = vector.shape_cast %58 : vector<64x128xf32> to vector<4x2x8x128xf32>
    %82 = vector.shape_cast %80 : vector<4x2x8xf32> to vector<4x2x8x1xf32>
    %83 = vector.broadcast %82 : vector<4x2x8x1xf32> to vector<4x2x8x128xf32>
    %84 = arith.mulf %83, %81 : vector<4x2x8x128xf32>
    %cst_41 = arith.constant dense<0.000000e+00> : vector<4x2x128xf32>
    %85 = vector.multi_reduction <add>, %84, %cst_41 [2] : vector<4x2x8x128xf32> to vector<4x2x128xf32>
    %c0_42 = arith.constant 0 : index
    %c0_43 = arith.constant 0 : index
    %c0_44 = arith.constant 0 : index
    %86 = vector.load %arg11[%c0_42, %c0_43, %c0_44] : memref<4x2x128xf32, #tpu.memory_space<vmem>>, vector<4x2x128xf32>
    tpu.vector_store %arg11[%c0_42, %c0_43, %c0_44], %85 {strides = array<i32>} : memref<4x2x128xf32, #tpu.memory_space<vmem>>, vector<4x2x128xf32>,
    return
  }
  func.func @transform_0(%arg0: i32) -> (i32, i32, i32) {
    %c0_i32 = arith.constant 0 : i32
    %c0_i32_0 = arith.constant 0 : i32
    %c0_i32_1 = arith.constant 0 : i32
    return %arg0, %c0_i32, %c0_i32_0 : i32, i32, i32
  }
  func.func @transform_1(%arg0: i32) -> (i32, i32, i32) {
    %c0_i32 = arith.constant 0 : i32
    %c0_i32_0 = arith.constant 0 : i32
    %c0_i32_1 = arith.constant 0 : i32
    return %arg0, %c0_i32, %c0_i32_0 : i32, i32, i32
  }
  func.func @transform_2(%arg0: i32) -> (i32, i32, i32) {
    %c0_i32 = arith.constant 0 : i32
    %c0_i32_0 = arith.constant 0 : i32
    %c0_i32_1 = arith.constant 0 : i32
    return %arg0, %c0_i32, %c0_i32_0 : i32, i32, i32
  }
  func.func @transform_3(%arg0: i32) -> (i32, i32, i32) {
    %c0_i32 = arith.constant 0 : i32
    %c0_i32_0 = arith.constant 0 : i32
    %c0_i32_1 = arith.constant 0 : i32
    return %arg0, %c0_i32, %c0_i32_0 : i32, i32, i32
  }
  func.func @transform_4(%arg0: i32) -> (i32, i32) {
    %c0_i32 = arith.constant 0 : i32
    %c0_i32_0 = arith.constant 0 : i32
    %c0_i32_1 = arith.constant 0 : i32
    return %c0_i32, %c0_i32_0 : i32, i32
  }
  func.func @transform_5(%arg0: i32) -> (i32, i32) {
    %c0_i32 = arith.constant 0 : i32
    %c0_i32_0 = arith.constant 0 : i32
    %c0_i32_1 = arith.constant 0 : i32
    return %c0_i32, %c0_i32_0 : i32, i32
  }
  func.func @transform_6(%arg0: i32) -> (i32, i32) {
    %c0_i32 = arith.constant 0 : i32
    %c0_i32_0 = arith.constant 0 : i32
    %c0_i32_1 = arith.constant 0 : i32
    return %c0_i32, %c0_i32_0 : i32, i32
  }
  func.func @transform_7(%arg0: i32) -> (i32, i32) {
    %c0_i32 = arith.constant 0 : i32
    %c0_i32_0 = arith.constant 0 : i32
    %c0_i32_1 = arith.constant 0 : i32
    return %c0_i32, %c0_i32_0 : i32, i32
  }
  func.func @transform_8(%arg0: i32) -> (i32, i32) {
    %c0_i32 = arith.constant 0 : i32
    %c0_i32_0 = arith.constant 0 : i32
    %c0_i32_1 = arith.constant 0 : i32
    return %c0_i32, %c0_i32_0 : i32, i32
  }
  func.func @transform_9(%arg0: i32) -> (i32, i32) {
    %c0_i32 = arith.constant 0 : i32
    %c0_i32_0 = arith.constant 0 : i32
    %c0_i32_1 = arith.constant 0 : i32
    return %c0_i32, %c0_i32_0 : i32, i32
  }
  func.func @transform_10(%arg0: i32) -> (i32, i32, i32) {
    %c0_i32 = arith.constant 0 : i32
    %c0_i32_0 = arith.constant 0 : i32
    %c0_i32_1 = arith.constant 0 : i32
    return %arg0, %c0_i32, %c0_i32_0 : i32, i32, i32
  }
}

</mosaic_0001>

<llo_original>
// kernel: tpu_custom_call.1
$region0: #{tpu_custom_call.1}
  #allocation0 [shape = 'u32[]', space=smem, size = 0x4, offset = 0x4, fixed_abs, tag = 'smem constant byte address 0x4 - core index']
  #allocation1 [shape = 'u32[72,128]{1,0:T(1,128)}', space=vmem, size = 0x9000, scoped, tag = 'internal scratch']
  %s0 = inlined_call_operand.hbm [shape: f32[8,16,128], index: 0, kind: input, shape index: {}]
  %s1 = inlined_call_operand.hbm [shape: f32[8,2,128], index: 1, kind: input, shape index: {}]
  %s2 = inlined_call_operand.hbm [shape: f32[8,8,16], index: 2, kind: input, shape index: {}]
  %s3 = inlined_call_operand.hbm [shape: f32[8,1,8], index: 3, kind: input, shape index: {}]
  %s4 = inlined_call_operand.hbm [shape: f32[32,128], index: 4, kind: input, shape index: {}]
  %s5 = inlined_call_operand.hbm [shape: f32[64,128], index: 5, kind: input, shape index: {}]
  %s6 = inlined_call_operand.vmem [shape: f32[1,64], index: 6, kind: input, shape index: {}]
  %s7 = inlined_call_operand.hbm [shape: f32[128,128], index: 7, kind: input, shape index: {}]
  %s8 = inlined_call_operand.vmem [shape: f32[1,128], index: 8, kind: input, shape index: {}]
  %s9 = inlined_call_operand.hbm [shape: f32[32,128], index: 9, kind: input, shape index: {}]
  %s10 = inlined_call_operand.hbm [shape: f32[8,2,128], index: 10, kind: output, shape index: {}]
  %s11 = sld [smem:[#allocation0]]
  $region105: #{tpu_custom_call.1} parent=0
    _
  %s13 = ssub.s32 1, %s11
  %s14 = scalar_select 0, %s13, %s11
  $region1: #{tpu_custom_call.1} parent=0
    #allocation2 [shape = 'u8[65536]{0}', space=vmem, size = 0x10000, scoped, tag = 'input window, operand 0']
    #allocation3 [shape = 's32[2]{0}', space=sflag, size = 0x8, scoped, tag = 'scoped memory for tpu_custom_call.1']
    #allocation4 [shape = 's32[2]{0}', space=sflag, size = 0x8, scoped, tag = 'scoped memory for tpu_custom_call.1']
    #allocation5 [shape = 'u8[8192]{0}', space=vmem, size = 0x2000, scoped, tag = 'input window, operand 1']
    #allocation6 [shape = 's32[2]{0}', space=sflag, size = 0x8, scoped, tag = 'scoped memory for tpu_custom_call.1']
    #allocation7 [shape = 'u8[32768]{0}', space=vmem, size = 0x8000, scoped, tag = 'input window, operand 2']
    #allocation8 [shape = 'u8[4096]{0}', space=vmem, size = 0x1000, scoped, tag = 'input window, operand 3']
    #allocation9 [shape = 's32[2]{0}', space=sflag, size = 0x8, scoped, tag = 'scoped memory for tpu_custom_call.1']
    #allocation10 [shape = 'u8[16384]{0}', space=vmem, size = 0x4000, scoped, tag = 'input window, operand 4, single buffered']
    #allocation11 [shape = 'u8[32768]{0}', space=vmem, size = 0x8000, scoped, tag = 'input window, operand 5, single buffered']
    #allocation12 [shape = 's32[1]{0}', space=sflag, size = 0x4, scoped, tag = 'scoped memory for tpu_custom_call.1']
    #allocation13 [shape = 'u8[65536]{0}', space=vmem, size = 0x10000, scoped, tag = 'input window, operand 7, single buffered']
    #allocation14 [shape = 'u8[16384]{0}', space=vmem, size = 0x4000, scoped, tag = 'input window, operand 9, single buffered']
    #allocation15 [shape = 's32[1]{0}', space=sflag, size = 0x4, scoped, tag = 'scoped memory for tpu_custom_call.1']
    #allocation16 [shape = 'u8[8192]{0}', space=vmem, size = 0x2000, scoped, tag = 'output window, operand 0']
    %15 = vsyncpa [#allocation3], 0
    %s16 = scalar_lea.sflag [#allocation3], 1
    %17 = vsyncpa %s16, 0
    %18 = vsyncpa [#allocation6], 0
    %s19 = scalar_lea.sflag [#allocation6], 1
    %20 = vsyncpa %s19, 0
    %21 = vsyncpa [#allocation9], 0
    %s22 = scalar_lea.sflag [#allocation9], 1
    %23 = vsyncpa %s22, 0
    %24 = vsyncpa [#allocation12], 0
    %25 = vsyncpa [#allocation15], 0
    %26 = vsyncpa [#allocation4], 0
    %s27 = scalar_lea.sflag [#allocation4], 1
    %28 = vsyncpa %s27, 0
    loop: start=0, step=1, limit=4
    $region2: #{tpu_custom_call.1} parent=1 // loop_pre_header
      _
    $region3: #{tpu_custom_call.1} parent=1 // loop_header
      %s30 = sphi 0, %s34
      %p31 = scmp.ge.s32.totalorder %s30, 4
      %s40 = sphi 0, %s42
      %s43 = sphi 0, %s40
      %s44 = sphi 0, %s43
      %s60 = sphi 0, %s44
      %s66 = sphi 0, %s68
      %s69 = sphi 0, %s66
      %s70 = sphi 0, %s69
      %s86 = sphi 0, %s70
      %s92 = sphi 0, %s94
      %s95 = sphi 0, %s92
      %s96 = sphi 0, %s95
      %s112 = sphi 0, %s96
      %s118 = sphi 0, %s120
      %s121 = sphi 0, %s118
      %s122 = sphi 0, %s121
      %s138 = sphi 0, %s122
      %s142 = sphi 0, %s142
      %s144 = sphi 0, %s142
      %s145 = sphi 0, %s144
      %s159 = sphi 0, %s145
      %s163 = sphi 0, %s163
      %s165 = sphi 0, %s163
      %s166 = sphi 0, %s165
      %s180 = sphi 0, %s166
      %s184 = sphi 0, %s184
      %s186 = sphi 0, %s184
      %s187 = sphi 0, %s186
      %s201 = sphi 0, %s187
      %s205 = sphi 0, %s205
      %s207 = sphi 0, %s205
      %s208 = sphi 0, %s207
      %s222 = sphi 0, %s208
      %s226 = sphi 0, %s226
      %s228 = sphi 0, %s226
      %s229 = sphi 0, %s228
      %s243 = sphi 0, %s229
      %s247 = sphi 0, %s247
      %s249 = sphi 0, %s247
      %s250 = sphi 0, %s249
      %s264 = sphi 0, %s250
      %s270 = sphi 0, %s272
      %s273 = sphi 0, %s270
      %s274 = sphi 0, %s273
      %s290 = sphi 0, %s274
    $region4: #{tpu_custom_call.1} parent=1 // loop_header_branch
      %33 = sbr.rel (%p31) target = $region8
    $region5: #{tpu_custom_call.1} parent=1 // loop_body
      %s35 = ssub.s32 %s30, 1
      %s36 = ssub.s32 %s30, 2
      %s37 = sadd.s32 %s30, 1
      %s38 = ssub.s32 %s30, %s37
      %p39 = scmp.eq.s32.totalorder %s38, 0
      %s41 = sadd.s32 %s40, 1
      %s42 = scalar_select %p39, %s40, %s41
      %p45 = pneg %p39
      %p46 = scmp.eq.s32.totalorder %s30, 1
      %p47 = por %p45, %p46
      %p48 = scmp.ne.s32.totalorder %s40, %s43
      %p49 = scmp.eq.s32.totalorder %s30, 0
      %p50 = por %p48, %p49
      %p51 = scmp.ne.s32.totalorder %s40, %s43
      %p52 = scmp.eq.s32.totalorder %s35, 1
      %p53 = por %p51, %p52
      %p54 = scmp.ne.s32.totalorder %s43, %s44
      %p55 = scmp.eq.s32.totalorder %s35, 0
      %p56 = por %p54, %p55
      %p57 = scmp.ne.s32.totalorder %s43, %s44
      %p58 = scmp.eq.s32.totalorder %s36, 1
      %p59 = por %p57, %p58
      %p61 = scmp.ne.s32.totalorder %s44, %s60
      %p62 = scmp.eq.s32.totalorder %s36, 0
      %p63 = por %p61, %p62
      %s64 = ssub.s32 %s30, %s37
      %p65 = scmp.eq.s32.totalorder %s64, 0
      %s67 = sadd.s32 %s66, 1
      %s68 = scalar_select %p65, %s66, %s67
      %p71 = pneg %p65
      %p72 = scmp.eq.s32.totalorder %s30, 1
      %p73 = por %p71, %p72
      %p74 = scmp.ne.s32.totalorder %s66, %s69
      %p75 = scmp.eq.s32.totalorder %s30, 0
      %p76 = por %p74, %p75
      %p77 = scmp.ne.s32.totalorder %s66, %s69
      %p78 = scmp.eq.s32.totalorder %s35, 1
      %p79 = por %p77, %p78
      %p80 = scmp.ne.s32.totalorder %s69, %s70
      %p81 = scmp.eq.s32.totalorder %s35, 0
      %p82 = por %p80, %p81
      %p83 = scmp.ne.s32.totalorder %s69, %s70
      %p84 = scmp.eq.s32.totalorder %s36, 1
      %p85 = por %p83, %p84
      %p87 = scmp.ne.s32.totalorder %s70, %s86
      %p88 = scmp.eq.s32.totalorder %s36, 0
      %p89 = por %p87, %p88
      %s90 = ssub.s32 %s30, %s37
      %p91 = scmp.eq.s32.totalorder %s90, 0
      %s93 = sadd.s32 %s92, 1
      %s94 = scalar_select %p91, %s92, %s93
      %p97 = pneg %p91
      %p98 = scmp.eq.s32.totalorder %s30, 1
      %p99 = por %p97, %p98
      %p100 = scmp.ne.s32.totalorder %s92, %s95
      %p101 = scmp.eq.s32.totalorder %s30, 0
      %p102 = por %p100, %p101
      %p103 = scmp.ne.s32.totalorder %s92, %s95
      %p104 = scmp.eq.s32.totalorder %s35, 1
      %p105 = por %p103, %p104
      %p106 = scmp.ne.s32.totalorder %s95, %s96
      %p107 = scmp.eq.s32.totalorder %s35, 0
      %p108 = por %p106, %p107
      %p109 = scmp.ne.s32.totalorder %s95, %s96
      %p110 = scmp.eq.s32.totalorder %s36, 1
      %p111 = por %p109, %p110
      %p113 = scmp.ne.s32.totalorder %s96, %s112
      %p114 = scmp.eq.s32.totalorder %s36, 0
      %p115 = por %p113, %p114
      %s116 = ssub.s32 %s30, %s37
      %p117 = scmp.eq.s32.totalorder %s116, 0
      %s119 = sadd.s32 %s118, 1
      %s120 = scalar_select %p117, %s118, %s119
      %p123 = pneg %p117
      %p124 = scmp.eq.s32.totalorder %s30, 1
      %p125 = por %p123, %p124
      %p126 = scmp.ne.s32.totalorder %s118, %s121
      %p127 = scmp.eq.s32.totalorder %s30, 0
      %p128 = por %p126, %p127
      %p129 = scmp.ne.s32.totalorder %s118, %s121
      %p130 = scmp.eq.s32.totalorder %s35, 1
      %p131 = por %p129, %p130
      %p132 = scmp.ne.s32.totalorder %s121, %s122
      %p133 = scmp.eq.s32.totalorder %s35, 0
      %p134 = por %p132, %p133
      %p135 = scmp.ne.s32.totalorder %s121, %s122
      %p136 = scmp.eq.s32.totalorder %s36, 1
      %p137 = por %p135, %p136
      %p139 = scmp.ne.s32.totalorder %s122, %s138
      %p140 = scmp.eq.s32.totalorder %s36, 0
      %p141 = por %p139, %p140
      %s143 = sadd.s32 %s142, 1
      %p146 = scmp.eq.s32.totalorder %s30, 1
      %p147 = scmp.ne.s32.totalorder %s142, %s144
      %p148 = scmp.eq.s32.totalorder %s30, 0
      %p149 = por %p147, %p148
      %p150 = scmp.ne.s32.totalorder %s142, %s144
      %p151 = scmp.eq.s32.totalorder %s35, 1
      %p152 = por %p150, %p151
      %p153 = scmp.ne.s32.totalorder %s144, %s145
      %p154 = scmp.eq.s32.totalorder %s35, 0
      %p155 = por %p153, %p154
      %p156 = scmp.ne.s32.totalorder %s144, %s145
      %p157 = scmp.eq.s32.totalorder %s36, 1
      %p158 = por %p156, %p157
      %p160 = scmp.ne.s32.totalorder %s145, %s159
      %p161 = scmp.eq.s32.totalorder %s36, 0
      %p162 = por %p160, %p161
      %s164 = sadd.s32 %s163, 1
      %p167 = scmp.eq.s32.totalorder %s30, 1
      %p168 = scmp.ne.s32.totalorder %s163, %s165
      %p169 = scmp.eq.s32.totalorder %s30, 0
      %p170 = por %p168, %p169
      %p171 = scmp.ne.s32.totalorder %s163, %s165
      %p172 = scmp.eq.s32.totalorder %s35, 1
      %p173 = por %p171, %p172
      %p174 = scmp.ne.s32.totalorder %s165, %s166
      %p175 = scmp.eq.s32.totalorder %s35, 0
      %p176 = por %p174, %p175
      %p177 = scmp.ne.s32.totalorder %s165, %s166
      %p178 = scmp.eq.s32.totalorder %s36, 1
      %p179 = por %p177, %p178
      %p181 = scmp.ne.s32.totalorder %s166, %s180
      %p182 = scmp.eq.s32.totalorder %s36, 0
      %p183 = por %p181, %p182
      %s185 = sadd.s32 %s184, 1
      %p188 = scmp.eq.s32.totalorder %s30, 1
      %p189 = scmp.ne.s32.totalorder %s184, %s186
      %p190 = scmp.eq.s32.totalorder %s30, 0
      %p191 = por %p189, %p190
      %p192 = scmp.ne.s32.totalorder %s184, %s186
      %p193 = scmp.eq.s32.totalorder %s35, 1
      %p194 = por %p192, %p193
      %p195 = scmp.ne.s32.totalorder %s186, %s187
      %p196 = scmp.eq.s32.totalorder %s35, 0
      %p197 = por %p195, %p196
      %p198 = scmp.ne.s32.totalorder %s186, %s187
      %p199 = scmp.eq.s32.totalorder %s36, 1
      %p200 = por %p198, %p199
      %p202 = scmp.ne.s32.totalorder %s187, %s201
      %p203 = scmp.eq.s32.totalorder %s36, 0
      %p204 = por %p202, %p203
      %s206 = sadd.s32 %s205, 1
      %p209 = scmp.eq.s32.totalorder %s30, 1
      %p210 = scmp.ne.s32.totalorder %s205, %s207
      %p211 = scmp.eq.s32.totalorder %s30, 0
      %p212 = por %p210, %p211
      %p213 = scmp.ne.s32.totalorder %s205, %s207
      %p214 = scmp.eq.s32.totalorder %s35, 1
      %p215 = por %p213, %p214
      %p216 = scmp.ne.s32.totalorder %s207, %s208
      %p217 = scmp.eq.s32.totalorder %s35, 0
      %p218 = por %p216, %p217
      %p219 = scmp.ne.s32.totalorder %s207, %s208
      %p220 = scmp.eq.s32.totalorder %s36, 1
      %p221 = por %p219, %p220
      %p223 = scmp.ne.s32.totalorder %s208, %s222
      %p224 = scmp.eq.s32.totalorder %s36, 0
      %p225 = por %p223, %p224
      %s227 = sadd.s32 %s226, 1
      %p230 = scmp.eq.s32.totalorder %s30, 1
      %p231 = scmp.ne.s32.totalorder %s226, %s228
      %p232 = scmp.eq.s32.totalorder %s30, 0
      %p233 = por %p231, %p232
      %p234 = scmp.ne.s32.totalorder %s226, %s228
      %p235 = scmp.eq.s32.totalorder %s35, 1
      %p236 = por %p234, %p235
      %p237 = scmp.ne.s32.totalorder %s228, %s229
      %p238 = scmp.eq.s32.totalorder %s35, 0
      %p239 = por %p237, %p238
      %p240 = scmp.ne.s32.totalorder %s228, %s229
      %p241 = scmp.eq.s32.totalorder %s36, 1
      %p242 = por %p240, %p241
      %p244 = scmp.ne.s32.totalorder %s229, %s243
      %p245 = scmp.eq.s32.totalorder %s36, 0
      %p246 = por %p244, %p245
      %s248 = sadd.s32 %s247, 1
      %p251 = scmp.eq.s32.totalorder %s30, 1
      %p252 = scmp.ne.s32.totalorder %s247, %s249
      %p253 = scmp.eq.s32.totalorder %s30, 0
      %p254 = por %p252, %p253
      %p255 = scmp.ne.s32.totalorder %s247, %s249
      %p256 = scmp.eq.s32.totalorder %s35, 1
      %p257 = por %p255, %p256
      %p258 = scmp.ne.s32.totalorder %s249, %s250
      %p259 = scmp.eq.s32.totalorder %s35, 0
      %p260 = por %p258, %p259
      %p261 = scmp.ne.s32.totalorder %s249, %s250
      %p262 = scmp.eq.s32.totalorder %s36, 1
      %p263 = por %p261, %p262
      %p265 = scmp.ne.s32.totalorder %s250, %s264
      %p266 = scmp.eq.s32.totalorder %s36, 0
      %p267 = por %p265, %p266
      %s268 = ssub.s32 %s30, %s37
      %p269 = scmp.eq.s32.totalorder %s268, 0
      %s271 = sadd.s32 %s270, 1
      %s272 = scalar_select %p269, %s270, %s271
      %p275 = pneg %p269
      %p276 = scmp.eq.s32.totalorder %s30, 1
      %p277 = por %p275, %p276
      %p278 = scmp.ne.s32.totalorder %s270, %s273
      %p279 = scmp.eq.s32.totalorder %s30, 0
      %p280 = por %p278, %p279
      %p281 = scmp.ne.s32.totalorder %s270, %s273
      %p282 = scmp.eq.s32.totalorder %s35, 1
      %p283 = por %p281, %p282
      %p284 = scmp.ne.s32.totalorder %s273, %s274
      %p285 = scmp.eq.s32.totalorder %s35, 0
      %p286 = por %p284, %p285
      %p287 = scmp.ne.s32.totalorder %s273, %s274
      %p288 = scmp.eq.s32.totalorder %s36, 1
      %p289 = por %p287, %p288
      %p291 = scmp.ne.s32.totalorder %s274, %s290
      %p292 = scmp.eq.s32.totalorder %s36, 0
      %p293 = por %p291, %p292
      %p294 = scmp.le.s32.totalorder 1, %s30
      %p295 = scmp.lt.s32.totalorder %s30, 3
      %p296 = pnand %p294, %p295
      %p297 = pneg %p296
      // Predicated region
      $region9: #{tpu_custom_call.1} parent=5 // pred_check
        _
      $region10: #{tpu_custom_call.1} parent=5 // pred_check_branch
        %299 = sbr.rel (%p296) target = $region12
      $region11: #{tpu_custom_call.1} parent=5 // pred_region
        %s300 = ssub.s32 %s30, 1
        // Predicated region
        $region13: #{tpu_custom_call.1} parent=11 // pred_check
          %p301 = pneg %p155
        $region14: #{tpu_custom_call.1} parent=11 // pred_check_branch
          %303 = sbr.rel (%p301) target = $region16
        $region15: #{tpu_custom_call.1} parent=11 // pred_region
          %305 = vsyncadd [#allocation9], 0
          %s306 = sshll.u32 %s4, 4
          %s307 = int_to_ptr.hbm [resolvable:$true] %s306
          %s308 = sshll.u32 [#allocation10], 4
          %s309 = int_to_ptr.vmem [resolvable:$true] %s308
          %314 = dma.hbm_to_vmem [thread:$0]  %s307, 512, %s309, [#allocation9], 128, 128, 8
        $region16: #{tpu_custom_call.1} parent=11 // pred_fallthru
          _
        // Predicated region
        $region17: #{tpu_custom_call.1} parent=11 // pred_check
          %p315 = pneg %p176
        $region18: #{tpu_custom_call.1} parent=11 // pred_check_branch
          %317 = sbr.rel (%p315) target = $region20
        $region19: #{tpu_custom_call.1} parent=11 // pred_region
          %319 = vsyncadd [#allocation12], 0
          %s320 = sshll.u32 %s5, 4
          %s321 = int_to_ptr.hbm [resolvable:$true] %s320
          %s322 = sshll.u32 [#allocation11], 4
          %s323 = int_to_ptr.vmem [resolvable:$true] %s322
          %328 = dma.hbm_to_vmem [thread:$0]  %s321, 1024, %s323, [#allocation12], 128, 128, 8
        $region20: #{tpu_custom_call.1} parent=11 // pred_fallthru
          _
        // Predicated region
        $region21: #{tpu_custom_call.1} parent=11 // pred_check
          %p329 = pneg %p197
        $region22: #{tpu_custom_call.1} parent=11 // pred_check_branch
          %331 = sbr.rel (%p329) target = $region24
        $region23: #{tpu_custom_call.1} parent=11 // pred_region
          _
        $region24: #{tpu_custom_call.1} parent=11 // pred_fallthru
          _
        // Predicated region
        $region25: #{tpu_custom_call.1} parent=11 // pred_check
          %p332 = pneg %p218
        $region26: #{tpu_custom_call.1} parent=11 // pred_check_branch
          %334 = sbr.rel (%p332) target = $region28
        $region27: #{tpu_custom_call.1} parent=11 // pred_region
          %336 = vsyncadd [#allocation12], 0
          %s337 = sshll.u32 %s7, 4
          %s338 = int_to_ptr.hbm [resolvable:$true] %s337
          %s339 = sshll.u32 [#allocation13], 4
          %s340 = int_to_ptr.vmem [resolvable:$true] %s339
          %345 = dma.hbm_to_vmem [thread:$0]  %s338, 2048, %s340, [#allocation12], 128, 128, 8
        $region28: #{tpu_custom_call.1} parent=11 // pred_fallthru
          _
        // Predicated region
        $region29: #{tpu_custom_call.1} parent=11 // pred_check
          %p346 = pneg %p239
        $region30: #{tpu_custom_call.1} parent=11 // pred_check_branch
          %348 = sbr.rel (%p346) target = $region32
        $region31: #{tpu_custom_call.1} parent=11 // pred_region
          _
        $region32: #{tpu_custom_call.1} parent=11 // pred_fallthru
          _
        // Predicated region
        $region33: #{tpu_custom_call.1} parent=11 // pred_check
          %p349 = pneg %p260
        $region34: #{tpu_custom_call.1} parent=11 // pred_check_branch
          %351 = sbr.rel (%p349) target = $region36
        $region35: #{tpu_custom_call.1} parent=11 // pred_region
          %353 = vsyncadd [#allocation15], 0
          %s354 = sshll.u32 %s9, 4
          %s355 = int_to_ptr.hbm [resolvable:$true] %s354
          %s356 = sshll.u32 [#allocation14], 4
          %s357 = int_to_ptr.vmem [resolvable:$true] %s356
          %362 = dma.hbm_to_vmem [thread:$0]  %s355, 512, %s357, [#allocation15], 128, 128, 8
        $region36: #{tpu_custom_call.1} parent=11 // pred_fallthru
          _
      $region12: #{tpu_custom_call.1} parent=5 // pred_fallthru
        _
      %p363 = scmp.lt.s32.totalorder %s30, 2
      // Predicated region
      $region37: #{tpu_custom_call.1} parent=5 // pred_check
        %p364 = pneg %p363
      $region38: #{tpu_custom_call.1} parent=5 // pred_check_branch
        %366 = sbr.rel (%p364) target = $region40
      $region39: #{tpu_custom_call.1} parent=5 // pred_region
        // Predicated region
        $region41: #{tpu_custom_call.1} parent=39 // pred_check
          %p367 = pneg %p50
        $region42: #{tpu_custom_call.1} parent=39 // pred_check_branch
          %369 = sbr.rel (%p367) target = $region44
        $region43: #{tpu_custom_call.1} parent=39 // pred_region
          %s370 = sand.u32 %s40, 1
          %s371 = scalar_lea.sflag [#allocation3], %s370
          %s372 = sand.u32 %s40, 1
          %s373 = smul.addr %s372, 64
          %s374 = scalar_lea.vmem [#allocation2], %s373
          %s375 = smul.u32 4, %s30
          %377 = vsyncadd %s371, 0
          %s378 = smul.addr %s375, 2
          %s379 = smul.addr %s378, 8
          %s380 = scalar_lea.hbm %s0, %s379
          %s381 = sshll.u32 %s380, 4
          %s382 = int_to_ptr.hbm [resolvable:$true] %s381
          %s383 = sshll.u32 %s374, 4
          %s384 = int_to_ptr.vmem [resolvable:$true] %s383
          %389 = dma.hbm_to_vmem [thread:$0]  %s382, 1024, %s384, %s371, 128, 128, 8
        $region44: #{tpu_custom_call.1} parent=39 // pred_fallthru
          _
        // Predicated region
        $region45: #{tpu_custom_call.1} parent=39 // pred_check
          %p390 = pneg %p76
        $region46: #{tpu_custom_call.1} parent=39 // pred_check_branch
          %392 = sbr.rel (%p390) target = $region48
        $region47: #{tpu_custom_call.1} parent=39 // pred_region
          %s393 = sand.u32 %s30, 1
          %s394 = scalar_lea.sflag [#allocation6], %s393
          %s395 = sand.u32 %s66, 1
          %s396 = smul.addr %s395, 8
          %s397 = scalar_lea.vmem [#allocation5], %s396
          %s398 = smul.u32 4, %s30
          %400 = vsyncadd %s394, 0
          %s401 = smul.addr %s398, 2
          %s402 = scalar_lea.hbm %s1, %s401
          %s403 = sshll.u32 %s402, 4
          %s404 = int_to_ptr.hbm [resolvable:$true] %s403
          %s405 = sshll.u32 %s397, 4
          %s406 = int_to_ptr.vmem [resolvable:$true] %s405
          %411 = dma.hbm_to_vmem [thread:$0]  %s404, 128, %s406, %s394, 32, 32, 2
        $region48: #{tpu_custom_call.1} parent=39 // pred_fallthru
          _
        // Predicated region
        $region49: #{tpu_custom_call.1} parent=39 // pred_check
          %p412 = pneg %p102
        $region50: #{tpu_custom_call.1} parent=39 // pred_check_branch
          %414 = sbr.rel (%p412) target = $region52
        $region51: #{tpu_custom_call.1} parent=39 // pred_region
          %s415 = sand.u32 %s30, 1
          %s416 = scalar_lea.sflag [#allocation6], %s415
          %s417 = sand.u32 %s92, 1
          %s418 = smul.addr %s417, 32
          %s419 = scalar_lea.vmem [#allocation7], %s418
          %s420 = smul.u32 4, %s30
          %422 = vsyncadd %s416, 0
          %s423 = smul.addr %s420, 8
          %s424 = scalar_lea.hbm %s2, %s423
          %s425 = sshll.u32 %s424, 4
          %s426 = int_to_ptr.hbm [resolvable:$true] %s425
          %s427 = sshll.u32 %s419, 4
          %s428 = int_to_ptr.vmem [resolvable:$true] %s427
          %433 = dma.hbm_to_vmem [thread:$0]  %s426, 512, %s428, %s416, 128, 128, 8
        $region52: #{tpu_custom_call.1} parent=39 // pred_fallthru
          _
        // Predicated region
        $region53: #{tpu_custom_call.1} parent=39 // pred_check
          %p434 = pneg %p128
        $region54: #{tpu_custom_call.1} parent=39 // pred_check_branch
          %436 = sbr.rel (%p434) target = $region56
        $region55: #{tpu_custom_call.1} parent=39 // pred_region
          %s437 = sand.u32 %s30, 1
          %s438 = scalar_lea.sflag [#allocation9], %s437
          %s439 = sand.u32 %s118, 1
          %s440 = smul.addr %s439, 4
          %s441 = scalar_lea.vmem [#allocation8], %s440
          %s442 = smul.u32 4, %s30
          %444 = vsyncadd %s438, 0
          %s445 = scalar_lea.hbm %s3, %s442
          %s446 = sshll.u32 %s445, 4
          %s447 = int_to_ptr.hbm [resolvable:$true] %s446
          %s448 = sshll.u32 %s441, 4
          %s449 = int_to_ptr.vmem [resolvable:$true] %s448
          %454 = dma.hbm_to_vmem [thread:$0]  %s447, 64, %s449, %s438, 16, 16, 1
        $region56: #{tpu_custom_call.1} parent=39 // pred_fallthru
          _
      $region40: #{tpu_custom_call.1} parent=5 // pred_fallthru
        _
      %p455 = scmp.le.s32.totalorder 1, %s30
      %p456 = scmp.lt.s32.totalorder %s30, 3
      %p457 = pnand %p455, %p456
      %p458 = pneg %p457
      // Predicated region
      $region57: #{tpu_custom_call.1} parent=5 // pred_check
        _
      $region58: #{tpu_custom_call.1} parent=5 // pred_check_branch
        %460 = sbr.rel (%p457) target = $region60
      $region59: #{tpu_custom_call.1} parent=5 // pred_region
        %s461 = ssub.s32 %s30, 1
        %s462 = sand.u32 %s43, 1
        %s463 = scalar_lea.sflag [#allocation3], %s462
        %s464 = sand.u32 %s43, 1
        %s465 = smul.addr %s464, 64
        %s466 = scalar_lea.vmem [#allocation2], %s465
        // Predicated region
        $region61: #{tpu_custom_call.1} parent=59 // pred_check
          %p467 = pneg %p56
        $region62: #{tpu_custom_call.1} parent=59 // pred_check_branch
          %469 = sbr.rel (%p467) target = $region64
        $region63: #{tpu_custom_call.1} parent=59 // pred_region
          %471 = dma.done %s463, 1024
        $region64: #{tpu_custom_call.1} parent=59 // pred_fallthru
          _
        %s472 = sand.u32 %s35, 1
        %s473 = scalar_lea.sflag [#allocation6], %s472
        %s474 = sand.u32 %s69, 1
        %s475 = smul.addr %s474, 8
        %s476 = scalar_lea.vmem [#allocation5], %s475
        // Predicated region
        $region65: #{tpu_custom_call.1} parent=59 // pred_check
          %p477 = pneg %p82
        $region66: #{tpu_custom_call.1} parent=59 // pred_check_branch
          %479 = sbr.rel (%p477) target = $region68
        $region67: #{tpu_custom_call.1} parent=59 // pred_region
          %481 = dma.done %s473, 128
        $region68: #{tpu_custom_call.1} parent=59 // pred_fallthru
          _
        %s482 = sand.u32 %s35, 1
        %s483 = scalar_lea.sflag [#allocation6], %s482
        %s484 = sand.u32 %s95, 1
        %s485 = smul.addr %s484, 32
        %s486 = scalar_lea.vmem [#allocation7], %s485
        // Predicated region
        $region69: #{tpu_custom_call.1} parent=59 // pred_check
          %p487 = pneg %p108
        $region70: #{tpu_custom_call.1} parent=59 // pred_check_branch
          %489 = sbr.rel (%p487) target = $region72
        $region71: #{tpu_custom_call.1} parent=59 // pred_region
          %491 = dma.done %s483, 512
        $region72: #{tpu_custom_call.1} parent=59 // pred_fallthru
          _
        %s492 = sand.u32 %s35, 1
        %s493 = scalar_lea.sflag [#allocation9], %s492
        %s494 = sand.u32 %s121, 1
        %s495 = smul.addr %s494, 4
        %s496 = scalar_lea.vmem [#allocation8], %s495
        // Predicated region
        $region73: #{tpu_custom_call.1} parent=59 // pred_check
          %p497 = pneg %p134
        $region74: #{tpu_custom_call.1} parent=59 // pred_check_branch
          %499 = sbr.rel (%p497) target = $region76
        $region75: #{tpu_custom_call.1} parent=59 // pred_region
          %501 = dma.done %s493, 64
        $region76: #{tpu_custom_call.1} parent=59 // pred_fallthru
          _
        // Predicated region
        $region77: #{tpu_custom_call.1} parent=59 // pred_check
          %p502 = pneg %p155
        $region78: #{tpu_custom_call.1} parent=59 // pred_check_branch
          %504 = sbr.rel (%p502) target = $region80
        $region79: #{tpu_custom_call.1} parent=59 // pred_region
          %506 = dma.done [#allocation9], 512
        $region80: #{tpu_custom_call.1} parent=59 // pred_fallthru
          _
        // Predicated region
        $region81: #{tpu_custom_call.1} parent=59 // pred_check
          %p507 = pneg %p176
        $region82: #{tpu_custom_call.1} parent=59 // pred_check_branch
          %509 = sbr.rel (%p507) target = $region84
        $region83: #{tpu_custom_call.1} parent=59 // pred_region
          %511 = dma.done [#allocation12], 1024
        $region84: #{tpu_custom_call.1} parent=59 // pred_fallthru
          _
        // Predicated region
        $region85: #{tpu_custom_call.1} parent=59 // pred_check
          %p512 = pneg %p218
        $region86: #{tpu_custom_call.1} parent=59 // pred_check_branch
          %514 = sbr.rel (%p512) target = $region88
        $region87: #{tpu_custom_call.1} parent=59 // pred_region
          %516 = dma.done [#allocation12], 2048
        $region88: #{tpu_custom_call.1} parent=59 // pred_fallthru
          _
        // Predicated region
        $region89: #{tpu_custom_call.1} parent=59 // pred_check
          %p517 = pneg %p260
        $region90: #{tpu_custom_call.1} parent=59 // pred_check_branch
          %519 = sbr.rel (%p517) target = $region92
        $region91: #{tpu_custom_call.1} parent=59 // pred_region
          %521 = dma.done [#allocation15], 512
        $region92: #{tpu_custom_call.1} parent=59 // pred_fallthru
          _
        %s522 = sand.u32 %s43, 1
        %s523 = scalar_lea.sflag [#allocation3], %s522
        %s524 = sand.u32 %s43, 1
        %s525 = smul.addr %s524, 64
        %s526 = scalar_lea.vmem [#allocation2], %s525
        %p527 = pneg %p56
        %p528 = pneg %p53
        %s529 = sand.u32 %s35, 1
        %s530 = scalar_lea.sflag [#allocation6], %s529
        %s531 = sand.u32 %s69, 1
        %s532 = smul.addr %s531, 8
        %s533 = scalar_lea.vmem [#allocation5], %s532
        %p534 = pneg %p82
        %p535 = pneg %p79
        %s536 = sand.u32 %s35, 1
        %s537 = scalar_lea.sflag [#allocation6], %s536
        %s538 = sand.u32 %s95, 1
        %s539 = smul.addr %s538, 32
        %s540 = scalar_lea.vmem [#allocation7], %s539
        %p541 = pneg %p108
        %p542 = pneg %p105
        %s543 = sand.u32 %s35, 1
        %s544 = scalar_lea.sflag [#allocation9], %s543
        %s545 = sand.u32 %s121, 1
        %s546 = smul.addr %s545, 4
        %s547 = scalar_lea.vmem [#allocation8], %s546
        %p548 = pneg %p134
        %p549 = pneg %p131
        %p550 = pneg %p155
        %p551 = pneg %p152
        %p552 = pneg %p176
        %p553 = pneg %p173
        %p554 = pneg %p197
        %p555 = pneg %p194
        %p556 = pneg %p218
        %p557 = pneg %p215
        %p558 = pneg %p239
        %p559 = pneg %p236
        %p560 = pneg %p260
        %p561 = pneg %p257
        %p562 = pneg %p286
        %p563 = pneg %p283
        %s564 = sand.u32 %s273, 1
        %s565 = scalar_lea.sflag [#allocation4], %s564
        %s566 = sand.u32 %s273, 1
        %s567 = smul.addr %s566, 8
        %s568 = scalar_lea.vmem [#allocation16], %s567
        %s569 = smul.u32 4, %s35
        %s570 = smul.u32 4, %s35
        %s571 = smul.u32 4, %s35
        %s572 = smul.u32 4, %s35
        %s573 = smul.u32 4, %s35
        %v574 = vld [vmem:[%s466] sm:$0xff]
        %v575 = vld [vmem:[%s466 + $0x8] sm:$0xff]
        %v576 = vld [vmem:[%s466 + $0x10] sm:$0xff]
        %v577 = vld [vmem:[%s466 + $0x18] sm:$0xff]
        %v578 = vld [vmem:[%s466 + $0x20] sm:$0xff]
        %v579 = vld [vmem:[%s466 + $0x28] sm:$0xff]
        %v580 = vld [vmem:[%s466 + $0x30] sm:$0xff]
        %v581 = vld [vmem:[%s466 + $0x38] sm:$0xff]
        %v582 = vld [vmem:[%s476] sm:$0x3]
        %v583 = vld [vmem:[%s476 + $0x2] sm:$0x3]
        %v584 = vld [vmem:[%s476 + $0x4] sm:$0x3]
        %v585 = vld [vmem:[%s476 + $0x6] sm:$0x3]
        %v586 = vld [vmem:[%s486] sm:$0xff]
        %v587 = vld [vmem:[%s486 + $0x8] sm:$0xff]
        %v588 = vld [vmem:[%s486 + $0x10] sm:$0xff]
        %v589 = vld [vmem:[%s486 + $0x18] sm:$0xff]
        %v590 = vld [vmem:[#allocation10] sm:$0xff]
        %v591 = vld [vmem:[#allocation10 + $0x8] sm:$0xff]
        %v592 = vld [vmem:[#allocation10 + $0x10] sm:$0xff]
        %v593 = vld [vmem:[#allocation10 + $0x18] sm:$0xff]
        %594 = vmatpush.xpose.msra.mxu0 0.0
        %595 = vmatpush.xpose.msra.mxu0 0.0
        %596 = vmatpush.xpose.msra.mxu0 0.0
        %597 = vmatpush.xpose.msra.mxu0 0.0
        %598 = vmatpush.xpose.msra.mxu0 0.0
        %599 = vmatpush.xpose.msra.mxu0 0.0
        %600 = vmatpush.xpose.msra.mxu0 0.0
        %601 = vmatpush.xpose.msra.mxu0 0.0
        %602 = vmatpush.xpose.msra.mxu0 0.0
        %603 = vmatpush.xpose.msra.mxu0 0.0
        %604 = vmatpush.xpose.msra.mxu0 0.0
        %605 = vmatpush.xpose.msra.mxu0 0.0
        %v606 = vand.u32 %v593, 4294901760
        %607 = vmatpush.xpose.msra.mxu0 %v606
        %v608 = vand.u32 %v592, 4294901760
        %609 = vmatpush.xpose.msra.mxu0 %v608
        %v610 = vand.u32 %v591, 4294901760
        %611 = vmatpush.xpose.msra.mxu0 %v610
        %v612 = vand.u32 %v590, 4294901760
        %613 = vmatpush.xpose.msra.mxu0 %v612
        %v614 = vand.u32 %v574, 4294901760
        %v615 = vsub.f32 %v574, %v614
        %v616 = vand.u32 %v615, 4294901760
        %v617 = vsub.f32 %v615, %v616
        %v618 = vand.u32 %v617, 4294901760
        %619 = vmatmul.f32.gmra.mxu0 %v618
        %v620 = vpop.f32.mrf.mxu0
        %v621 = vadd.f32 0.0, %v620
        %v622 = vand.u32 %v575, 4294901760
        %v623 = vsub.f32 %v575, %v622
        %v624 = vand.u32 %v623, 4294901760
        %v625 = vsub.f32 %v623, %v624
        %v626 = vand.u32 %v625, 4294901760
        %627 = vmatmul.f32.gmra.mxu0 %v626
        %v628 = vpop.f32.mrf.mxu0
        %v629 = vadd.f32 0.0, %v628
        %v630 = vand.u32 %v576, 4294901760
        %v631 = vsub.f32 %v576, %v630
        %v632 = vand.u32 %v631, 4294901760
        %v633 = vsub.f32 %v631, %v632
        %v634 = vand.u32 %v633, 4294901760
        %635 = vmatmul.f32.gmra.mxu0 %v634
        %v636 = vpop.f32.mrf.mxu0
        %v637 = vadd.f32 0.0, %v636
        %v638 = vand.u32 %v577, 4294901760
        %v639 = vsub.f32 %v577, %v638
        %v640 = vand.u32 %v639, 4294901760
        %v641 = vsub.f32 %v639, %v640
        %v642 = vand.u32 %v641, 4294901760
        %643 = vmatmul.f32.gmra.mxu0 %v642
        %v644 = vpop.f32.mrf.mxu0
        %v645 = vadd.f32 0.0, %v644
        %v646 = vand.u32 %v578, 4294901760
        %v647 = vsub.f32 %v578, %v646
        %v648 = vand.u32 %v647, 4294901760
        %v649 = vsub.f32 %v647, %v648
        %v650 = vand.u32 %v649, 4294901760
        %651 = vmatmul.f32.gmra.mxu0 %v650
        %v652 = vpop.f32.mrf.mxu0
        %v653 = vadd.f32 0.0, %v652
        %v654 = vand.u32 %v579, 4294901760
        %v655 = vsub.f32 %v579, %v654
        %v656 = vand.u32 %v655, 4294901760
        %v657 = vsub.f32 %v655, %v656
        %v658 = vand.u32 %v657, 4294901760
        %659 = vmatmul.f32.gmra.mxu0 %v658
        %v660 = vpop.f32.mrf.mxu0
        %v661 = vadd.f32 0.0, %v660
        %v662 = vand.u32 %v580, 4294901760
        %v663 = vsub.f32 %v580, %v662
        %v664 = vand.u32 %v663, 4294901760
        %v665 = vsub.f32 %v663, %v664
        %v666 = vand.u32 %v665, 4294901760
        %667 = vmatmul.f32.gmra.mxu0 %v666
        %v668 = vpop.f32.mrf.mxu0
        %v669 = vadd.f32 0.0, %v668
        %v670 = vand.u32 %v581, 4294901760
        %v671 = vsub.f32 %v581, %v670
        %v672 = vand.u32 %v671, 4294901760
        %v673 = vsub.f32 %v671, %v672
        %v674 = vand.u32 %v673, 4294901760
        %675 = vmatmul.f32.gmra.mxu0 %v674
        %v676 = vpop.f32.mrf.mxu0
        %v677 = vadd.f32 0.0, %v676
        %678 = vdwg.mxu0
        %679 = vmatpush.xpose.msra.mxu0 0.0
        %680 = vmatpush.xpose.msra.mxu0 0.0
        %681 = vmatpush.xpose.msra.mxu0 0.0
        %682 = vmatpush.xpose.msra.mxu0 0.0
        %683 = vmatpush.xpose.msra.mxu0 0.0
        %684 = vmatpush.xpose.msra.mxu0 0.0
        %685 = vmatpush.xpose.msra.mxu0 0.0
        %686 = vmatpush.xpose.msra.mxu0 0.0
        %687 = vmatpush.xpose.msra.mxu0 0.0
        %688 = vmatpush.xpose.msra.mxu0 0.0
        %689 = vmatpush.xpose.msra.mxu0 0.0
        %690 = vmatpush.xpose.msra.mxu0 0.0
        %v691 = vand.u32 %v593, 4294901760
        %v692 = vsub.f32 %v593, %v691
        %v693 = vand.u32 %v692, 4294901760
        %v694 = vsub.f32 %v692, %v693
        %v695 = vand.u32 %v694, 4294901760
        %696 = vmatpush.xpose.msra.mxu0 %v695
        %v697 = vand.u32 %v592, 4294901760
        %v698 = vsub.f32 %v592, %v697
        %v699 = vand.u32 %v698, 4294901760
        %v700 = vsub.f32 %v698, %v699
        %v701 = vand.u32 %v700, 4294901760
        %702 = vmatpush.xpose.msra.mxu0 %v701
        %v703 = vand.u32 %v591, 4294901760
        %v704 = vsub.f32 %v591, %v703
        %v705 = vand.u32 %v704, 4294901760
        %v706 = vsub.f32 %v704, %v705
        %v707 = vand.u32 %v706, 4294901760
        %708 = vmatpush.xpose.msra.mxu0 %v707
        %v709 = vand.u32 %v590, 4294901760
        %v710 = vsub.f32 %v590, %v709
        %v711 = vand.u32 %v710, 4294901760
        %v712 = vsub.f32 %v710, %v711
        %v713 = vand.u32 %v712, 4294901760
        %714 = vmatpush.xpose.msra.mxu0 %v713
        %v715 = vand.u32 %v574, 4294901760
        %716 = vmatmul.f32.gmra.mxu0 %v715
        %v717 = vpop.f32.mrf.mxu0
        %v718 = vadd.f32 %v621, %v717
        %v719 = vand.u32 %v575, 4294901760
        %720 = vmatmul.f32.gmra.mxu0 %v719
        %v721 = vpop.f32.mrf.mxu0
        %v722 = vadd.f32 %v629, %v721
        %v723 = vand.u32 %v576, 4294901760
        %724 = vmatmul.f32.gmra.mxu0 %v723
        %v725 = vpop.f32.mrf.mxu0
        %v726 = vadd.f32 %v637, %v725
        %v727 = vand.u32 %v577, 4294901760
        %728 = vmatmul.f32.gmra.mxu0 %v727
        %v729 = vpop.f32.mrf.mxu0
        %v730 = vadd.f32 %v645, %v729
        %v731 = vand.u32 %v578, 4294901760
        %732 = vmatmul.f32.gmra.mxu0 %v731
        %v733 = vpop.f32.mrf.mxu0
        %v734 = vadd.f32 %v653, %v733
        %v735 = vand.u32 %v579, 4294901760
        %736 = vmatmul.f32.gmra.mxu0 %v735
        %v737 = vpop.f32.mrf.mxu0
        %v738 = vadd.f32 %v661, %v737
        %v739 = vand.u32 %v580, 4294901760
        %740 = vmatmul.f32.gmra.mxu0 %v739
        %v741 = vpop.f32.mrf.mxu0
        %v742 = vadd.f32 %v669, %v741
        %v743 = vand.u32 %v581, 4294901760
        %744 = vmatmul.f32.gmra.mxu0 %v743
        %v745 = vpop.f32.mrf.mxu0
        %v746 = vadd.f32 %v677, %v745
        %747 = vdwg.mxu0
        %748 = vmatpush.xpose.msra.mxu0 0.0
        %749 = vmatpush.xpose.msra.mxu0 0.0
        %750 = vmatpush.xpose.msra.mxu0 0.0
        %751 = vmatpush.xpose.msra.mxu0 0.0
        %752 = vmatpush.xpose.msra.mxu0 0.0
        %753 = vmatpush.xpose.msra.mxu0 0.0
        %754 = vmatpush.xpose.msra.mxu0 0.0
        %755 = vmatpush.xpose.msra.mxu0 0.0
        %756 = vmatpush.xpose.msra.mxu0 0.0
        %757 = vmatpush.xpose.msra.mxu0 0.0
        %758 = vmatpush.xpose.msra.mxu0 0.0
        %759 = vmatpush.xpose.msra.mxu0 0.0
        %v760 = vand.u32 %v593, 4294901760
        %v761 = vsub.f32 %v593, %v760
        %762 = vmatpush.xpose.msra.mxu0 %v761
        %v763 = vand.u32 %v592, 4294901760
        %v764 = vsub.f32 %v592, %v763
        %765 = vmatpush.xpose.msra.mxu0 %v764
        %v766 = vand.u32 %v591, 4294901760
        %v767 = vsub.f32 %v591, %v766
        %768 = vmatpush.xpose.msra.mxu0 %v767
        %v769 = vand.u32 %v590, 4294901760
        %v770 = vsub.f32 %v590, %v769
        %771 = vmatpush.xpose.msra.mxu0 %v770
        %v772 = vand.u32 %v574, 4294901760
        %v773 = vsub.f32 %v574, %v772
        %774 = vmatmul.f32.gmra.mxu0 %v773
        %v775 = vpop.f32.mrf.mxu0
        %v776 = vadd.f32 %v718, %v775
        %v777 = vand.u32 %v575, 4294901760
        %v778 = vsub.f32 %v575, %v777
        %779 = vmatmul.f32.gmra.mxu0 %v778
        %v780 = vpop.f32.mrf.mxu0
        %v781 = vadd.f32 %v722, %v780
        %v782 = vand.u32 %v576, 4294901760
        %v783 = vsub.f32 %v576, %v782
        %784 = vmatmul.f32.gmra.mxu0 %v783
        %v785 = vpop.f32.mrf.mxu0
        %v786 = vadd.f32 %v726, %v785
        %v787 = vand.u32 %v577, 4294901760
        %v788 = vsub.f32 %v577, %v787
        %789 = vmatmul.f32.gmra.mxu0 %v788
        %v790 = vpop.f32.mrf.mxu0
        %v791 = vadd.f32 %v730, %v790
        %v792 = vand.u32 %v578, 4294901760
        %v793 = vsub.f32 %v578, %v792
        %794 = vmatmul.f32.gmra.mxu0 %v793
        %v795 = vpop.f32.mrf.mxu0
        %v796 = vadd.f32 %v734, %v795
        %v797 = vand.u32 %v579, 4294901760
        %v798 = vsub.f32 %v579, %v797
        %799 = vmatmul.f32.gmra.mxu0 %v798
        %v800 = vpop.f32.mrf.mxu0
        %v801 = vadd.f32 %v738, %v800
        %v802 = vand.u32 %v580, 4294901760
        %v803 = vsub.f32 %v580, %v802
        %804 = vmatmul.f32.gmra.mxu0 %v803
        %v805 = vpop.f32.mrf.mxu0
        %v806 = vadd.f32 %v742, %v805
        %v807 = vand.u32 %v581, 4294901760
        %v808 = vsub.f32 %v581, %v807
        %809 = vmatmul.f32.gmra.mxu0 %v808
        %v810 = vpop.f32.mrf.mxu0
        %v811 = vadd.f32 %v746, %v810
        %812 = vdwg.mxu0
        %813 = vmatpush.xpose.msra.mxu0 0.0
        %814 = vmatpush.xpose.msra.mxu0 0.0
        %815 = vmatpush.xpose.msra.mxu0 0.0
        %816 = vmatpush.xpose.msra.mxu0 0.0
        %817 = vmatpush.xpose.msra.mxu0 0.0
        %818 = vmatpush.xpose.msra.mxu0 0.0
        %819 = vmatpush.xpose.msra.mxu0 0.0
        %820 = vmatpush.xpose.msra.mxu0 0.0
        %821 = vmatpush.xpose.msra.mxu0 0.0
        %822 = vmatpush.xpose.msra.mxu0 0.0
        %823 = vmatpush.xpose.msra.mxu0 0.0
        %824 = vmatpush.xpose.msra.mxu0 0.0
        %v825 = vand.u32 %v593, 4294901760
        %826 = vmatpush.xpose.msra.mxu0 %v825
        %v827 = vand.u32 %v592, 4294901760
        %828 = vmatpush.xpose.msra.mxu0 %v827
        %v829 = vand.u32 %v591, 4294901760
        %830 = vmatpush.xpose.msra.mxu0 %v829
        %v831 = vand.u32 %v590, 4294901760
        %832 = vmatpush.xpose.msra.mxu0 %v831
        %v833 = vand.u32 %v574, 4294901760
        %v834 = vsub.f32 %v574, %v833
        %v835 = vand.u32 %v834, 4294901760
        %836 = vmatmul.f32.gmra.mxu0 %v835
        %v837 = vpop.f32.mrf.mxu0
        %v838 = vadd.f32 %v776, %v837
        %v839 = vand.u32 %v575, 4294901760
        %v840 = vsub.f32 %v575, %v839
        %v841 = vand.u32 %v840, 4294901760
        %842 = vmatmul.f32.gmra.mxu0 %v841
        %v843 = vpop.f32.mrf.mxu0
        %v844 = vadd.f32 %v781, %v843
        %v845 = vand.u32 %v576, 4294901760
        %v846 = vsub.f32 %v576, %v845
        %v847 = vand.u32 %v846, 4294901760
        %848 = vmatmul.f32.gmra.mxu0 %v847
        %v849 = vpop.f32.mrf.mxu0
        %v850 = vadd.f32 %v786, %v849
        %v851 = vand.u32 %v577, 4294901760
        %v852 = vsub.f32 %v577, %v851
        %v853 = vand.u32 %v852, 4294901760
        %854 = vmatmul.f32.gmra.mxu0 %v853
        %v855 = vpop.f32.mrf.mxu0
        %v856 = vadd.f32 %v791, %v855
        %v857 = vand.u32 %v578, 4294901760
        %v858 = vsub.f32 %v578, %v857
        %v859 = vand.u32 %v858, 4294901760
        %860 = vmatmul.f32.gmra.mxu0 %v859
        %v861 = vpop.f32.mrf.mxu0
        %v862 = vadd.f32 %v796, %v861
        %v863 = vand.u32 %v579, 4294901760
        %v864 = vsub.f32 %v579, %v863
        %v865 = vand.u32 %v864, 4294901760
        %866 = vmatmul.f32.gmra.mxu0 %v865
        %v867 = vpop.f32.mrf.mxu0
        %v868 = vadd.f32 %v801, %v867
        %v869 = vand.u32 %v580, 4294901760
        %v870 = vsub.f32 %v580, %v869
        %v871 = vand.u32 %v870, 4294901760
        %872 = vmatmul.f32.gmra.mxu0 %v871
        %v873 = vpop.f32.mrf.mxu0
        %v874 = vadd.f32 %v806, %v873
        %v875 = vand.u32 %v581, 4294901760
        %v876 = vsub.f32 %v581, %v875
        %v877 = vand.u32 %v876, 4294901760
        %878 = vmatmul.f32.gmra.mxu0 %v877
        %v879 = vpop.f32.mrf.mxu0
        %v880 = vadd.f32 %v811, %v879
        %881 = vdwg.mxu0
        %882 = vmatpush.xpose.msra.mxu0 0.0
        %883 = vmatpush.xpose.msra.mxu0 0.0
        %884 = vmatpush.xpose.msra.mxu0 0.0
        %885 = vmatpush.xpose.msra.mxu0 0.0
        %886 = vmatpush.xpose.msra.mxu0 0.0
        %887 = vmatpush.xpose.msra.mxu0 0.0
        %888 = vmatpush.xpose.msra.mxu0 0.0
        %889 = vmatpush.xpose.msra.mxu0 0.0
        %890 = vmatpush.xpose.msra.mxu0 0.0
        %891 = vmatpush.xpose.msra.mxu0 0.0
        %892 = vmatpush.xpose.msra.mxu0 0.0
        %893 = vmatpush.xpose.msra.mxu0 0.0
        %v894 = vand.u32 %v593, 4294901760
        %v895 = vsub.f32 %v593, %v894
        %v896 = vand.u32 %v895, 4294901760
        %897 = vmatpush.xpose.msra.mxu0 %v896
        %v898 = vand.u32 %v592, 4294901760
        %v899 = vsub.f32 %v592, %v898
        %v900 = vand.u32 %v899, 4294901760
        %901 = vmatpush.xpose.msra.mxu0 %v900
        %v902 = vand.u32 %v591, 4294901760
        %v903 = vsub.f32 %v591, %v902
        %v904 = vand.u32 %v903, 4294901760
        %905 = vmatpush.xpose.msra.mxu0 %v904
        %v906 = vand.u32 %v590, 4294901760
        %v907 = vsub.f32 %v590, %v906
        %v908 = vand.u32 %v907, 4294901760
        %909 = vmatpush.xpose.msra.mxu0 %v908
        %v910 = vand.u32 %v574, 4294901760
        %911 = vmatmul.f32.gmra.mxu0 %v910
        %v912 = vpop.f32.mrf.mxu0
        %v913 = vadd.f32 %v838, %v912
        %v914 = vand.u32 %v575, 4294901760
        %915 = vmatmul.f32.gmra.mxu0 %v914
        %v916 = vpop.f32.mrf.mxu0
        %v917 = vadd.f32 %v844, %v916
        %v918 = vand.u32 %v576, 4294901760
        %919 = vmatmul.f32.gmra.mxu0 %v918
        %v920 = vpop.f32.mrf.mxu0
        %v921 = vadd.f32 %v850, %v920
        %v922 = vand.u32 %v577, 4294901760
        %923 = vmatmul.f32.gmra.mxu0 %v922
        %v924 = vpop.f32.mrf.mxu0
        %v925 = vadd.f32 %v856, %v924
        %v926 = vand.u32 %v578, 4294901760
        %927 = vmatmul.f32.gmra.mxu0 %v926
        %v928 = vpop.f32.mrf.mxu0
        %v929 = vadd.f32 %v862, %v928
        %v930 = vand.u32 %v579, 4294901760
        %931 = vmatmul.f32.gmra.mxu0 %v930
        %v932 = vpop.f32.mrf.mxu0
        %v933 = vadd.f32 %v868, %v932
        %v934 = vand.u32 %v580, 4294901760
        %935 = vmatmul.f32.gmra.mxu0 %v934
        %v936 = vpop.f32.mrf.mxu0
        %v937 = vadd.f32 %v874, %v936
        %v938 = vand.u32 %v581, 4294901760
        %939 = vmatmul.f32.gmra.mxu0 %v938
        %v940 = vpop.f32.mrf.mxu0
        %v941 = vadd.f32 %v880, %v940
        %942 = vdwg.mxu0
        %943 = vmatpush.xpose.msra.mxu0 0.0
        %944 = vmatpush.xpose.msra.mxu0 0.0
        %945 = vmatpush.xpose.msra.mxu0 0.0
        %946 = vmatpush.xpose.msra.mxu0 0.0
        %947 = vmatpush.xpose.msra.mxu0 0.0
        %948 = vmatpush.xpose.msra.mxu0 0.0
        %949 = vmatpush.xpose.msra.mxu0 0.0
        %950 = vmatpush.xpose.msra.mxu0 0.0
        %951 = vmatpush.xpose.msra.mxu0 0.0
        %952 = vmatpush.xpose.msra.mxu0 0.0
        %953 = vmatpush.xpose.msra.mxu0 0.0
        %954 = vmatpush.xpose.msra.mxu0 0.0
        %v955 = vand.u32 %v593, 4294901760
        %956 = vmatpush.xpose.msra.mxu0 %v955
        %v957 = vand.u32 %v592, 4294901760
        %958 = vmatpush.xpose.msra.mxu0 %v957
        %v959 = vand.u32 %v591, 4294901760
        %960 = vmatpush.xpose.msra.mxu0 %v959
        %v961 = vand.u32 %v590, 4294901760
        %962 = vmatpush.xpose.msra.mxu0 %v961
        %v963 = vand.u32 %v574, 4294901760
        %964 = vmatmul.f32.gmra.mxu0 %v963
        %v965 = vpop.f32.mrf.mxu0
        %v966 = vadd.f32 %v913, %v965
        %v967 = vand.u32 %v575, 4294901760
        %968 = vmatmul.f32.gmra.mxu0 %v967
        %v969 = vpop.f32.mrf.mxu0
        %v970 = vadd.f32 %v917, %v969
        %v971 = vand.u32 %v576, 4294901760
        %972 = vmatmul.f32.gmra.mxu0 %v971
        %v973 = vpop.f32.mrf.mxu0
        %v974 = vadd.f32 %v921, %v973
        %v975 = vand.u32 %v577, 4294901760
        %976 = vmatmul.f32.gmra.mxu0 %v975
        %v977 = vpop.f32.mrf.mxu0
        %v978 = vadd.f32 %v925, %v977
        %v979 = vand.u32 %v578, 4294901760
        %980 = vmatmul.f32.gmra.mxu0 %v979
        %v981 = vpop.f32.mrf.mxu0
        %v982 = vadd.f32 %v929, %v981
        %v983 = vand.u32 %v579, 4294901760
        %984 = vmatmul.f32.gmra.mxu0 %v983
        %v985 = vpop.f32.mrf.mxu0
        %v986 = vadd.f32 %v933, %v985
        %v987 = vand.u32 %v580, 4294901760
        %988 = vmatmul.f32.gmra.mxu0 %v987
        %v989 = vpop.f32.mrf.mxu0
        %v990 = vadd.f32 %v937, %v989
        %v991 = vand.u32 %v581, 4294901760
        %992 = vmatmul.f32.gmra.mxu0 %v991
        %v993 = vpop.f32.mrf.mxu0
        %v994 = vadd.f32 %v941, %v993
        %995 = vdwg.mxu0
        %v996 = vld [vmem:[#allocation11] sm:$0xff]
        %v997 = vld [vmem:[#allocation11 + $0x8] sm:$0xff]
        %v998 = vld [vmem:[#allocation11 + $0x10] sm:$0xff]
        %v999 = vld [vmem:[#allocation11 + $0x18] sm:$0xff]
        %v1000 = vld [vmem:[#allocation11 + $0x20] sm:$0xff]
        %v1001 = vld [vmem:[#allocation11 + $0x28] sm:$0xff]
        %v1002 = vld [vmem:[#allocation11 + $0x30] sm:$0xff]
        %v1003 = vld [vmem:[#allocation11 + $0x38] sm:$0xff]
        %v1004 = vld [vmem:[%s6] sm:$0x1]
        %v1006 = vperm.slane %v1004, 0
        %1012 = vst [vmem:[#allocation1] ss:$4 sm:$0xff] %v582
        %s1013 = scalar_lea.vmem [#allocation1], 1
        %1014 = vst [vmem:[%s1013] ss:$4 sm:$0xff] %v583
        %s1015 = scalar_lea.vmem [#allocation1], 2
        %1016 = vst [vmem:[%s1015] ss:$4 sm:$0xff] %v584
        %s1017 = scalar_lea.vmem [#allocation1], 3
        %1018 = vst [vmem:[%s1017] ss:$4 sm:$0xff] %v585
        %v1019 = vld.sshfl [vmem:[#allocation1] sm:$0xff pattern:$0x73625140]
        %1021 = vmatpush.xpose.msra.mxu0 0.0
        %1022 = vmatpush.xpose.msra.mxu0 0.0
        %1023 = vmatpush.xpose.msra.mxu0 0.0
        %1024 = vmatpush.xpose.msra.mxu0 0.0
        %1025 = vmatpush.xpose.msra.mxu0 0.0
        %1026 = vmatpush.xpose.msra.mxu0 0.0
        %1027 = vmatpush.xpose.msra.mxu0 0.0
        %1028 = vmatpush.xpose.msra.mxu0 0.0
        %v1029 = vand.u32 %v1003, 4294901760
        %1030 = vmatpush.xpose.msra.mxu0 %v1029
        %v1031 = vand.u32 %v1002, 4294901760
        %1032 = vmatpush.xpose.msra.mxu0 %v1031
        %v1033 = vand.u32 %v1001, 4294901760
        %1034 = vmatpush.xpose.msra.mxu0 %v1033
        %v1035 = vand.u32 %v1000, 4294901760
        %1036 = vmatpush.xpose.msra.mxu0 %v1035
        %v1037 = vand.u32 %v999, 4294901760
        %1038 = vmatpush.xpose.msra.mxu0 %v1037
        %v1039 = vand.u32 %v998, 4294901760
        %1040 = vmatpush.xpose.msra.mxu0 %v1039
        %v1041 = vand.u32 %v997, 4294901760
        %1042 = vmatpush.xpose.msra.mxu0 %v1041
        %v1043 = vand.u32 %v996, 4294901760
        %1044 = vmatpush.xpose.msra.mxu0 %v1043
        %v1045 = vand.u32 %v1019, 4294901760
        %v1046 = vsub.f32 %v1019, %v1045
        %v1047 = vand.u32 %v1046, 4294901760
        %v1048 = vsub.f32 %v1046, %v1047
        %v1049 = vand.u32 %v1048, 4294901760
        %1050 = vmatmul.f32.gmra.mxu0 %v1049
        %v1051 = vpop.f32.mrf.mxu0
        %v1052 = vadd.f32 %v1006, %v1051
        %1053 = vdwg.mxu0
        %1054 = vmatpush.xpose.msra.mxu0 0.0
        %1055 = vmatpush.xpose.msra.mxu0 0.0
        %1056 = vmatpush.xpose.msra.mxu0 0.0
        %1057 = vmatpush.xpose.msra.mxu0 0.0
        %1058 = vmatpush.xpose.msra.mxu0 0.0
        %1059 = vmatpush.xpose.msra.mxu0 0.0
        %1060 = vmatpush.xpose.msra.mxu0 0.0
        %1061 = vmatpush.xpose.msra.mxu0 0.0
        %v1062 = vand.u32 %v1003, 4294901760
        %v1063 = vsub.f32 %v1003, %v1062
        %v1064 = vand.u32 %v1063, 4294901760
        %v1065 = vsub.f32 %v1063, %v1064
        %v1066 = vand.u32 %v1065, 4294901760
        %1067 = vmatpush.xpose.msra.mxu0 %v1066
        %v1068 = vand.u32 %v1002, 4294901760
        %v1069 = vsub.f32 %v1002, %v1068
        %v1070 = vand.u32 %v1069, 4294901760
        %v1071 = vsub.f32 %v1069, %v1070
        %v1072 = vand.u32 %v1071, 4294901760
        %1073 = vmatpush.xpose.msra.mxu0 %v1072
        %v1074 = vand.u32 %v1001, 4294901760
        %v1075 = vsub.f32 %v1001, %v1074
        %v1076 = vand.u32 %v1075, 4294901760
        %v1077 = vsub.f32 %v1075, %v1076
        %v1078 = vand.u32 %v1077, 4294901760
        %1079 = vmatpush.xpose.msra.mxu0 %v1078
        %v1080 = vand.u32 %v1000, 4294901760
        %v1081 = vsub.f32 %v1000, %v1080
        %v1082 = vand.u32 %v1081, 4294901760
        %v1083 = vsub.f32 %v1081, %v1082
        %v1084 = vand.u32 %v1083, 4294901760
        %1085 = vmatpush.xpose.msra.mxu0 %v1084
        %v1086 = vand.u32 %v999, 4294901760
        %v1087 = vsub.f32 %v999, %v1086
        %v1088 = vand.u32 %v1087, 4294901760
        %v1089 = vsub.f32 %v1087, %v1088
        %v1090 = vand.u32 %v1089, 4294901760
        %1091 = vmatpush.xpose.msra.mxu0 %v1090
        %v1092 = vand.u32 %v998, 4294901760
        %v1093 = vsub.f32 %v998, %v1092
        %v1094 = vand.u32 %v1093, 4294901760
        %v1095 = vsub.f32 %v1093, %v1094
        %v1096 = vand.u32 %v1095, 4294901760
        %1097 = vmatpush.xpose.msra.mxu0 %v1096
        %v1098 = vand.u32 %v997, 4294901760
        %v1099 = vsub.f32 %v997, %v1098
        %v1100 = vand.u32 %v1099, 4294901760
        %v1101 = vsub.f32 %v1099, %v1100
        %v1102 = vand.u32 %v1101, 4294901760
        %1103 = vmatpush.xpose.msra.mxu0 %v1102
        %v1104 = vand.u32 %v996, 4294901760
        %v1105 = vsub.f32 %v996, %v1104
        %v1106 = vand.u32 %v1105, 4294901760
        %v1107 = vsub.f32 %v1105, %v1106
        %v1108 = vand.u32 %v1107, 4294901760
        %1109 = vmatpush.xpose.msra.mxu0 %v1108
        %v1110 = vand.u32 %v1019, 4294901760
        %1111 = vmatmul.f32.gmra.mxu0 %v1110
        %v1112 = vpop.f32.mrf.mxu0
        %v1113 = vadd.f32 %v1052, %v1112
        %1114 = vdwg.mxu0
        %1115 = vmatpush.xpose.msra.mxu0 0.0
        %1116 = vmatpush.xpose.msra.mxu0 0.0
        %1117 = vmatpush.xpose.msra.mxu0 0.0
        %1118 = vmatpush.xpose.msra.mxu0 0.0
        %1119 = vmatpush.xpose.msra.mxu0 0.0
        %1120 = vmatpush.xpose.msra.mxu0 0.0
        %1121 = vmatpush.xpose.msra.mxu0 0.0
        %1122 = vmatpush.xpose.msra.mxu0 0.0
        %v1123 = vand.u32 %v1003, 4294901760
        %v1124 = vsub.f32 %v1003, %v1123
        %1125 = vmatpush.xpose.msra.mxu0 %v1124
        %v1126 = vand.u32 %v1002, 4294901760
        %v1127 = vsub.f32 %v1002, %v1126
        %1128 = vmatpush.xpose.msra.mxu0 %v1127
        %v1129 = vand.u32 %v1001, 4294901760
        %v1130 = vsub.f32 %v1001, %v1129
        %1131 = vmatpush.xpose.msra.mxu0 %v1130
        %v1132 = vand.u32 %v1000, 4294901760
        %v1133 = vsub.f32 %v1000, %v1132
        %1134 = vmatpush.xpose.msra.mxu0 %v1133
        %v1135 = vand.u32 %v999, 4294901760
        %v1136 = vsub.f32 %v999, %v1135
        %1137 = vmatpush.xpose.msra.mxu0 %v1136
        %v1138 = vand.u32 %v998, 4294901760
        %v1139 = vsub.f32 %v998, %v1138
        %1140 = vmatpush.xpose.msra.mxu0 %v1139
        %v1141 = vand.u32 %v997, 4294901760
        %v1142 = vsub.f32 %v997, %v1141
        %1143 = vmatpush.xpose.msra.mxu0 %v1142
        %v1144 = vand.u32 %v996, 4294901760
        %v1145 = vsub.f32 %v996, %v1144
        %1146 = vmatpush.xpose.msra.mxu0 %v1145
        %v1147 = vand.u32 %v1019, 4294901760
        %v1148 = vsub.f32 %v1019, %v1147
        %1149 = vmatmul.f32.gmra.mxu0 %v1148
        %v1150 = vpop.f32.mrf.mxu0
        %v1151 = vadd.f32 %v1113, %v1150
        %1152 = vdwg.mxu0
        %1153 = vmatpush.xpose.msra.mxu0 0.0
        %1154 = vmatpush.xpose.msra.mxu0 0.0
        %1155 = vmatpush.xpose.msra.mxu0 0.0
        %1156 = vmatpush.xpose.msra.mxu0 0.0
        %1157 = vmatpush.xpose.msra.mxu0 0.0
        %1158 = vmatpush.xpose.msra.mxu0 0.0
        %1159 = vmatpush.xpose.msra.mxu0 0.0
        %1160 = vmatpush.xpose.msra.mxu0 0.0
        %v1161 = vand.u32 %v1003, 4294901760
        %1162 = vmatpush.xpose.msra.mxu0 %v1161
        %v1163 = vand.u32 %v1002, 4294901760
        %1164 = vmatpush.xpose.msra.mxu0 %v1163
        %v1165 = vand.u32 %v1001, 4294901760
        %1166 = vmatpush.xpose.msra.mxu0 %v1165
        %v1167 = vand.u32 %v1000, 4294901760
        %1168 = vmatpush.xpose.msra.mxu0 %v1167
        %v1169 = vand.u32 %v999, 4294901760
        %1170 = vmatpush.xpose.msra.mxu0 %v1169
        %v1171 = vand.u32 %v998, 4294901760
        %1172 = vmatpush.xpose.msra.mxu0 %v1171
        %v1173 = vand.u32 %v997, 4294901760
        %1174 = vmatpush.xpose.msra.mxu0 %v1173
        %v1175 = vand.u32 %v996, 4294901760
        %1176 = vmatpush.xpose.msra.mxu0 %v1175
        %v1177 = vand.u32 %v1019, 4294901760
        %v1178 = vsub.f32 %v1019, %v1177
        %v1179 = vand.u32 %v1178, 4294901760
        %1180 = vmatmul.f32.gmra.mxu0 %v1179
        %v1181 = vpop.f32.mrf.mxu0
        %v1182 = vadd.f32 %v1151, %v1181
        %1183 = vdwg.mxu0
        %1184 = vmatpush.xpose.msra.mxu0 0.0
        %1185 = vmatpush.xpose.msra.mxu0 0.0
        %1186 = vmatpush.xpose.msra.mxu0 0.0
        %1187 = vmatpush.xpose.msra.mxu0 0.0
        %1188 = vmatpush.xpose.msra.mxu0 0.0
        %1189 = vmatpush.xpose.msra.mxu0 0.0
        %1190 = vmatpush.xpose.msra.mxu0 0.0
        %1191 = vmatpush.xpose.msra.mxu0 0.0
        %v1192 = vand.u32 %v1003, 4294901760
        %v1193 = vsub.f32 %v1003, %v1192
        %v1194 = vand.u32 %v1193, 4294901760
        %1195 = vmatpush.xpose.msra.mxu0 %v1194
        %v1196 = vand.u32 %v1002, 4294901760
        %v1197 = vsub.f32 %v1002, %v1196
        %v1198 = vand.u32 %v1197, 4294901760
        %1199 = vmatpush.xpose.msra.mxu0 %v1198
        %v1200 = vand.u32 %v1001, 4294901760
        %v1201 = vsub.f32 %v1001, %v1200
        %v1202 = vand.u32 %v1201, 4294901760
        %1203 = vmatpush.xpose.msra.mxu0 %v1202
        %v1204 = vand.u32 %v1000, 4294901760
        %v1205 = vsub.f32 %v1000, %v1204
        %v1206 = vand.u32 %v1205, 4294901760
        %1207 = vmatpush.xpose.msra.mxu0 %v1206
        %v1208 = vand.u32 %v999, 4294901760
        %v1209 = vsub.f32 %v999, %v1208
        %v1210 = vand.u32 %v1209, 4294901760
        %1211 = vmatpush.xpose.msra.mxu0 %v1210
        %v1212 = vand.u32 %v998, 4294901760
        %v1213 = vsub.f32 %v998, %v1212
        %v1214 = vand.u32 %v1213, 4294901760
        %1215 = vmatpush.xpose.msra.mxu0 %v1214
        %v1216 = vand.u32 %v997, 4294901760
        %v1217 = vsub.f32 %v997, %v1216
        %v1218 = vand.u32 %v1217, 4294901760
        %1219 = vmatpush.xpose.msra.mxu0 %v1218
        %v1220 = vand.u32 %v996, 4294901760
        %v1221 = vsub.f32 %v996, %v1220
        %v1222 = vand.u32 %v1221, 4294901760
        %1223 = vmatpush.xpose.msra.mxu0 %v1222
        %v1224 = vand.u32 %v1019, 4294901760
        %1225 = vmatmul.f32.gmra.mxu0 %v1224
        %v1226 = vpop.f32.mrf.mxu0
        %v1227 = vadd.f32 %v1182, %v1226
        %1228 = vdwg.mxu0
        %1229 = vmatpush.xpose.msra.mxu0 0.0
        %1230 = vmatpush.xpose.msra.mxu0 0.0
        %1231 = vmatpush.xpose.msra.mxu0 0.0
        %1232 = vmatpush.xpose.msra.mxu0 0.0
        %1233 = vmatpush.xpose.msra.mxu0 0.0
        %1234 = vmatpush.xpose.msra.mxu0 0.0
        %1235 = vmatpush.xpose.msra.mxu0 0.0
        %1236 = vmatpush.xpose.msra.mxu0 0.0
        %v1237 = vand.u32 %v1003, 4294901760
        %1238 = vmatpush.xpose.msra.mxu0 %v1237
        %v1239 = vand.u32 %v1002, 4294901760
        %1240 = vmatpush.xpose.msra.mxu0 %v1239
        %v1241 = vand.u32 %v1001, 4294901760
        %1242 = vmatpush.xpose.msra.mxu0 %v1241
        %v1243 = vand.u32 %v1000, 4294901760
        %1244 = vmatpush.xpose.msra.mxu0 %v1243
        %v1245 = vand.u32 %v999, 4294901760
        %1246 = vmatpush.xpose.msra.mxu0 %v1245
        %v1247 = vand.u32 %v998, 4294901760
        %1248 = vmatpush.xpose.msra.mxu0 %v1247
        %v1249 = vand.u32 %v997, 4294901760
        %1250 = vmatpush.xpose.msra.mxu0 %v1249
        %v1251 = vand.u32 %v996, 4294901760
        %1252 = vmatpush.xpose.msra.mxu0 %v1251
        %v1253 = vand.u32 %v1019, 4294901760
        %1254 = vmatmul.f32.gmra.mxu0 %v1253
        %v1255 = vpop.f32.mrf.mxu0
        %v1256 = vadd.f32 %v1227, %v1255
        %1257 = vdwg.mxu0
        %v1259 = vrot.slane %v1256, 2
        %v1260 = vrot.slane %v1256, 4
        %v1261 = vrot.slane %v1256, 6
        %vm1262 = vcmask 261120
        %v1263 = vsel %vm1262, %v1256, 0
        %v1266 = vsel %vm1262, %v966, 0
        %v1269 = vsel %vm1262, %v970, 0
        %1271 = vmatpush.xpose.msra.mxu0 0.0
        %1272 = vmatpush.xpose.msra.mxu0 0.0
        %1273 = vmatpush.xpose.msra.mxu0 0.0
        %1274 = vmatpush.xpose.msra.mxu0 0.0
        %1275 = vmatpush.xpose.msra.mxu0 0.0
        %1276 = vmatpush.xpose.msra.mxu0 0.0
        %1277 = vmatpush.xpose.msra.mxu0 0.0
        %1278 = vmatpush.xpose.msra.mxu0 0.0
        %1279 = vmatpush.xpose.msra.mxu0 0.0
        %1280 = vmatpush.xpose.msra.mxu0 0.0
        %1281 = vmatpush.xpose.msra.mxu0 0.0
        %1282 = vmatpush.xpose.msra.mxu0 0.0
        %1283 = vmatpush.xpose.msra.mxu0 0.0
        %1284 = vmatpush.xpose.msra.mxu0 0.0
        %v1285 = vand.u32 %v1269, 4294901760
        %1286 = vmatpush.xpose.msra.mxu0 %v1285
        %v1287 = vand.u32 %v1266, 4294901760
        %1288 = vmatpush.xpose.msra.mxu0 %v1287
        %v1289 = vand.u32 %v1263, 4294901760
        %v1290 = vsub.f32 %v1263, %v1289
        %v1291 = vand.u32 %v1290, 4294901760
        %v1292 = vsub.f32 %v1290, %v1291
        %v1293 = vand.u32 %v1292, 4294901760
        %1294 = vmatmul.f32.gmra.mxu0 %v1293
        %v1295 = vpop.f32.mrf.mxu0
        %v1296 = vadd.f32 0.0, %v1295
        %1297 = vdwg.mxu0
        %1298 = vmatpush.xpose.msra.mxu0 0.0
        %1299 = vmatpush.xpose.msra.mxu0 0.0
        %1300 = vmatpush.xpose.msra.mxu0 0.0
        %1301 = vmatpush.xpose.msra.mxu0 0.0
        %1302 = vmatpush.xpose.msra.mxu0 0.0
        %1303 = vmatpush.xpose.msra.mxu0 0.0
        %1304 = vmatpush.xpose.msra.mxu0 0.0
        %1305 = vmatpush.xpose.msra.mxu0 0.0
        %1306 = vmatpush.xpose.msra.mxu0 0.0
        %1307 = vmatpush.xpose.msra.mxu0 0.0
        %1308 = vmatpush.xpose.msra.mxu0 0.0
        %1309 = vmatpush.xpose.msra.mxu0 0.0
        %1310 = vmatpush.xpose.msra.mxu0 0.0
        %1311 = vmatpush.xpose.msra.mxu0 0.0
        %v1312 = vand.u32 %v1269, 4294901760
        %v1313 = vsub.f32 %v1269, %v1312
        %v1314 = vand.u32 %v1313, 4294901760
        %v1315 = vsub.f32 %v1313, %v1314
        %v1316 = vand.u32 %v1315, 4294901760
        %1317 = vmatpush.xpose.msra.mxu0 %v1316
        %v1318 = vand.u32 %v1266, 4294901760
        %v1319 = vsub.f32 %v1266, %v1318
        %v1320 = vand.u32 %v1319, 4294901760
        %v1321 = vsub.f32 %v1319, %v1320
        %v1322 = vand.u32 %v1321, 4294901760
        %1323 = vmatpush.xpose.msra.mxu0 %v1322
        %v1324 = vand.u32 %v1263, 4294901760
        %1325 = vmatmul.f32.gmra.mxu0 %v1324
        %v1326 = vpop.f32.mrf.mxu0
        %v1327 = vadd.f32 %v1296, %v1326
        %1328 = vdwg.mxu0
        %1329 = vmatpush.xpose.msra.mxu0 0.0
        %1330 = vmatpush.xpose.msra.mxu0 0.0
        %1331 = vmatpush.xpose.msra.mxu0 0.0
        %1332 = vmatpush.xpose.msra.mxu0 0.0
        %1333 = vmatpush.xpose.msra.mxu0 0.0
        %1334 = vmatpush.xpose.msra.mxu0 0.0
        %1335 = vmatpush.xpose.msra.mxu0 0.0
        %1336 = vmatpush.xpose.msra.mxu0 0.0
        %1337 = vmatpush.xpose.msra.mxu0 0.0
        %1338 = vmatpush.xpose.msra.mxu0 0.0
        %1339 = vmatpush.xpose.msra.mxu0 0.0
        %1340 = vmatpush.xpose.msra.mxu0 0.0
        %1341 = vmatpush.xpose.msra.mxu0 0.0
        %1342 = vmatpush.xpose.msra.mxu0 0.0
        %v1343 = vand.u32 %v1269, 4294901760
        %v1344 = vsub.f32 %v1269, %v1343
        %1345 = vmatpush.xpose.msra.mxu0 %v1344
        %v1346 = vand.u32 %v1266, 4294901760
        %v1347 = vsub.f32 %v1266, %v1346
        %1348 = vmatpush.xpose.msra.mxu0 %v1347
        %v1349 = vand.u32 %v1263, 4294901760
        %v1350 = vsub.f32 %v1263, %v1349
        %1351 = vmatmul.f32.gmra.mxu0 %v1350
        %v1352 = vpop.f32.mrf.mxu0
        %v1353 = vadd.f32 %v1327, %v1352
        %1354 = vdwg.mxu0
        %1355 = vmatpush.xpose.msra.mxu0 0.0
        %1356 = vmatpush.xpose.msra.mxu0 0.0
        %1357 = vmatpush.xpose.msra.mxu0 0.0
        %1358 = vmatpush.xpose.msra.mxu0 0.0
        %1359 = vmatpush.xpose.msra.mxu0 0.0
        %1360 = vmatpush.xpose.msra.mxu0 0.0
        %1361 = vmatpush.xpose.msra.mxu0 0.0
        %1362 = vmatpush.xpose.msra.mxu0 0.0
        %1363 = vmatpush.xpose.msra.mxu0 0.0
        %1364 = vmatpush.xpose.msra.mxu0 0.0
        %1365 = vmatpush.xpose.msra.mxu0 0.0
        %1366 = vmatpush.xpose.msra.mxu0 0.0
        %1367 = vmatpush.xpose.msra.mxu0 0.0
        %1368 = vmatpush.xpose.msra.mxu0 0.0
        %v1369 = vand.u32 %v1269, 4294901760
        %1370 = vmatpush.xpose.msra.mxu0 %v1369
        %v1371 = vand.u32 %v1266, 4294901760
        %1372 = vmatpush.xpose.msra.mxu0 %v1371
        %v1373 = vand.u32 %v1263, 4294901760
        %v1374 = vsub.f32 %v1263, %v1373
        %v1375 = vand.u32 %v1374, 4294901760
        %1376 = vmatmul.f32.gmra.mxu0 %v1375
        %v1377 = vpop.f32.mrf.mxu0
        %v1378 = vadd.f32 %v1353, %v1377
        %1379 = vdwg.mxu0
        %1380 = vmatpush.xpose.msra.mxu0 0.0
        %1381 = vmatpush.xpose.msra.mxu0 0.0
        %1382 = vmatpush.xpose.msra.mxu0 0.0
        %1383 = vmatpush.xpose.msra.mxu0 0.0
        %1384 = vmatpush.xpose.msra.mxu0 0.0
        %1385 = vmatpush.xpose.msra.mxu0 0.0
        %1386 = vmatpush.xpose.msra.mxu0 0.0
        %1387 = vmatpush.xpose.msra.mxu0 0.0
        %1388 = vmatpush.xpose.msra.mxu0 0.0
        %1389 = vmatpush.xpose.msra.mxu0 0.0
        %1390 = vmatpush.xpose.msra.mxu0 0.0
        %1391 = vmatpush.xpose.msra.mxu0 0.0
        %1392 = vmatpush.xpose.msra.mxu0 0.0
        %1393 = vmatpush.xpose.msra.mxu0 0.0
        %v1394 = vand.u32 %v1269, 4294901760
        %v1395 = vsub.f32 %v1269, %v1394
        %v1396 = vand.u32 %v1395, 4294901760
        %1397 = vmatpush.xpose.msra.mxu0 %v1396
        %v1398 = vand.u32 %v1266, 4294901760
        %v1399 = vsub.f32 %v1266, %v1398
        %v1400 = vand.u32 %v1399, 4294901760
        %1401 = vmatpush.xpose.msra.mxu0 %v1400
        %v1402 = vand.u32 %v1263, 4294901760
        %1403 = vmatmul.f32.gmra.mxu0 %v1402
        %v1404 = vpop.f32.mrf.mxu0
        %v1405 = vadd.f32 %v1378, %v1404
        %1406 = vdwg.mxu0
        %1407 = vmatpush.xpose.msra.mxu0 0.0
        %1408 = vmatpush.xpose.msra.mxu0 0.0
        %1409 = vmatpush.xpose.msra.mxu0 0.0
        %1410 = vmatpush.xpose.msra.mxu0 0.0
        %1411 = vmatpush.xpose.msra.mxu0 0.0
        %1412 = vmatpush.xpose.msra.mxu0 0.0
        %1413 = vmatpush.xpose.msra.mxu0 0.0
        %1414 = vmatpush.xpose.msra.mxu0 0.0
        %1415 = vmatpush.xpose.msra.mxu0 0.0
        %1416 = vmatpush.xpose.msra.mxu0 0.0
        %1417 = vmatpush.xpose.msra.mxu0 0.0
        %1418 = vmatpush.xpose.msra.mxu0 0.0
        %1419 = vmatpush.xpose.msra.mxu0 0.0
        %1420 = vmatpush.xpose.msra.mxu0 0.0
        %v1421 = vand.u32 %v1269, 4294901760
        %1422 = vmatpush.xpose.msra.mxu0 %v1421
        %v1423 = vand.u32 %v1266, 4294901760
        %1424 = vmatpush.xpose.msra.mxu0 %v1423
        %v1425 = vand.u32 %v1263, 4294901760
        %1426 = vmatmul.f32.gmra.mxu0 %v1425
        %v1427 = vpop.f32.mrf.mxu0
        %v1428 = vadd.f32 %v1405, %v1427
        %1429 = vdwg.mxu0
        %v1430 = vsel %vm1262, %v1259, 0
        %v1433 = vsel %vm1262, %v974, 0
        %v1436 = vsel %vm1262, %v978, 0
        %1438 = vmatpush.xpose.msra.mxu0 0.0
        %1439 = vmatpush.xpose.msra.mxu0 0.0
        %1440 = vmatpush.xpose.msra.mxu0 0.0
        %1441 = vmatpush.xpose.msra.mxu0 0.0
        %1442 = vmatpush.xpose.msra.mxu0 0.0
        %1443 = vmatpush.xpose.msra.mxu0 0.0
        %1444 = vmatpush.xpose.msra.mxu0 0.0
        %1445 = vmatpush.xpose.msra.mxu0 0.0
        %1446 = vmatpush.xpose.msra.mxu0 0.0
        %1447 = vmatpush.xpose.msra.mxu0 0.0
        %1448 = vmatpush.xpose.msra.mxu0 0.0
        %1449 = vmatpush.xpose.msra.mxu0 0.0
        %1450 = vmatpush.xpose.msra.mxu0 0.0
        %1451 = vmatpush.xpose.msra.mxu0 0.0
        %v1452 = vand.u32 %v1436, 4294901760
        %1453 = vmatpush.xpose.msra.mxu0 %v1452
        %v1454 = vand.u32 %v1433, 4294901760
        %1455 = vmatpush.xpose.msra.mxu0 %v1454
        %v1456 = vand.u32 %v1430, 4294901760
        %v1457 = vsub.f32 %v1430, %v1456
        %v1458 = vand.u32 %v1457, 4294901760
        %v1459 = vsub.f32 %v1457, %v1458
        %v1460 = vand.u32 %v1459, 4294901760
        %1461 = vmatmul.f32.gmra.mxu0 %v1460
        %v1462 = vpop.f32.mrf.mxu0
        %v1463 = vadd.f32 0.0, %v1462
        %1464 = vdwg.mxu0
        %1465 = vmatpush.xpose.msra.mxu0 0.0
        %1466 = vmatpush.xpose.msra.mxu0 0.0
        %1467 = vmatpush.xpose.msra.mxu0 0.0
        %1468 = vmatpush.xpose.msra.mxu0 0.0
        %1469 = vmatpush.xpose.msra.mxu0 0.0
        %1470 = vmatpush.xpose.msra.mxu0 0.0
        %1471 = vmatpush.xpose.msra.mxu0 0.0
        %1472 = vmatpush.xpose.msra.mxu0 0.0
        %1473 = vmatpush.xpose.msra.mxu0 0.0
        %1474 = vmatpush.xpose.msra.mxu0 0.0
        %1475 = vmatpush.xpose.msra.mxu0 0.0
        %1476 = vmatpush.xpose.msra.mxu0 0.0
        %1477 = vmatpush.xpose.msra.mxu0 0.0
        %1478 = vmatpush.xpose.msra.mxu0 0.0
        %v1479 = vand.u32 %v1436, 4294901760
        %v1480 = vsub.f32 %v1436, %v1479
        %v1481 = vand.u32 %v1480, 4294901760
        %v1482 = vsub.f32 %v1480, %v1481
        %v1483 = vand.u32 %v1482, 4294901760
        %1484 = vmatpush.xpose.msra.mxu0 %v1483
        %v1485 = vand.u32 %v1433, 4294901760
        %v1486 = vsub.f32 %v1433, %v1485
        %v1487 = vand.u32 %v1486, 4294901760
        %v1488 = vsub.f32 %v1486, %v1487
        %v1489 = vand.u32 %v1488, 4294901760
        %1490 = vmatpush.xpose.msra.mxu0 %v1489
        %v1491 = vand.u32 %v1430, 4294901760
        %1492 = vmatmul.f32.gmra.mxu0 %v1491
        %v1493 = vpop.f32.mrf.mxu0
        %v1494 = vadd.f32 %v1463, %v1493
        %1495 = vdwg.mxu0
        %1496 = vmatpush.xpose.msra.mxu0 0.0
        %1497 = vmatpush.xpose.msra.mxu0 0.0
        %1498 = vmatpush.xpose.msra.mxu0 0.0
        %1499 = vmatpush.xpose.msra.mxu0 0.0
        %1500 = vmatpush.xpose.msra.mxu0 0.0
        %1501 = vmatpush.xpose.msra.mxu0 0.0
        %1502 = vmatpush.xpose.msra.mxu0 0.0
        %1503 = vmatpush.xpose.msra.mxu0 0.0
        %1504 = vmatpush.xpose.msra.mxu0 0.0
        %1505 = vmatpush.xpose.msra.mxu0 0.0
        %1506 = vmatpush.xpose.msra.mxu0 0.0
        %1507 = vmatpush.xpose.msra.mxu0 0.0
        %1508 = vmatpush.xpose.msra.mxu0 0.0
        %1509 = vmatpush.xpose.msra.mxu0 0.0
        %v1510 = vand.u32 %v1436, 4294901760
        %v1511 = vsub.f32 %v1436, %v1510
        %1512 = vmatpush.xpose.msra.mxu0 %v1511
        %v1513 = vand.u32 %v1433, 4294901760
        %v1514 = vsub.f32 %v1433, %v1513
        %1515 = vmatpush.xpose.msra.mxu0 %v1514
        %v1516 = vand.u32 %v1430, 4294901760
        %v1517 = vsub.f32 %v1430, %v1516
        %1518 = vmatmul.f32.gmra.mxu0 %v1517
        %v1519 = vpop.f32.mrf.mxu0
        %v1520 = vadd.f32 %v1494, %v1519
        %1521 = vdwg.mxu0
        %1522 = vmatpush.xpose.msra.mxu0 0.0
        %1523 = vmatpush.xpose.msra.mxu0 0.0
        %1524 = vmatpush.xpose.msra.mxu0 0.0
        %1525 = vmatpush.xpose.msra.mxu0 0.0
        %1526 = vmatpush.xpose.msra.mxu0 0.0
        %1527 = vmatpush.xpose.msra.mxu0 0.0
        %1528 = vmatpush.xpose.msra.mxu0 0.0
        %1529 = vmatpush.xpose.msra.mxu0 0.0
        %1530 = vmatpush.xpose.msra.mxu0 0.0
        %1531 = vmatpush.xpose.msra.mxu0 0.0
        %1532 = vmatpush.xpose.msra.mxu0 0.0
        %1533 = vmatpush.xpose.msra.mxu0 0.0
        %1534 = vmatpush.xpose.msra.mxu0 0.0
        %1535 = vmatpush.xpose.msra.mxu0 0.0
        %v1536 = vand.u32 %v1436, 4294901760
        %1537 = vmatpush.xpose.msra.mxu0 %v1536
        %v1538 = vand.u32 %v1433, 4294901760
        %1539 = vmatpush.xpose.msra.mxu0 %v1538
        %v1540 = vand.u32 %v1430, 4294901760
        %v1541 = vsub.f32 %v1430, %v1540
        %v1542 = vand.u32 %v1541, 4294901760
        %1543 = vmatmul.f32.gmra.mxu0 %v1542
        %v1544 = vpop.f32.mrf.mxu0
        %v1545 = vadd.f32 %v1520, %v1544
        %1546 = vdwg.mxu0
        %1547 = vmatpush.xpose.msra.mxu0 0.0
        %1548 = vmatpush.xpose.msra.mxu0 0.0
        %1549 = vmatpush.xpose.msra.mxu0 0.0
        %1550 = vmatpush.xpose.msra.mxu0 0.0
        %1551 = vmatpush.xpose.msra.mxu0 0.0
        %1552 = vmatpush.xpose.msra.mxu0 0.0
        %1553 = vmatpush.xpose.msra.mxu0 0.0
        %1554 = vmatpush.xpose.msra.mxu0 0.0
        %1555 = vmatpush.xpose.msra.mxu0 0.0
        %1556 = vmatpush.xpose.msra.mxu0 0.0
        %1557 = vmatpush.xpose.msra.mxu0 0.0
        %1558 = vmatpush.xpose.msra.mxu0 0.0
        %1559 = vmatpush.xpose.msra.mxu0 0.0
        %1560 = vmatpush.xpose.msra.mxu0 0.0
        %v1561 = vand.u32 %v1436, 4294901760
        %v1562 = vsub.f32 %v1436, %v1561
        %v1563 = vand.u32 %v1562, 4294901760
        %1564 = vmatpush.xpose.msra.mxu0 %v1563
        %v1565 = vand.u32 %v1433, 4294901760
        %v1566 = vsub.f32 %v1433, %v1565
        %v1567 = vand.u32 %v1566, 4294901760
        %1568 = vmatpush.xpose.msra.mxu0 %v1567
        %v1569 = vand.u32 %v1430, 4294901760
        %1570 = vmatmul.f32.gmra.mxu0 %v1569
        %v1571 = vpop.f32.mrf.mxu0
        %v1572 = vadd.f32 %v1545, %v1571
        %1573 = vdwg.mxu0
        %1574 = vmatpush.xpose.msra.mxu0 0.0
        %1575 = vmatpush.xpose.msra.mxu0 0.0
        %1576 = vmatpush.xpose.msra.mxu0 0.0
        %1577 = vmatpush.xpose.msra.mxu0 0.0
        %1578 = vmatpush.xpose.msra.mxu0 0.0
        %1579 = vmatpush.xpose.msra.mxu0 0.0
        %1580 = vmatpush.xpose.msra.mxu0 0.0
        %1581 = vmatpush.xpose.msra.mxu0 0.0
        %1582 = vmatpush.xpose.msra.mxu0 0.0
        %1583 = vmatpush.xpose.msra.mxu0 0.0
        %1584 = vmatpush.xpose.msra.mxu0 0.0
        %1585 = vmatpush.xpose.msra.mxu0 0.0
        %1586 = vmatpush.xpose.msra.mxu0 0.0
        %1587 = vmatpush.xpose.msra.mxu0 0.0
        %v1588 = vand.u32 %v1436, 4294901760
        %1589 = vmatpush.xpose.msra.mxu0 %v1588
        %v1590 = vand.u32 %v1433, 4294901760
        %1591 = vmatpush.xpose.msra.mxu0 %v1590
        %v1592 = vand.u32 %v1430, 4294901760
        %1593 = vmatmul.f32.gmra.mxu0 %v1592
        %v1594 = vpop.f32.mrf.mxu0
        %v1595 = vadd.f32 %v1572, %v1594
        %1596 = vdwg.mxu0
        %v1597 = vsel %vm1262, %v1260, 0
        %v1600 = vsel %vm1262, %v982, 0
        %v1603 = vsel %vm1262, %v986, 0
        %1605 = vmatpush.xpose.msra.mxu0 0.0
        %1606 = vmatpush.xpose.msra.mxu0 0.0
        %1607 = vmatpush.xpose.msra.mxu0 0.0
        %1608 = vmatpush.xpose.msra.mxu0 0.0
        %1609 = vmatpush.xpose.msra.mxu0 0.0
        %1610 = vmatpush.xpose.msra.mxu0 0.0
        %1611 = vmatpush.xpose.msra.mxu0 0.0
        %1612 = vmatpush.xpose.msra.mxu0 0.0
        %1613 = vmatpush.xpose.msra.mxu0 0.0
        %1614 = vmatpush.xpose.msra.mxu0 0.0
        %1615 = vmatpush.xpose.msra.mxu0 0.0
        %1616 = vmatpush.xpose.msra.mxu0 0.0
        %1617 = vmatpush.xpose.msra.mxu0 0.0
        %1618 = vmatpush.xpose.msra.mxu0 0.0
        %v1619 = vand.u32 %v1603, 4294901760
        %1620 = vmatpush.xpose.msra.mxu0 %v1619
        %v1621 = vand.u32 %v1600, 4294901760
        %1622 = vmatpush.xpose.msra.mxu0 %v1621
        %v1623 = vand.u32 %v1597, 4294901760
        %v1624 = vsub.f32 %v1597, %v1623
        %v1625 = vand.u32 %v1624, 4294901760
        %v1626 = vsub.f32 %v1624, %v1625
        %v1627 = vand.u32 %v1626, 4294901760
        %1628 = vmatmul.f32.gmra.mxu0 %v1627
        %v1629 = vpop.f32.mrf.mxu0
        %v1630 = vadd.f32 0.0, %v1629
        %1631 = vdwg.mxu0
        %1632 = vmatpush.xpose.msra.mxu0 0.0
        %1633 = vmatpush.xpose.msra.mxu0 0.0
        %1634 = vmatpush.xpose.msra.mxu0 0.0
        %1635 = vmatpush.xpose.msra.mxu0 0.0
        %1636 = vmatpush.xpose.msra.mxu0 0.0
        %1637 = vmatpush.xpose.msra.mxu0 0.0
        %1638 = vmatpush.xpose.msra.mxu0 0.0
        %1639 = vmatpush.xpose.msra.mxu0 0.0
        %1640 = vmatpush.xpose.msra.mxu0 0.0
        %1641 = vmatpush.xpose.msra.mxu0 0.0
        %1642 = vmatpush.xpose.msra.mxu0 0.0
        %1643 = vmatpush.xpose.msra.mxu0 0.0
        %1644 = vmatpush.xpose.msra.mxu0 0.0
        %1645 = vmatpush.xpose.msra.mxu0 0.0
        %v1646 = vand.u32 %v1603, 4294901760
        %v1647 = vsub.f32 %v1603, %v1646
        %v1648 = vand.u32 %v1647, 4294901760
        %v1649 = vsub.f32 %v1647, %v1648
        %v1650 = vand.u32 %v1649, 4294901760
        %1651 = vmatpush.xpose.msra.mxu0 %v1650
        %v1652 = vand.u32 %v1600, 4294901760
        %v1653 = vsub.f32 %v1600, %v1652
        %v1654 = vand.u32 %v1653, 4294901760
        %v1655 = vsub.f32 %v1653, %v1654
        %v1656 = vand.u32 %v1655, 4294901760
        %1657 = vmatpush.xpose.msra.mxu0 %v1656
        %v1658 = vand.u32 %v1597, 4294901760
        %1659 = vmatmul.f32.gmra.mxu0 %v1658
        %v1660 = vpop.f32.mrf.mxu0
        %v1661 = vadd.f32 %v1630, %v1660
        %1662 = vdwg.mxu0
        %1663 = vmatpush.xpose.msra.mxu0 0.0
        %1664 = vmatpush.xpose.msra.mxu0 0.0
        %1665 = vmatpush.xpose.msra.mxu0 0.0
        %1666 = vmatpush.xpose.msra.mxu0 0.0
        %1667 = vmatpush.xpose.msra.mxu0 0.0
        %1668 = vmatpush.xpose.msra.mxu0 0.0
        %1669 = vmatpush.xpose.msra.mxu0 0.0
        %1670 = vmatpush.xpose.msra.mxu0 0.0
        %1671 = vmatpush.xpose.msra.mxu0 0.0
        %1672 = vmatpush.xpose.msra.mxu0 0.0
        %1673 = vmatpush.xpose.msra.mxu0 0.0
        %1674 = vmatpush.xpose.msra.mxu0 0.0
        %1675 = vmatpush.xpose.msra.mxu0 0.0
        %1676 = vmatpush.xpose.msra.mxu0 0.0
        %v1677 = vand.u32 %v1603, 4294901760
        %v1678 = vsub.f32 %v1603, %v1677
        %1679 = vmatpush.xpose.msra.mxu0 %v1678
        %v1680 = vand.u32 %v1600, 4294901760
        %v1681 = vsub.f32 %v1600, %v1680
        %1682 = vmatpush.xpose.msra.mxu0 %v1681
        %v1683 = vand.u32 %v1597, 4294901760
        %v1684 = vsub.f32 %v1597, %v1683
        %1685 = vmatmul.f32.gmra.mxu0 %v1684
        %v1686 = vpop.f32.mrf.mxu0
        %v1687 = vadd.f32 %v1661, %v1686
        %1688 = vdwg.mxu0
        %1689 = vmatpush.xpose.msra.mxu0 0.0
        %1690 = vmatpush.xpose.msra.mxu0 0.0
        %1691 = vmatpush.xpose.msra.mxu0 0.0
        %1692 = vmatpush.xpose.msra.mxu0 0.0
        %1693 = vmatpush.xpose.msra.mxu0 0.0
        %1694 = vmatpush.xpose.msra.mxu0 0.0
        %1695 = vmatpush.xpose.msra.mxu0 0.0
        %1696 = vmatpush.xpose.msra.mxu0 0.0
        %1697 = vmatpush.xpose.msra.mxu0 0.0
        %1698 = vmatpush.xpose.msra.mxu0 0.0
        %1699 = vmatpush.xpose.msra.mxu0 0.0
        %1700 = vmatpush.xpose.msra.mxu0 0.0
        %1701 = vmatpush.xpose.msra.mxu0 0.0
        %1702 = vmatpush.xpose.msra.mxu0 0.0
        %v1703 = vand.u32 %v1603, 4294901760
        %1704 = vmatpush.xpose.msra.mxu0 %v1703
        %v1705 = vand.u32 %v1600, 4294901760
        %1706 = vmatpush.xpose.msra.mxu0 %v1705
        %v1707 = vand.u32 %v1597, 4294901760
        %v1708 = vsub.f32 %v1597, %v1707
        %v1709 = vand.u32 %v1708, 4294901760
        %1710 = vmatmul.f32.gmra.mxu0 %v1709
        %v1711 = vpop.f32.mrf.mxu0
        %v1712 = vadd.f32 %v1687, %v1711
        %1713 = vdwg.mxu0
        %1714 = vmatpush.xpose.msra.mxu0 0.0
        %1715 = vmatpush.xpose.msra.mxu0 0.0
        %1716 = vmatpush.xpose.msra.mxu0 0.0
        %1717 = vmatpush.xpose.msra.mxu0 0.0
        %1718 = vmatpush.xpose.msra.mxu0 0.0
        %1719 = vmatpush.xpose.msra.mxu0 0.0
        %1720 = vmatpush.xpose.msra.mxu0 0.0
        %1721 = vmatpush.xpose.msra.mxu0 0.0
        %1722 = vmatpush.xpose.msra.mxu0 0.0
        %1723 = vmatpush.xpose.msra.mxu0 0.0
        %1724 = vmatpush.xpose.msra.mxu0 0.0
        %1725 = vmatpush.xpose.msra.mxu0 0.0
        %1726 = vmatpush.xpose.msra.mxu0 0.0
        %1727 = vmatpush.xpose.msra.mxu0 0.0
        %v1728 = vand.u32 %v1603, 4294901760
        %v1729 = vsub.f32 %v1603, %v1728
        %v1730 = vand.u32 %v1729, 4294901760
        %1731 = vmatpush.xpose.msra.mxu0 %v1730
        %v1732 = vand.u32 %v1600, 4294901760
        %v1733 = vsub.f32 %v1600, %v1732
        %v1734 = vand.u32 %v1733, 4294901760
        %1735 = vmatpush.xpose.msra.mxu0 %v1734
        %v1736 = vand.u32 %v1597, 4294901760
        %1737 = vmatmul.f32.gmra.mxu0 %v1736
        %v1738 = vpop.f32.mrf.mxu0
        %v1739 = vadd.f32 %v1712, %v1738
        %1740 = vdwg.mxu0
        %1741 = vmatpush.xpose.msra.mxu0 0.0
        %1742 = vmatpush.xpose.msra.mxu0 0.0
        %1743 = vmatpush.xpose.msra.mxu0 0.0
        %1744 = vmatpush.xpose.msra.mxu0 0.0
        %1745 = vmatpush.xpose.msra.mxu0 0.0
        %1746 = vmatpush.xpose.msra.mxu0 0.0
        %1747 = vmatpush.xpose.msra.mxu0 0.0
        %1748 = vmatpush.xpose.msra.mxu0 0.0
        %1749 = vmatpush.xpose.msra.mxu0 0.0
        %1750 = vmatpush.xpose.msra.mxu0 0.0
        %1751 = vmatpush.xpose.msra.mxu0 0.0
        %1752 = vmatpush.xpose.msra.mxu0 0.0
        %1753 = vmatpush.xpose.msra.mxu0 0.0
        %1754 = vmatpush.xpose.msra.mxu0 0.0
        %v1755 = vand.u32 %v1603, 4294901760
        %1756 = vmatpush.xpose.msra.mxu0 %v1755
        %v1757 = vand.u32 %v1600, 4294901760
        %1758 = vmatpush.xpose.msra.mxu0 %v1757
        %v1759 = vand.u32 %v1597, 4294901760
        %1760 = vmatmul.f32.gmra.mxu0 %v1759
        %v1761 = vpop.f32.mrf.mxu0
        %v1762 = vadd.f32 %v1739, %v1761
        %1763 = vdwg.mxu0
        %v1764 = vsel %vm1262, %v1261, 0
        %v1767 = vsel %vm1262, %v990, 0
        %v1770 = vsel %vm1262, %v994, 0
        %1772 = vmatpush.xpose.msra.mxu0 0.0
        %1773 = vmatpush.xpose.msra.mxu0 0.0
        %1774 = vmatpush.xpose.msra.mxu0 0.0
        %1775 = vmatpush.xpose.msra.mxu0 0.0
        %1776 = vmatpush.xpose.msra.mxu0 0.0
        %1777 = vmatpush.xpose.msra.mxu0 0.0
        %1778 = vmatpush.xpose.msra.mxu0 0.0
        %1779 = vmatpush.xpose.msra.mxu0 0.0
        %1780 = vmatpush.xpose.msra.mxu0 0.0
        %1781 = vmatpush.xpose.msra.mxu0 0.0
        %1782 = vmatpush.xpose.msra.mxu0 0.0
        %1783 = vmatpush.xpose.msra.mxu0 0.0
        %1784 = vmatpush.xpose.msra.mxu0 0.0
        %1785 = vmatpush.xpose.msra.mxu0 0.0
        %v1786 = vand.u32 %v1770, 4294901760
        %1787 = vmatpush.xpose.msra.mxu0 %v1786
        %v1788 = vand.u32 %v1767, 4294901760
        %1789 = vmatpush.xpose.msra.mxu0 %v1788
        %v1790 = vand.u32 %v1764, 4294901760
        %v1791 = vsub.f32 %v1764, %v1790
        %v1792 = vand.u32 %v1791, 4294901760
        %v1793 = vsub.f32 %v1791, %v1792
        %v1794 = vand.u32 %v1793, 4294901760
        %1795 = vmatmul.f32.gmra.mxu0 %v1794
        %v1796 = vpop.f32.mrf.mxu0
        %v1797 = vadd.f32 0.0, %v1796
        %1798 = vdwg.mxu0
        %1799 = vmatpush.xpose.msra.mxu0 0.0
        %1800 = vmatpush.xpose.msra.mxu0 0.0
        %1801 = vmatpush.xpose.msra.mxu0 0.0
        %1802 = vmatpush.xpose.msra.mxu0 0.0
        %1803 = vmatpush.xpose.msra.mxu0 0.0
        %1804 = vmatpush.xpose.msra.mxu0 0.0
        %1805 = vmatpush.xpose.msra.mxu0 0.0
        %1806 = vmatpush.xpose.msra.mxu0 0.0
        %1807 = vmatpush.xpose.msra.mxu0 0.0
        %1808 = vmatpush.xpose.msra.mxu0 0.0
        %1809 = vmatpush.xpose.msra.mxu0 0.0
        %1810 = vmatpush.xpose.msra.mxu0 0.0
        %1811 = vmatpush.xpose.msra.mxu0 0.0
        %1812 = vmatpush.xpose.msra.mxu0 0.0
        %v1813 = vand.u32 %v1770, 4294901760
        %v1814 = vsub.f32 %v1770, %v1813
        %v1815 = vand.u32 %v1814, 4294901760
        %v1816 = vsub.f32 %v1814, %v1815
        %v1817 = vand.u32 %v1816, 4294901760
        %1818 = vmatpush.xpose.msra.mxu0 %v1817
        %v1819 = vand.u32 %v1767, 4294901760
        %v1820 = vsub.f32 %v1767, %v1819
        %v1821 = vand.u32 %v1820, 4294901760
        %v1822 = vsub.f32 %v1820, %v1821
        %v1823 = vand.u32 %v1822, 4294901760
        %1824 = vmatpush.xpose.msra.mxu0 %v1823
        %v1825 = vand.u32 %v1764, 4294901760
        %1826 = vmatmul.f32.gmra.mxu0 %v1825
        %v1827 = vpop.f32.mrf.mxu0
        %v1828 = vadd.f32 %v1797, %v1827
        %1829 = vdwg.mxu0
        %1830 = vmatpush.xpose.msra.mxu0 0.0
        %1831 = vmatpush.xpose.msra.mxu0 0.0
        %1832 = vmatpush.xpose.msra.mxu0 0.0
        %1833 = vmatpush.xpose.msra.mxu0 0.0
        %1834 = vmatpush.xpose.msra.mxu0 0.0
        %1835 = vmatpush.xpose.msra.mxu0 0.0
        %1836 = vmatpush.xpose.msra.mxu0 0.0
        %1837 = vmatpush.xpose.msra.mxu0 0.0
        %1838 = vmatpush.xpose.msra.mxu0 0.0
        %1839 = vmatpush.xpose.msra.mxu0 0.0
        %1840 = vmatpush.xpose.msra.mxu0 0.0
        %1841 = vmatpush.xpose.msra.mxu0 0.0
        %1842 = vmatpush.xpose.msra.mxu0 0.0
        %1843 = vmatpush.xpose.msra.mxu0 0.0
        %v1844 = vand.u32 %v1770, 4294901760
        %v1845 = vsub.f32 %v1770, %v1844
        %1846 = vmatpush.xpose.msra.mxu0 %v1845
        %v1847 = vand.u32 %v1767, 4294901760
        %v1848 = vsub.f32 %v1767, %v1847
        %1849 = vmatpush.xpose.msra.mxu0 %v1848
        %v1850 = vand.u32 %v1764, 4294901760
        %v1851 = vsub.f32 %v1764, %v1850
        %1852 = vmatmul.f32.gmra.mxu0 %v1851
        %v1853 = vpop.f32.mrf.mxu0
        %v1854 = vadd.f32 %v1828, %v1853
        %1855 = vdwg.mxu0
        %1856 = vmatpush.xpose.msra.mxu0 0.0
        %1857 = vmatpush.xpose.msra.mxu0 0.0
        %1858 = vmatpush.xpose.msra.mxu0 0.0
        %1859 = vmatpush.xpose.msra.mxu0 0.0
        %1860 = vmatpush.xpose.msra.mxu0 0.0
        %1861 = vmatpush.xpose.msra.mxu0 0.0
        %1862 = vmatpush.xpose.msra.mxu0 0.0
        %1863 = vmatpush.xpose.msra.mxu0 0.0
        %1864 = vmatpush.xpose.msra.mxu0 0.0
        %1865 = vmatpush.xpose.msra.mxu0 0.0
        %1866 = vmatpush.xpose.msra.mxu0 0.0
        %1867 = vmatpush.xpose.msra.mxu0 0.0
        %1868 = vmatpush.xpose.msra.mxu0 0.0
        %1869 = vmatpush.xpose.msra.mxu0 0.0
        %v1870 = vand.u32 %v1770, 4294901760
        %1871 = vmatpush.xpose.msra.mxu0 %v1870
        %v1872 = vand.u32 %v1767, 4294901760
        %1873 = vmatpush.xpose.msra.mxu0 %v1872
        %v1874 = vand.u32 %v1764, 4294901760
        %v1875 = vsub.f32 %v1764, %v1874
        %v1876 = vand.u32 %v1875, 4294901760
        %1877 = vmatmul.f32.gmra.mxu0 %v1876
        %v1878 = vpop.f32.mrf.mxu0
        %v1879 = vadd.f32 %v1854, %v1878
        %1880 = vdwg.mxu0
        %1881 = vmatpush.xpose.msra.mxu0 0.0
        %1882 = vmatpush.xpose.msra.mxu0 0.0
        %1883 = vmatpush.xpose.msra.mxu0 0.0
        %1884 = vmatpush.xpose.msra.mxu0 0.0
        %1885 = vmatpush.xpose.msra.mxu0 0.0
        %1886 = vmatpush.xpose.msra.mxu0 0.0
        %1887 = vmatpush.xpose.msra.mxu0 0.0
        %1888 = vmatpush.xpose.msra.mxu0 0.0
        %1889 = vmatpush.xpose.msra.mxu0 0.0
        %1890 = vmatpush.xpose.msra.mxu0 0.0
        %1891 = vmatpush.xpose.msra.mxu0 0.0
        %1892 = vmatpush.xpose.msra.mxu0 0.0
        %1893 = vmatpush.xpose.msra.mxu0 0.0
        %1894 = vmatpush.xpose.msra.mxu0 0.0
        %v1895 = vand.u32 %v1770, 4294901760
        %v1896 = vsub.f32 %v1770, %v1895
        %v1897 = vand.u32 %v1896, 4294901760
        %1898 = vmatpush.xpose.msra.mxu0 %v1897
        %v1899 = vand.u32 %v1767, 4294901760
        %v1900 = vsub.f32 %v1767, %v1899
        %v1901 = vand.u32 %v1900, 4294901760
        %1902 = vmatpush.xpose.msra.mxu0 %v1901
        %v1903 = vand.u32 %v1764, 4294901760
        %1904 = vmatmul.f32.gmra.mxu0 %v1903
        %v1905 = vpop.f32.mrf.mxu0
        %v1906 = vadd.f32 %v1879, %v1905
        %1907 = vdwg.mxu0
        %1908 = vmatpush.xpose.msra.mxu0 0.0
        %1909 = vmatpush.xpose.msra.mxu0 0.0
        %1910 = vmatpush.xpose.msra.mxu0 0.0
        %1911 = vmatpush.xpose.msra.mxu0 0.0
        %1912 = vmatpush.xpose.msra.mxu0 0.0
        %1913 = vmatpush.xpose.msra.mxu0 0.0
        %1914 = vmatpush.xpose.msra.mxu0 0.0
        %1915 = vmatpush.xpose.msra.mxu0 0.0
        %1916 = vmatpush.xpose.msra.mxu0 0.0
        %1917 = vmatpush.xpose.msra.mxu0 0.0
        %1918 = vmatpush.xpose.msra.mxu0 0.0
        %1919 = vmatpush.xpose.msra.mxu0 0.0
        %1920 = vmatpush.xpose.msra.mxu0 0.0
        %1921 = vmatpush.xpose.msra.mxu0 0.0
        %v1922 = vand.u32 %v1770, 4294901760
        %1923 = vmatpush.xpose.msra.mxu0 %v1922
        %v1924 = vand.u32 %v1767, 4294901760
        %1925 = vmatpush.xpose.msra.mxu0 %v1924
        %v1926 = vand.u32 %v1764, 4294901760
        %1927 = vmatmul.f32.gmra.mxu0 %v1926
        %v1928 = vpop.f32.mrf.mxu0
        %v1929 = vadd.f32 %v1906, %v1928
        %1930 = vdwg.mxu0
        %v1931 = vmul.f32 %v1428, 0.17677669
        %v1932 = vmul.f32 %v1595, 0.17677669
        %v1933 = vmul.f32 %v1762, 0.17677669
        %v1934 = vmul.f32 %v1929, 0.17677669
        %v1939 = vrot.slane %v1931, 1
        %v1940 = vrot.slane %v1932, 1
        %v1941 = vrot.slane %v1933, 1
        %v1942 = vrot.slane %v1934, 1
        %v1943 = vsub.f32 1.0, %v586
        %v1944 = vsub.f32 1.0, %v587
        %v1945 = vsub.f32 1.0, %v588
        %v1946 = vsub.f32 1.0, %v589
        %v1947 = vmul.f32 %v1943, 1e+30
        %v1948 = vmul.f32 %v1944, 1e+30
        %v1949 = vmul.f32 %v1945, 1e+30
        %v1950 = vmul.f32 %v1946, 1e+30
        %v1951 = vperm.slane %v1931, 0
        %v1952 = vperm.slane %v1939, 0
        %v1953 = vperm.slane %v1932, 0
        %v1954 = vperm.slane %v1940, 0
        %v1955 = vperm.slane %v1933, 0
        %v1956 = vperm.slane %v1941, 0
        %v1957 = vperm.slane %v1934, 0
        %v1958 = vperm.slane %v1942, 0
        %v1967 = vsub.f32 %v1951, %v1947
        %v1968 = vsub.f32 %v1952, %v1947
        %v1969 = vsub.f32 %v1953, %v1948
        %v1970 = vsub.f32 %v1954, %v1948
        %v1971 = vsub.f32 %v1955, %v1949
        %v1972 = vsub.f32 %v1956, %v1949
        %v1973 = vsub.f32 %v1957, %v1950
        %v1974 = vsub.f32 %v1958, %v1950
        %vm1975 = vcmask 130048
        %v1976 = vsel %vm1975, %v1967, -inf
        %1977 = vmax.xlane.f32.xlu0 %v1976
        %v1978 = vpop.xlane.xlu0 %1977
        %v1979 = vsel %vm1975, %v1968, -inf
        %1980 = vmax.xlane.f32.xlu0 %v1979
        %v1981 = vpop.xlane.xlu0 %1980
        %v1982 = vsel %vm1975, %v1969, -inf
        %1983 = vmax.xlane.f32.xlu0 %v1982
        %v1984 = vpop.xlane.xlu0 %1983
        %v1985 = vsel %vm1975, %v1970, -inf
        %1986 = vmax.xlane.f32.xlu0 %v1985
        %v1987 = vpop.xlane.xlu0 %1986
        %v1988 = vsel %vm1975, %v1971, -inf
        %1989 = vmax.xlane.f32.xlu0 %v1988
        %v1990 = vpop.xlane.xlu0 %1989
        %v1991 = vsel %vm1975, %v1972, -inf
        %1992 = vmax.xlane.f32.xlu0 %v1991
        %v1993 = vpop.xlane.xlu0 %1992
        %v1994 = vsel %vm1975, %v1973, -inf
        %1995 = vmax.xlane.f32.xlu0 %v1994
        %v1996 = vpop.xlane.xlu0 %1995
        %v1997 = vsel %vm1975, %v1974, -inf
        %1998 = vmax.xlane.f32.xlu0 %v1997
        %v1999 = vpop.xlane.xlu0 %1998
        %v2000 = vsub.f32 %v1951, %v1978
        %v2001 = vsub.f32 %v1952, %v1981
        %v2002 = vsub.f32 %v1953, %v1984
        %v2003 = vsub.f32 %v1954, %v1987
        %v2004 = vsub.f32 %v1955, %v1990
        %v2005 = vsub.f32 %v1956, %v1993
        %v2006 = vsub.f32 %v1957, %v1996
        %v2007 = vsub.f32 %v1958, %v1999
        %v2008 = vmin.f32 %v2000, 0.0
        %v2009 = vmin.f32 %v2001, 0.0
        %v2010 = vmin.f32 %v2002, 0.0
        %v2011 = vmin.f32 %v2003, 0.0
        %v2012 = vmin.f32 %v2004, 0.0
        %v2013 = vmin.f32 %v2005, 0.0
        %v2014 = vmin.f32 %v2006, 0.0
        %v2015 = vmin.f32 %v2007, 0.0
        %v2016 = vmul.f32 %v2008, 1.442695
        %v2017 = vpow.pop %v2016
        %v2018 = vmul.f32 %v2009, 1.442695
        %v2019 = vpow.pop %v2018
        %v2020 = vmul.f32 %v2010, 1.442695
        %v2021 = vpow.pop %v2020
        %v2022 = vmul.f32 %v2011, 1.442695
        %v2023 = vpow.pop %v2022
        %v2024 = vmul.f32 %v2012, 1.442695
        %v2025 = vpow.pop %v2024
        %v2026 = vmul.f32 %v2013, 1.442695
        %v2027 = vpow.pop %v2026
        %v2028 = vmul.f32 %v2014, 1.442695
        %v2029 = vpow.pop %v2028
        %v2030 = vmul.f32 %v2015, 1.442695
        %v2031 = vpow.pop %v2030
        %v2032 = vmul.f32 %v586, %v2017
        %v2033 = vmul.f32 %v586, %v2019
        %v2034 = vmul.f32 %v587, %v2021
        %v2035 = vmul.f32 %v587, %v2023
        %v2036 = vmul.f32 %v588, %v2025
        %v2037 = vmul.f32 %v588, %v2027
        %v2038 = vmul.f32 %v589, %v2029
        %v2039 = vmul.f32 %v589, %v2031
        %v2040 = vsel %vm1975, %v2032, 0.0
        %2041 = vadd.xlane.f32.xlu0 %v2040
        %v2042 = vpop.xlane.xlu0 %2041
        %v2043 = vsel %vm1975, %v2033, 0.0
        %2044 = vadd.xlane.f32.xlu0 %v2043
        %v2045 = vpop.xlane.xlu0 %2044
        %v2046 = vsel %vm1975, %v2034, 0.0
        %2047 = vadd.xlane.f32.xlu0 %v2046
        %v2048 = vpop.xlane.xlu0 %2047
        %v2049 = vsel %vm1975, %v2035, 0.0
        %2050 = vadd.xlane.f32.xlu0 %v2049
        %v2051 = vpop.xlane.xlu0 %2050
        %v2052 = vsel %vm1975, %v2036, 0.0
        %2053 = vadd.xlane.f32.xlu0 %v2052
        %v2054 = vpop.xlane.xlu0 %2053
        %v2055 = vsel %vm1975, %v2037, 0.0
        %2056 = vadd.xlane.f32.xlu0 %v2055
        %v2057 = vpop.xlane.xlu0 %2056
        %v2058 = vsel %vm1975, %v2038, 0.0
        %2059 = vadd.xlane.f32.xlu0 %v2058
        %v2060 = vpop.xlane.xlu0 %2059
        %v2061 = vsel %vm1975, %v2039, 0.0
        %2062 = vadd.xlane.f32.xlu0 %v2061
        %v2063 = vpop.xlane.xlu0 %2062
        %vm2064 = vcmp.gt.f32.partialorder %v2042, 0.0
        %vm2065 = vcmp.gt.f32.partialorder %v2045, 0.0
        %vm2066 = vcmp.gt.f32.partialorder %v2048, 0.0
        %vm2067 = vcmp.gt.f32.partialorder %v2051, 0.0
        %vm2068 = vcmp.gt.f32.partialorder %v2054, 0.0
        %vm2069 = vcmp.gt.f32.partialorder %v2057, 0.0
        %vm2070 = vcmp.gt.f32.partialorder %v2060, 0.0
        %vm2071 = vcmp.gt.f32.partialorder %v2063, 0.0
        %v2072 = vrcp.pop %v2042
        %v2073 = vrcp.pop %v2045
        %v2074 = vrcp.pop %v2048
        %v2075 = vrcp.pop %v2051
        %v2076 = vrcp.pop %v2054
        %v2077 = vrcp.pop %v2057
        %v2078 = vrcp.pop %v2060
        %v2079 = vrcp.pop %v2063
        %v2080 = vsel %vm2064, %v2072, 0.0
        %v2081 = vsel %vm2065, %v2073, 0.0
        %v2082 = vsel %vm2066, %v2074, 0.0
        %v2083 = vsel %vm2067, %v2075, 0.0
        %v2084 = vsel %vm2068, %v2076, 0.0
        %v2085 = vsel %vm2069, %v2077, 0.0
        %v2086 = vsel %vm2070, %v2078, 0.0
        %v2087 = vsel %vm2071, %v2079, 0.0
        %v2088 = vmul.f32 %v2032, %v2080
        %v2089 = vmul.f32 %v2033, %v2081
        %v2090 = vmul.f32 %v2034, %v2082
        %v2091 = vmul.f32 %v2035, %v2083
        %v2092 = vmul.f32 %v2036, %v2084
        %v2093 = vmul.f32 %v2037, %v2085
        %v2094 = vmul.f32 %v2038, %v2086
        %v2095 = vmul.f32 %v2039, %v2087
        %v2097 = vsel %vm1975, %v2088, 0
        %v2100 = vsel %vm1975, %v2089, 0
        %2102 = vmatpush.msra.mxu0 0.0
        %2103 = vmatpush.msra.mxu0 0.0
        %2104 = vmatpush.msra.mxu0 0.0
        %2105 = vmatpush.msra.mxu0 0.0
        %2106 = vmatpush.msra.mxu0 0.0
        %2107 = vmatpush.msra.mxu0 0.0
        %2108 = vmatpush.msra.mxu0 0.0
        %2109 = vmatpush.msra.mxu0 0.0
        %2110 = vmatpush.msra.mxu0 0.0
        %2111 = vmatpush.msra.mxu0 0.0
        %2112 = vmatpush.msra.mxu0 0.0
        %2113 = vmatpush.msra.mxu0 0.0
        %2114 = vmatpush.msra.mxu0 0.0
        %2115 = vmatpush.msra.mxu0 0.0
        %v2116 = vand.u32 %v575, 4294901760
        %2117 = vmatpush.msra.mxu0 %v2116
        %v2118 = vand.u32 %v574, 4294901760
        %2119 = vmatpush.msra.mxu0 %v2118
        %v2120 = vand.u32 %v2097, 4294901760
        %v2121 = vsub.f32 %v2097, %v2120
        %v2122 = vand.u32 %v2121, 4294901760
        %v2123 = vsub.f32 %v2121, %v2122
        %v2124 = vand.u32 %v2123, 4294901760
        %2125 = vmatmul.f32.gmra.mxu0 %v2124
        %v2126 = vpop.f32.mrf.mxu0
        %v2127 = vadd.f32 0.0, %v2126
        %v2128 = vand.u32 %v2100, 4294901760
        %v2129 = vsub.f32 %v2100, %v2128
        %v2130 = vand.u32 %v2129, 4294901760
        %v2131 = vsub.f32 %v2129, %v2130
        %v2132 = vand.u32 %v2131, 4294901760
        %2133 = vmatmul.f32.gmra.mxu0 %v2132
        %v2134 = vpop.f32.mrf.mxu0
        %v2135 = vadd.f32 0.0, %v2134
        %2136 = vdwg.mxu0
        %2137 = vmatpush.msra.mxu0 0.0
        %2138 = vmatpush.msra.mxu0 0.0
        %2139 = vmatpush.msra.mxu0 0.0
        %2140 = vmatpush.msra.mxu0 0.0
        %2141 = vmatpush.msra.mxu0 0.0
        %2142 = vmatpush.msra.mxu0 0.0
        %2143 = vmatpush.msra.mxu0 0.0
        %2144 = vmatpush.msra.mxu0 0.0
        %2145 = vmatpush.msra.mxu0 0.0
        %2146 = vmatpush.msra.mxu0 0.0
        %2147 = vmatpush.msra.mxu0 0.0
        %2148 = vmatpush.msra.mxu0 0.0
        %2149 = vmatpush.msra.mxu0 0.0
        %2150 = vmatpush.msra.mxu0 0.0
        %v2151 = vand.u32 %v575, 4294901760
        %v2152 = vsub.f32 %v575, %v2151
        %v2153 = vand.u32 %v2152, 4294901760
        %v2154 = vsub.f32 %v2152, %v2153
        %v2155 = vand.u32 %v2154, 4294901760
        %2156 = vmatpush.msra.mxu0 %v2155
        %v2157 = vand.u32 %v574, 4294901760
        %v2158 = vsub.f32 %v574, %v2157
        %v2159 = vand.u32 %v2158, 4294901760
        %v2160 = vsub.f32 %v2158, %v2159
        %v2161 = vand.u32 %v2160, 4294901760
        %2162 = vmatpush.msra.mxu0 %v2161
        %v2163 = vand.u32 %v2097, 4294901760
        %2164 = vmatmul.f32.gmra.mxu0 %v2163
        %v2165 = vpop.f32.mrf.mxu0
        %v2166 = vadd.f32 %v2127, %v2165
        %v2167 = vand.u32 %v2100, 4294901760
        %2168 = vmatmul.f32.gmra.mxu0 %v2167
        %v2169 = vpop.f32.mrf.mxu0
        %v2170 = vadd.f32 %v2135, %v2169
        %2171 = vdwg.mxu0
        %2172 = vmatpush.msra.mxu0 0.0
        %2173 = vmatpush.msra.mxu0 0.0
        %2174 = vmatpush.msra.mxu0 0.0
        %2175 = vmatpush.msra.mxu0 0.0
        %2176 = vmatpush.msra.mxu0 0.0
        %2177 = vmatpush.msra.mxu0 0.0
        %2178 = vmatpush.msra.mxu0 0.0
        %2179 = vmatpush.msra.mxu0 0.0
        %2180 = vmatpush.msra.mxu0 0.0
        %2181 = vmatpush.msra.mxu0 0.0
        %2182 = vmatpush.msra.mxu0 0.0
        %2183 = vmatpush.msra.mxu0 0.0
        %2184 = vmatpush.msra.mxu0 0.0
        %2185 = vmatpush.msra.mxu0 0.0
        %v2186 = vand.u32 %v575, 4294901760
        %v2187 = vsub.f32 %v575, %v2186
        %2188 = vmatpush.msra.mxu0 %v2187
        %v2189 = vand.u32 %v574, 4294901760
        %v2190 = vsub.f32 %v574, %v2189
        %2191 = vmatpush.msra.mxu0 %v2190
        %v2192 = vand.u32 %v2097, 4294901760
        %v2193 = vsub.f32 %v2097, %v2192
        %2194 = vmatmul.f32.gmra.mxu0 %v2193
        %v2195 = vpop.f32.mrf.mxu0
        %v2196 = vadd.f32 %v2166, %v2195
        %v2197 = vand.u32 %v2100, 4294901760
        %v2198 = vsub.f32 %v2100, %v2197
        %2199 = vmatmul.f32.gmra.mxu0 %v2198
        %v2200 = vpop.f32.mrf.mxu0
        %v2201 = vadd.f32 %v2170, %v2200
        %2202 = vdwg.mxu0
        %2203 = vmatpush.msra.mxu0 0.0
        %2204 = vmatpush.msra.mxu0 0.0
        %2205 = vmatpush.msra.mxu0 0.0
        %2206 = vmatpush.msra.mxu0 0.0
        %2207 = vmatpush.msra.mxu0 0.0
        %2208 = vmatpush.msra.mxu0 0.0
        %2209 = vmatpush.msra.mxu0 0.0
        %2210 = vmatpush.msra.mxu0 0.0
        %2211 = vmatpush.msra.mxu0 0.0
        %2212 = vmatpush.msra.mxu0 0.0
        %2213 = vmatpush.msra.mxu0 0.0
        %2214 = vmatpush.msra.mxu0 0.0
        %2215 = vmatpush.msra.mxu0 0.0
        %2216 = vmatpush.msra.mxu0 0.0
        %v2217 = vand.u32 %v575, 4294901760
        %2218 = vmatpush.msra.mxu0 %v2217
        %v2219 = vand.u32 %v574, 4294901760
        %2220 = vmatpush.msra.mxu0 %v2219
        %v2221 = vand.u32 %v2097, 4294901760
        %v2222 = vsub.f32 %v2097, %v2221
        %v2223 = vand.u32 %v2222, 4294901760
        %2224 = vmatmul.f32.gmra.mxu0 %v2223
        %v2225 = vpop.f32.mrf.mxu0
        %v2226 = vadd.f32 %v2196, %v2225
        %v2227 = vand.u32 %v2100, 4294901760
        %v2228 = vsub.f32 %v2100, %v2227
        %v2229 = vand.u32 %v2228, 4294901760
        %2230 = vmatmul.f32.gmra.mxu0 %v2229
        %v2231 = vpop.f32.mrf.mxu0
        %v2232 = vadd.f32 %v2201, %v2231
        %2233 = vdwg.mxu0
        %2234 = vmatpush.msra.mxu0 0.0
        %2235 = vmatpush.msra.mxu0 0.0
        %2236 = vmatpush.msra.mxu0 0.0
        %2237 = vmatpush.msra.mxu0 0.0
        %2238 = vmatpush.msra.mxu0 0.0
        %2239 = vmatpush.msra.mxu0 0.0
        %2240 = vmatpush.msra.mxu0 0.0
        %2241 = vmatpush.msra.mxu0 0.0
        %2242 = vmatpush.msra.mxu0 0.0
        %2243 = vmatpush.msra.mxu0 0.0
        %2244 = vmatpush.msra.mxu0 0.0
        %2245 = vmatpush.msra.mxu0 0.0
        %2246 = vmatpush.msra.mxu0 0.0
        %2247 = vmatpush.msra.mxu0 0.0
        %v2248 = vand.u32 %v575, 4294901760
        %v2249 = vsub.f32 %v575, %v2248
        %v2250 = vand.u32 %v2249, 4294901760
        %2251 = vmatpush.msra.mxu0 %v2250
        %v2252 = vand.u32 %v574, 4294901760
        %v2253 = vsub.f32 %v574, %v2252
        %v2254 = vand.u32 %v2253, 4294901760
        %2255 = vmatpush.msra.mxu0 %v2254
        %v2256 = vand.u32 %v2097, 4294901760
        %2257 = vmatmul.f32.gmra.mxu0 %v2256
        %v2258 = vpop.f32.mrf.mxu0
        %v2259 = vadd.f32 %v2226, %v2258
        %v2260 = vand.u32 %v2100, 4294901760
        %2261 = vmatmul.f32.gmra.mxu0 %v2260
        %v2262 = vpop.f32.mrf.mxu0
        %v2263 = vadd.f32 %v2232, %v2262
        %2264 = vdwg.mxu0
        %2265 = vmatpush.msra.mxu0 0.0
        %2266 = vmatpush.msra.mxu0 0.0
        %2267 = vmatpush.msra.mxu0 0.0
        %2268 = vmatpush.msra.mxu0 0.0
        %2269 = vmatpush.msra.mxu0 0.0
        %2270 = vmatpush.msra.mxu0 0.0
        %2271 = vmatpush.msra.mxu0 0.0
        %2272 = vmatpush.msra.mxu0 0.0
        %2273 = vmatpush.msra.mxu0 0.0
        %2274 = vmatpush.msra.mxu0 0.0
        %2275 = vmatpush.msra.mxu0 0.0
        %2276 = vmatpush.msra.mxu0 0.0
        %2277 = vmatpush.msra.mxu0 0.0
        %2278 = vmatpush.msra.mxu0 0.0
        %v2279 = vand.u32 %v575, 4294901760
        %2280 = vmatpush.msra.mxu0 %v2279
        %v2281 = vand.u32 %v574, 4294901760
        %2282 = vmatpush.msra.mxu0 %v2281
        %v2283 = vand.u32 %v2097, 4294901760
        %2284 = vmatmul.f32.gmra.mxu0 %v2283
        %v2285 = vpop.f32.mrf.mxu0
        %v2286 = vadd.f32 %v2259, %v2285
        %v2287 = vand.u32 %v2100, 4294901760
        %2288 = vmatmul.f32.gmra.mxu0 %v2287
        %v2289 = vpop.f32.mrf.mxu0
        %v2290 = vadd.f32 %v2263, %v2289
        %2291 = vdwg.mxu0
        %v2293 = vsel %vm1975, %v2090, 0
        %v2296 = vsel %vm1975, %v2091, 0
        %2298 = vmatpush.msra.mxu0 0.0
        %2299 = vmatpush.msra.mxu0 0.0
        %2300 = vmatpush.msra.mxu0 0.0
        %2301 = vmatpush.msra.mxu0 0.0
        %2302 = vmatpush.msra.mxu0 0.0
        %2303 = vmatpush.msra.mxu0 0.0
        %2304 = vmatpush.msra.mxu0 0.0
        %2305 = vmatpush.msra.mxu0 0.0
        %2306 = vmatpush.msra.mxu0 0.0
        %2307 = vmatpush.msra.mxu0 0.0
        %2308 = vmatpush.msra.mxu0 0.0
        %2309 = vmatpush.msra.mxu0 0.0
        %2310 = vmatpush.msra.mxu0 0.0
        %2311 = vmatpush.msra.mxu0 0.0
        %v2312 = vand.u32 %v577, 4294901760
        %2313 = vmatpush.msra.mxu0 %v2312
        %v2314 = vand.u32 %v576, 4294901760
        %2315 = vmatpush.msra.mxu0 %v2314
        %v2316 = vand.u32 %v2293, 4294901760
        %v2317 = vsub.f32 %v2293, %v2316
        %v2318 = vand.u32 %v2317, 4294901760
        %v2319 = vsub.f32 %v2317, %v2318
        %v2320 = vand.u32 %v2319, 4294901760
        %2321 = vmatmul.f32.gmra.mxu0 %v2320
        %v2322 = vpop.f32.mrf.mxu0
        %v2323 = vadd.f32 0.0, %v2322
        %v2324 = vand.u32 %v2296, 4294901760
        %v2325 = vsub.f32 %v2296, %v2324
        %v2326 = vand.u32 %v2325, 4294901760
        %v2327 = vsub.f32 %v2325, %v2326
        %v2328 = vand.u32 %v2327, 4294901760
        %2329 = vmatmul.f32.gmra.mxu0 %v2328
        %v2330 = vpop.f32.mrf.mxu0
        %v2331 = vadd.f32 0.0, %v2330
        %2332 = vdwg.mxu0
        %2333 = vmatpush.msra.mxu0 0.0
        %2334 = vmatpush.msra.mxu0 0.0
        %2335 = vmatpush.msra.mxu0 0.0
        %2336 = vmatpush.msra.mxu0 0.0
        %2337 = vmatpush.msra.mxu0 0.0
        %2338 = vmatpush.msra.mxu0 0.0
        %2339 = vmatpush.msra.mxu0 0.0
        %2340 = vmatpush.msra.mxu0 0.0
        %2341 = vmatpush.msra.mxu0 0.0
        %2342 = vmatpush.msra.mxu0 0.0
        %2343 = vmatpush.msra.mxu0 0.0
        %2344 = vmatpush.msra.mxu0 0.0
        %2345 = vmatpush.msra.mxu0 0.0
        %2346 = vmatpush.msra.mxu0 0.0
        %v2347 = vand.u32 %v577, 4294901760
        %v2348 = vsub.f32 %v577, %v2347
        %v2349 = vand.u32 %v2348, 4294901760
        %v2350 = vsub.f32 %v2348, %v2349
        %v2351 = vand.u32 %v2350, 4294901760
        %2352 = vmatpush.msra.mxu0 %v2351
        %v2353 = vand.u32 %v576, 4294901760
        %v2354 = vsub.f32 %v576, %v2353
        %v2355 = vand.u32 %v2354, 4294901760
        %v2356 = vsub.f32 %v2354, %v2355
        %v2357 = vand.u32 %v2356, 4294901760
        %2358 = vmatpush.msra.mxu0 %v2357
        %v2359 = vand.u32 %v2293, 4294901760
        %2360 = vmatmul.f32.gmra.mxu0 %v2359
        %v2361 = vpop.f32.mrf.mxu0
        %v2362 = vadd.f32 %v2323, %v2361
        %v2363 = vand.u32 %v2296, 4294901760
        %2364 = vmatmul.f32.gmra.mxu0 %v2363
        %v2365 = vpop.f32.mrf.mxu0
        %v2366 = vadd.f32 %v2331, %v2365
        %2367 = vdwg.mxu0
        %2368 = vmatpush.msra.mxu0 0.0
        %2369 = vmatpush.msra.mxu0 0.0
        %2370 = vmatpush.msra.mxu0 0.0
        %2371 = vmatpush.msra.mxu0 0.0
        %2372 = vmatpush.msra.mxu0 0.0
        %2373 = vmatpush.msra.mxu0 0.0
        %2374 = vmatpush.msra.mxu0 0.0
        %2375 = vmatpush.msra.mxu0 0.0
        %2376 = vmatpush.msra.mxu0 0.0
        %2377 = vmatpush.msra.mxu0 0.0
        %2378 = vmatpush.msra.mxu0 0.0
        %2379 = vmatpush.msra.mxu0 0.0
        %2380 = vmatpush.msra.mxu0 0.0
        %2381 = vmatpush.msra.mxu0 0.0
        %v2382 = vand.u32 %v577, 4294901760
        %v2383 = vsub.f32 %v577, %v2382
        %2384 = vmatpush.msra.mxu0 %v2383
        %v2385 = vand.u32 %v576, 4294901760
        %v2386 = vsub.f32 %v576, %v2385
        %2387 = vmatpush.msra.mxu0 %v2386
        %v2388 = vand.u32 %v2293, 4294901760
        %v2389 = vsub.f32 %v2293, %v2388
        %2390 = vmatmul.f32.gmra.mxu0 %v2389
        %v2391 = vpop.f32.mrf.mxu0
        %v2392 = vadd.f32 %v2362, %v2391
        %v2393 = vand.u32 %v2296, 4294901760
        %v2394 = vsub.f32 %v2296, %v2393
        %2395 = vmatmul.f32.gmra.mxu0 %v2394
        %v2396 = vpop.f32.mrf.mxu0
        %v2397 = vadd.f32 %v2366, %v2396
        %2398 = vdwg.mxu0
        %2399 = vmatpush.msra.mxu0 0.0
        %2400 = vmatpush.msra.mxu0 0.0
        %2401 = vmatpush.msra.mxu0 0.0
        %2402 = vmatpush.msra.mxu0 0.0
        %2403 = vmatpush.msra.mxu0 0.0
        %2404 = vmatpush.msra.mxu0 0.0
        %2405 = vmatpush.msra.mxu0 0.0
        %2406 = vmatpush.msra.mxu0 0.0
        %2407 = vmatpush.msra.mxu0 0.0
        %2408 = vmatpush.msra.mxu0 0.0
        %2409 = vmatpush.msra.mxu0 0.0
        %2410 = vmatpush.msra.mxu0 0.0
        %2411 = vmatpush.msra.mxu0 0.0
        %2412 = vmatpush.msra.mxu0 0.0
        %v2413 = vand.u32 %v577, 4294901760
        %2414 = vmatpush.msra.mxu0 %v2413
        %v2415 = vand.u32 %v576, 4294901760
        %2416 = vmatpush.msra.mxu0 %v2415
        %v2417 = vand.u32 %v2293, 4294901760
        %v2418 = vsub.f32 %v2293, %v2417
        %v2419 = vand.u32 %v2418, 4294901760
        %2420 = vmatmul.f32.gmra.mxu0 %v2419
        %v2421 = vpop.f32.mrf.mxu0
        %v2422 = vadd.f32 %v2392, %v2421
        %v2423 = vand.u32 %v2296, 4294901760
        %v2424 = vsub.f32 %v2296, %v2423
        %v2425 = vand.u32 %v2424, 4294901760
        %2426 = vmatmul.f32.gmra.mxu0 %v2425
        %v2427 = vpop.f32.mrf.mxu0
        %v2428 = vadd.f32 %v2397, %v2427
        %2429 = vdwg.mxu0
        %2430 = vmatpush.msra.mxu0 0.0
        %2431 = vmatpush.msra.mxu0 0.0
        %2432 = vmatpush.msra.mxu0 0.0
        %2433 = vmatpush.msra.mxu0 0.0
        %2434 = vmatpush.msra.mxu0 0.0
        %2435 = vmatpush.msra.mxu0 0.0
        %2436 = vmatpush.msra.mxu0 0.0
        %2437 = vmatpush.msra.mxu0 0.0
        %2438 = vmatpush.msra.mxu0 0.0
        %2439 = vmatpush.msra.mxu0 0.0
        %2440 = vmatpush.msra.mxu0 0.0
        %2441 = vmatpush.msra.mxu0 0.0
        %2442 = vmatpush.msra.mxu0 0.0
        %2443 = vmatpush.msra.mxu0 0.0
        %v2444 = vand.u32 %v577, 4294901760
        %v2445 = vsub.f32 %v577, %v2444
        %v2446 = vand.u32 %v2445, 4294901760
        %2447 = vmatpush.msra.mxu0 %v2446
        %v2448 = vand.u32 %v576, 4294901760
        %v2449 = vsub.f32 %v576, %v2448
        %v2450 = vand.u32 %v2449, 4294901760
        %2451 = vmatpush.msra.mxu0 %v2450
        %v2452 = vand.u32 %v2293, 4294901760
        %2453 = vmatmul.f32.gmra.mxu0 %v2452
        %v2454 = vpop.f32.mrf.mxu0
        %v2455 = vadd.f32 %v2422, %v2454
        %v2456 = vand.u32 %v2296, 4294901760
        %2457 = vmatmul.f32.gmra.mxu0 %v2456
        %v2458 = vpop.f32.mrf.mxu0
        %v2459 = vadd.f32 %v2428, %v2458
        %2460 = vdwg.mxu0
        %2461 = vmatpush.msra.mxu0 0.0
        %2462 = vmatpush.msra.mxu0 0.0
        %2463 = vmatpush.msra.mxu0 0.0
        %2464 = vmatpush.msra.mxu0 0.0
        %2465 = vmatpush.msra.mxu0 0.0
        %2466 = vmatpush.msra.mxu0 0.0
        %2467 = vmatpush.msra.mxu0 0.0
        %2468 = vmatpush.msra.mxu0 0.0
        %2469 = vmatpush.msra.mxu0 0.0
        %2470 = vmatpush.msra.mxu0 0.0
        %2471 = vmatpush.msra.mxu0 0.0
        %2472 = vmatpush.msra.mxu0 0.0
        %2473 = vmatpush.msra.mxu0 0.0
        %2474 = vmatpush.msra.mxu0 0.0
        %v2475 = vand.u32 %v577, 4294901760
        %2476 = vmatpush.msra.mxu0 %v2475
        %v2477 = vand.u32 %v576, 4294901760
        %2478 = vmatpush.msra.mxu0 %v2477
        %v2479 = vand.u32 %v2293, 4294901760
        %2480 = vmatmul.f32.gmra.mxu0 %v2479
        %v2481 = vpop.f32.mrf.mxu0
        %v2482 = vadd.f32 %v2455, %v2481
        %v2483 = vand.u32 %v2296, 4294901760
        %2484 = vmatmul.f32.gmra.mxu0 %v2483
        %v2485 = vpop.f32.mrf.mxu0
        %v2486 = vadd.f32 %v2459, %v2485
        %2487 = vdwg.mxu0
        %v2489 = vsel %vm1975, %v2092, 0
        %v2492 = vsel %vm1975, %v2093, 0
        %2494 = vmatpush.msra.mxu0 0.0
        %2495 = vmatpush.msra.mxu0 0.0
        %2496 = vmatpush.msra.mxu0 0.0
        %2497 = vmatpush.msra.mxu0 0.0
        %2498 = vmatpush.msra.mxu0 0.0
        %2499 = vmatpush.msra.mxu0 0.0
        %2500 = vmatpush.msra.mxu0 0.0
        %2501 = vmatpush.msra.mxu0 0.0
        %2502 = vmatpush.msra.mxu0 0.0
        %2503 = vmatpush.msra.mxu0 0.0
        %2504 = vmatpush.msra.mxu0 0.0
        %2505 = vmatpush.msra.mxu0 0.0
        %2506 = vmatpush.msra.mxu0 0.0
        %2507 = vmatpush.msra.mxu0 0.0
        %v2508 = vand.u32 %v579, 4294901760
        %2509 = vmatpush.msra.mxu0 %v2508
        %v2510 = vand.u32 %v578, 4294901760
        %2511 = vmatpush.msra.mxu0 %v2510
        %v2512 = vand.u32 %v2489, 4294901760
        %v2513 = vsub.f32 %v2489, %v2512
        %v2514 = vand.u32 %v2513, 4294901760
        %v2515 = vsub.f32 %v2513, %v2514
        %v2516 = vand.u32 %v2515, 4294901760
        %2517 = vmatmul.f32.gmra.mxu0 %v2516
        %v2518 = vpop.f32.mrf.mxu0
        %v2519 = vadd.f32 0.0, %v2518
        %v2520 = vand.u32 %v2492, 4294901760
        %v2521 = vsub.f32 %v2492, %v2520
        %v2522 = vand.u32 %v2521, 4294901760
        %v2523 = vsub.f32 %v2521, %v2522
        %v2524 = vand.u32 %v2523, 4294901760
        %2525 = vmatmul.f32.gmra.mxu0 %v2524
        %v2526 = vpop.f32.mrf.mxu0
        %v2527 = vadd.f32 0.0, %v2526
        %2528 = vdwg.mxu0
        %2529 = vmatpush.msra.mxu0 0.0
        %2530 = vmatpush.msra.mxu0 0.0
        %2531 = vmatpush.msra.mxu0 0.0
        %2532 = vmatpush.msra.mxu0 0.0
        %2533 = vmatpush.msra.mxu0 0.0
        %2534 = vmatpush.msra.mxu0 0.0
        %2535 = vmatpush.msra.mxu0 0.0
        %2536 = vmatpush.msra.mxu0 0.0
        %2537 = vmatpush.msra.mxu0 0.0
        %2538 = vmatpush.msra.mxu0 0.0
        %2539 = vmatpush.msra.mxu0 0.0
        %2540 = vmatpush.msra.mxu0 0.0
        %2541 = vmatpush.msra.mxu0 0.0
        %2542 = vmatpush.msra.mxu0 0.0
        %v2543 = vand.u32 %v579, 4294901760
        %v2544 = vsub.f32 %v579, %v2543
        %v2545 = vand.u32 %v2544, 4294901760
        %v2546 = vsub.f32 %v2544, %v2545
        %v2547 = vand.u32 %v2546, 4294901760
        %2548 = vmatpush.msra.mxu0 %v2547
        %v2549 = vand.u32 %v578, 4294901760
        %v2550 = vsub.f32 %v578, %v2549
        %v2551 = vand.u32 %v2550, 4294901760
        %v2552 = vsub.f32 %v2550, %v2551
        %v2553 = vand.u32 %v2552, 4294901760
        %2554 = vmatpush.msra.mxu0 %v2553
        %v2555 = vand.u32 %v2489, 4294901760
        %2556 = vmatmul.f32.gmra.mxu0 %v2555
        %v2557 = vpop.f32.mrf.mxu0
        %v2558 = vadd.f32 %v2519, %v2557
        %v2559 = vand.u32 %v2492, 4294901760
        %2560 = vmatmul.f32.gmra.mxu0 %v2559
        %v2561 = vpop.f32.mrf.mxu0
        %v2562 = vadd.f32 %v2527, %v2561
        %2563 = vdwg.mxu0
        %2564 = vmatpush.msra.mxu0 0.0
        %2565 = vmatpush.msra.mxu0 0.0
        %2566 = vmatpush.msra.mxu0 0.0
        %2567 = vmatpush.msra.mxu0 0.0
        %2568 = vmatpush.msra.mxu0 0.0
        %2569 = vmatpush.msra.mxu0 0.0
        %2570 = vmatpush.msra.mxu0 0.0
        %2571 = vmatpush.msra.mxu0 0.0
        %2572 = vmatpush.msra.mxu0 0.0
        %2573 = vmatpush.msra.mxu0 0.0
        %2574 = vmatpush.msra.mxu0 0.0
        %2575 = vmatpush.msra.mxu0 0.0
        %2576 = vmatpush.msra.mxu0 0.0
        %2577 = vmatpush.msra.mxu0 0.0
        %v2578 = vand.u32 %v579, 4294901760
        %v2579 = vsub.f32 %v579, %v2578
        %2580 = vmatpush.msra.mxu0 %v2579
        %v2581 = vand.u32 %v578, 4294901760
        %v2582 = vsub.f32 %v578, %v2581
        %2583 = vmatpush.msra.mxu0 %v2582
        %v2584 = vand.u32 %v2489, 4294901760
        %v2585 = vsub.f32 %v2489, %v2584
        %2586 = vmatmul.f32.gmra.mxu0 %v2585
        %v2587 = vpop.f32.mrf.mxu0
        %v2588 = vadd.f32 %v2558, %v2587
        %v2589 = vand.u32 %v2492, 4294901760
        %v2590 = vsub.f32 %v2492, %v2589
        %2591 = vmatmul.f32.gmra.mxu0 %v2590
        %v2592 = vpop.f32.mrf.mxu0
        %v2593 = vadd.f32 %v2562, %v2592
        %2594 = vdwg.mxu0
        %2595 = vmatpush.msra.mxu0 0.0
        %2596 = vmatpush.msra.mxu0 0.0
        %2597 = vmatpush.msra.mxu0 0.0
        %2598 = vmatpush.msra.mxu0 0.0
        %2599 = vmatpush.msra.mxu0 0.0
        %2600 = vmatpush.msra.mxu0 0.0
        %2601 = vmatpush.msra.mxu0 0.0
        %2602 = vmatpush.msra.mxu0 0.0
        %2603 = vmatpush.msra.mxu0 0.0
        %2604 = vmatpush.msra.mxu0 0.0
        %2605 = vmatpush.msra.mxu0 0.0
        %2606 = vmatpush.msra.mxu0 0.0
        %2607 = vmatpush.msra.mxu0 0.0
        %2608 = vmatpush.msra.mxu0 0.0
        %v2609 = vand.u32 %v579, 4294901760
        %2610 = vmatpush.msra.mxu0 %v2609
        %v2611 = vand.u32 %v578, 4294901760
        %2612 = vmatpush.msra.mxu0 %v2611
        %v2613 = vand.u32 %v2489, 4294901760
        %v2614 = vsub.f32 %v2489, %v2613
        %v2615 = vand.u32 %v2614, 4294901760
        %2616 = vmatmul.f32.gmra.mxu0 %v2615
        %v2617 = vpop.f32.mrf.mxu0
        %v2618 = vadd.f32 %v2588, %v2617
        %v2619 = vand.u32 %v2492, 4294901760
        %v2620 = vsub.f32 %v2492, %v2619
        %v2621 = vand.u32 %v2620, 4294901760
        %2622 = vmatmul.f32.gmra.mxu0 %v2621
        %v2623 = vpop.f32.mrf.mxu0
        %v2624 = vadd.f32 %v2593, %v2623
        %2625 = vdwg.mxu0
        %2626 = vmatpush.msra.mxu0 0.0
        %2627 = vmatpush.msra.mxu0 0.0
        %2628 = vmatpush.msra.mxu0 0.0
        %2629 = vmatpush.msra.mxu0 0.0
        %2630 = vmatpush.msra.mxu0 0.0
        %2631 = vmatpush.msra.mxu0 0.0
        %2632 = vmatpush.msra.mxu0 0.0
        %2633 = vmatpush.msra.mxu0 0.0
        %2634 = vmatpush.msra.mxu0 0.0
        %2635 = vmatpush.msra.mxu0 0.0
        %2636 = vmatpush.msra.mxu0 0.0
        %2637 = vmatpush.msra.mxu0 0.0
        %2638 = vmatpush.msra.mxu0 0.0
        %2639 = vmatpush.msra.mxu0 0.0
        %v2640 = vand.u32 %v579, 4294901760
        %v2641 = vsub.f32 %v579, %v2640
        %v2642 = vand.u32 %v2641, 4294901760
        %2643 = vmatpush.msra.mxu0 %v2642
        %v2644 = vand.u32 %v578, 4294901760
        %v2645 = vsub.f32 %v578, %v2644
        %v2646 = vand.u32 %v2645, 4294901760
        %2647 = vmatpush.msra.mxu0 %v2646
        %v2648 = vand.u32 %v2489, 4294901760
        %2649 = vmatmul.f32.gmra.mxu0 %v2648
        %v2650 = vpop.f32.mrf.mxu0
        %v2651 = vadd.f32 %v2618, %v2650
        %v2652 = vand.u32 %v2492, 4294901760
        %2653 = vmatmul.f32.gmra.mxu0 %v2652
        %v2654 = vpop.f32.mrf.mxu0
        %v2655 = vadd.f32 %v2624, %v2654
        %2656 = vdwg.mxu0
        %2657 = vmatpush.msra.mxu0 0.0
        %2658 = vmatpush.msra.mxu0 0.0
        %2659 = vmatpush.msra.mxu0 0.0
        %2660 = vmatpush.msra.mxu0 0.0
        %2661 = vmatpush.msra.mxu0 0.0
        %2662 = vmatpush.msra.mxu0 0.0
        %2663 = vmatpush.msra.mxu0 0.0
        %2664 = vmatpush.msra.mxu0 0.0
        %2665 = vmatpush.msra.mxu0 0.0
        %2666 = vmatpush.msra.mxu0 0.0
        %2667 = vmatpush.msra.mxu0 0.0
        %2668 = vmatpush.msra.mxu0 0.0
        %2669 = vmatpush.msra.mxu0 0.0
        %2670 = vmatpush.msra.mxu0 0.0
        %v2671 = vand.u32 %v579, 4294901760
        %2672 = vmatpush.msra.mxu0 %v2671
        %v2673 = vand.u32 %v578, 4294901760
        %2674 = vmatpush.msra.mxu0 %v2673
        %v2675 = vand.u32 %v2489, 4294901760
        %2676 = vmatmul.f32.gmra.mxu0 %v2675
        %v2677 = vpop.f32.mrf.mxu0
        %v2678 = vadd.f32 %v2651, %v2677
        %v2679 = vand.u32 %v2492, 4294901760
        %2680 = vmatmul.f32.gmra.mxu0 %v2679
        %v2681 = vpop.f32.mrf.mxu0
        %v2682 = vadd.f32 %v2655, %v2681
        %2683 = vdwg.mxu0
        %v2685 = vsel %vm1975, %v2094, 0
        %v2688 = vsel %vm1975, %v2095, 0
        %2690 = vmatpush.msra.mxu0 0.0
        %2691 = vmatpush.msra.mxu0 0.0
        %2692 = vmatpush.msra.mxu0 0.0
        %2693 = vmatpush.msra.mxu0 0.0
        %2694 = vmatpush.msra.mxu0 0.0
        %2695 = vmatpush.msra.mxu0 0.0
        %2696 = vmatpush.msra.mxu0 0.0
        %2697 = vmatpush.msra.mxu0 0.0
        %2698 = vmatpush.msra.mxu0 0.0
        %2699 = vmatpush.msra.mxu0 0.0
        %2700 = vmatpush.msra.mxu0 0.0
        %2701 = vmatpush.msra.mxu0 0.0
        %2702 = vmatpush.msra.mxu0 0.0
        %2703 = vmatpush.msra.mxu0 0.0
        %v2704 = vand.u32 %v581, 4294901760
        %2705 = vmatpush.msra.mxu0 %v2704
        %v2706 = vand.u32 %v580, 4294901760
        %2707 = vmatpush.msra.mxu0 %v2706
        %v2708 = vand.u32 %v2685, 4294901760
        %v2709 = vsub.f32 %v2685, %v2708
        %v2710 = vand.u32 %v2709, 4294901760
        %v2711 = vsub.f32 %v2709, %v2710
        %v2712 = vand.u32 %v2711, 4294901760
        %2713 = vmatmul.f32.gmra.mxu0 %v2712
        %v2714 = vpop.f32.mrf.mxu0
        %v2715 = vadd.f32 0.0, %v2714
        %v2716 = vand.u32 %v2688, 4294901760
        %v2717 = vsub.f32 %v2688, %v2716
        %v2718 = vand.u32 %v2717, 4294901760
        %v2719 = vsub.f32 %v2717, %v2718
        %v2720 = vand.u32 %v2719, 4294901760
        %2721 = vmatmul.f32.gmra.mxu0 %v2720
        %v2722 = vpop.f32.mrf.mxu0
        %v2723 = vadd.f32 0.0, %v2722
        %2724 = vdwg.mxu0
        %2725 = vmatpush.msra.mxu0 0.0
        %2726 = vmatpush.msra.mxu0 0.0
        %2727 = vmatpush.msra.mxu0 0.0
        %2728 = vmatpush.msra.mxu0 0.0
        %2729 = vmatpush.msra.mxu0 0.0
        %2730 = vmatpush.msra.mxu0 0.0
        %2731 = vmatpush.msra.mxu0 0.0
        %2732 = vmatpush.msra.mxu0 0.0
        %2733 = vmatpush.msra.mxu0 0.0
        %2734 = vmatpush.msra.mxu0 0.0
        %2735 = vmatpush.msra.mxu0 0.0
        %2736 = vmatpush.msra.mxu0 0.0
        %2737 = vmatpush.msra.mxu0 0.0
        %2738 = vmatpush.msra.mxu0 0.0
        %v2739 = vand.u32 %v581, 4294901760
        %v2740 = vsub.f32 %v581, %v2739
        %v2741 = vand.u32 %v2740, 4294901760
        %v2742 = vsub.f32 %v2740, %v2741
        %v2743 = vand.u32 %v2742, 4294901760
        %2744 = vmatpush.msra.mxu0 %v2743
        %v2745 = vand.u32 %v580, 4294901760
        %v2746 = vsub.f32 %v580, %v2745
        %v2747 = vand.u32 %v2746, 4294901760
        %v2748 = vsub.f32 %v2746, %v2747
        %v2749 = vand.u32 %v2748, 4294901760
        %2750 = vmatpush.msra.mxu0 %v2749
        %v2751 = vand.u32 %v2685, 4294901760
        %2752 = vmatmul.f32.gmra.mxu0 %v2751
        %v2753 = vpop.f32.mrf.mxu0
        %v2754 = vadd.f32 %v2715, %v2753
        %v2755 = vand.u32 %v2688, 4294901760
        %2756 = vmatmul.f32.gmra.mxu0 %v2755
        %v2757 = vpop.f32.mrf.mxu0
        %v2758 = vadd.f32 %v2723, %v2757
        %2759 = vdwg.mxu0
        %2760 = vmatpush.msra.mxu0 0.0
        %2761 = vmatpush.msra.mxu0 0.0
        %2762 = vmatpush.msra.mxu0 0.0
        %2763 = vmatpush.msra.mxu0 0.0
        %2764 = vmatpush.msra.mxu0 0.0
        %2765 = vmatpush.msra.mxu0 0.0
        %2766 = vmatpush.msra.mxu0 0.0
        %2767 = vmatpush.msra.mxu0 0.0
        %2768 = vmatpush.msra.mxu0 0.0
        %2769 = vmatpush.msra.mxu0 0.0
        %2770 = vmatpush.msra.mxu0 0.0
        %2771 = vmatpush.msra.mxu0 0.0
        %2772 = vmatpush.msra.mxu0 0.0
        %2773 = vmatpush.msra.mxu0 0.0
        %v2774 = vand.u32 %v581, 4294901760
        %v2775 = vsub.f32 %v581, %v2774
        %2776 = vmatpush.msra.mxu0 %v2775
        %v2777 = vand.u32 %v580, 4294901760
        %v2778 = vsub.f32 %v580, %v2777
        %2779 = vmatpush.msra.mxu0 %v2778
        %v2780 = vand.u32 %v2685, 4294901760
        %v2781 = vsub.f32 %v2685, %v2780
        %2782 = vmatmul.f32.gmra.mxu0 %v2781
        %v2783 = vpop.f32.mrf.mxu0
        %v2784 = vadd.f32 %v2754, %v2783
        %v2785 = vand.u32 %v2688, 4294901760
        %v2786 = vsub.f32 %v2688, %v2785
        %2787 = vmatmul.f32.gmra.mxu0 %v2786
        %v2788 = vpop.f32.mrf.mxu0
        %v2789 = vadd.f32 %v2758, %v2788
        %2790 = vdwg.mxu0
        %2791 = vmatpush.msra.mxu0 0.0
        %2792 = vmatpush.msra.mxu0 0.0
        %2793 = vmatpush.msra.mxu0 0.0
        %2794 = vmatpush.msra.mxu0 0.0
        %2795 = vmatpush.msra.mxu0 0.0
        %2796 = vmatpush.msra.mxu0 0.0
        %2797 = vmatpush.msra.mxu0 0.0
        %2798 = vmatpush.msra.mxu0 0.0
        %2799 = vmatpush.msra.mxu0 0.0
        %2800 = vmatpush.msra.mxu0 0.0
        %2801 = vmatpush.msra.mxu0 0.0
        %2802 = vmatpush.msra.mxu0 0.0
        %2803 = vmatpush.msra.mxu0 0.0
        %2804 = vmatpush.msra.mxu0 0.0
        %v2805 = vand.u32 %v581, 4294901760
        %2806 = vmatpush.msra.mxu0 %v2805
        %v2807 = vand.u32 %v580, 4294901760
        %2808 = vmatpush.msra.mxu0 %v2807
        %v2809 = vand.u32 %v2685, 4294901760
        %v2810 = vsub.f32 %v2685, %v2809
        %v2811 = vand.u32 %v2810, 4294901760
        %2812 = vmatmul.f32.gmra.mxu0 %v2811
        %v2813 = vpop.f32.mrf.mxu0
        %v2814 = vadd.f32 %v2784, %v2813
        %v2815 = vand.u32 %v2688, 4294901760
        %v2816 = vsub.f32 %v2688, %v2815
        %v2817 = vand.u32 %v2816, 4294901760
        %2818 = vmatmul.f32.gmra.mxu0 %v2817
        %v2819 = vpop.f32.mrf.mxu0
        %v2820 = vadd.f32 %v2789, %v2819
        %2821 = vdwg.mxu0
        %2822 = vmatpush.msra.mxu0 0.0
        %2823 = vmatpush.msra.mxu0 0.0
        %2824 = vmatpush.msra.mxu0 0.0
        %2825 = vmatpush.msra.mxu0 0.0
        %2826 = vmatpush.msra.mxu0 0.0
        %2827 = vmatpush.msra.mxu0 0.0
        %2828 = vmatpush.msra.mxu0 0.0
        %2829 = vmatpush.msra.mxu0 0.0
        %2830 = vmatpush.msra.mxu0 0.0
        %2831 = vmatpush.msra.mxu0 0.0
        %2832 = vmatpush.msra.mxu0 0.0
        %2833 = vmatpush.msra.mxu0 0.0
        %2834 = vmatpush.msra.mxu0 0.0
        %2835 = vmatpush.msra.mxu0 0.0
        %v2836 = vand.u32 %v581, 4294901760
        %v2837 = vsub.f32 %v581, %v2836
        %v2838 = vand.u32 %v2837, 4294901760
        %2839 = vmatpush.msra.mxu0 %v2838
        %v2840 = vand.u32 %v580, 4294901760
        %v2841 = vsub.f32 %v580, %v2840
        %v2842 = vand.u32 %v2841, 4294901760
        %2843 = vmatpush.msra.mxu0 %v2842
        %v2844 = vand.u32 %v2685, 4294901760
        %2845 = vmatmul.f32.gmra.mxu0 %v2844
        %v2846 = vpop.f32.mrf.mxu0
        %v2847 = vadd.f32 %v2814, %v2846
        %v2848 = vand.u32 %v2688, 4294901760
        %2849 = vmatmul.f32.gmra.mxu0 %v2848
        %v2850 = vpop.f32.mrf.mxu0
        %v2851 = vadd.f32 %v2820, %v2850
        %2852 = vdwg.mxu0
        %2853 = vmatpush.msra.mxu0 0.0
        %2854 = vmatpush.msra.mxu0 0.0
        %2855 = vmatpush.msra.mxu0 0.0
        %2856 = vmatpush.msra.mxu0 0.0
        %2857 = vmatpush.msra.mxu0 0.0
        %2858 = vmatpush.msra.mxu0 0.0
        %2859 = vmatpush.msra.mxu0 0.0
        %2860 = vmatpush.msra.mxu0 0.0
        %2861 = vmatpush.msra.mxu0 0.0
        %2862 = vmatpush.msra.mxu0 0.0
        %2863 = vmatpush.msra.mxu0 0.0
        %2864 = vmatpush.msra.mxu0 0.0
        %2865 = vmatpush.msra.mxu0 0.0
        %2866 = vmatpush.msra.mxu0 0.0
        %v2867 = vand.u32 %v581, 4294901760
        %2868 = vmatpush.msra.mxu0 %v2867
        %v2869 = vand.u32 %v580, 4294901760
        %2870 = vmatpush.msra.mxu0 %v2869
        %v2871 = vand.u32 %v2685, 4294901760
        %2872 = vmatmul.f32.gmra.mxu0 %v2871
        %v2873 = vpop.f32.mrf.mxu0
        %v2874 = vadd.f32 %v2847, %v2873
        %v2875 = vand.u32 %v2688, 4294901760
        %2876 = vmatmul.f32.gmra.mxu0 %v2875
        %v2877 = vpop.f32.mrf.mxu0
        %v2878 = vadd.f32 %v2851, %v2877
        %2879 = vdwg.mxu0
        %v2880 = vld [vmem:[#allocation13] sm:$0xff]
        %v2881 = vld [vmem:[#allocation13 + $0x8] sm:$0xff]
        %v2882 = vld [vmem:[#allocation13 + $0x10] sm:$0xff]
        %v2883 = vld [vmem:[#allocation13 + $0x18] sm:$0xff]
        %v2884 = vld [vmem:[#allocation13 + $0x20] sm:$0xff]
        %v2885 = vld [vmem:[#allocation13 + $0x28] sm:$0xff]
        %v2886 = vld [vmem:[#allocation13 + $0x30] sm:$0xff]
        %v2887 = vld [vmem:[#allocation13 + $0x38] sm:$0xff]
        %v2888 = vld [vmem:[#allocation13 + $0x40] sm:$0xff]
        %v2889 = vld [vmem:[#allocation13 + $0x48] sm:$0xff]
        %v2890 = vld [vmem:[#allocation13 + $0x50] sm:$0xff]
        %v2891 = vld [vmem:[#allocation13 + $0x58] sm:$0xff]
        %v2892 = vld [vmem:[#allocation13 + $0x60] sm:$0xff]
        %v2893 = vld [vmem:[#allocation13 + $0x68] sm:$0xff]
        %v2894 = vld [vmem:[#allocation13 + $0x70] sm:$0xff]
        %v2895 = vld [vmem:[#allocation13 + $0x78] sm:$0xff]
        %v2896 = vld [vmem:[%s8] sm:$0x1]
        %v2898 = vperm.slane %v2896, 0
        %v2900 = vand.u32 %v2895, 4294901760
        %2901 = vmatpush.xpose.msra.mxu0 %v2900
        %v2902 = vand.u32 %v2894, 4294901760
        %2903 = vmatpush.xpose.msra.mxu0 %v2902
        %v2904 = vand.u32 %v2893, 4294901760
        %2905 = vmatpush.xpose.msra.mxu0 %v2904
        %v2906 = vand.u32 %v2892, 4294901760
        %2907 = vmatpush.xpose.msra.mxu0 %v2906
        %v2908 = vand.u32 %v2891, 4294901760
        %2909 = vmatpush.xpose.msra.mxu0 %v2908
        %v2910 = vand.u32 %v2890, 4294901760
        %2911 = vmatpush.xpose.msra.mxu0 %v2910
        %v2912 = vand.u32 %v2889, 4294901760
        %2913 = vmatpush.xpose.msra.mxu0 %v2912
        %v2914 = vand.u32 %v2888, 4294901760
        %2915 = vmatpush.xpose.msra.mxu0 %v2914
        %v2916 = vand.u32 %v2887, 4294901760
        %2917 = vmatpush.xpose.msra.mxu0 %v2916
        %v2918 = vand.u32 %v2886, 4294901760
        %2919 = vmatpush.xpose.msra.mxu0 %v2918
        %v2920 = vand.u32 %v2885, 4294901760
        %2921 = vmatpush.xpose.msra.mxu0 %v2920
        %v2922 = vand.u32 %v2884, 4294901760
        %2923 = vmatpush.xpose.msra.mxu0 %v2922
        %v2924 = vand.u32 %v2883, 4294901760
        %2925 = vmatpush.xpose.msra.mxu0 %v2924
        %v2926 = vand.u32 %v2882, 4294901760
        %2927 = vmatpush.xpose.msra.mxu0 %v2926
        %v2928 = vand.u32 %v2881, 4294901760
        %2929 = vmatpush.xpose.msra.mxu0 %v2928
        %v2930 = vand.u32 %v2880, 4294901760
        %2931 = vmatpush.xpose.msra.mxu0 %v2930
        %v2932 = vand.u32 %v2286, 4294901760
        %v2933 = vsub.f32 %v2286, %v2932
        %v2934 = vand.u32 %v2933, 4294901760
        %v2935 = vsub.f32 %v2933, %v2934
        %v2936 = vand.u32 %v2935, 4294901760
        %2937 = vmatmul.f32.gmra.mxu0 %v2936
        %v2938 = vpop.f32.mrf.mxu0
        %v2939 = vadd.f32 %v2898, %v2938
        %v2940 = vand.u32 %v2290, 4294901760
        %v2941 = vsub.f32 %v2290, %v2940
        %v2942 = vand.u32 %v2941, 4294901760
        %v2943 = vsub.f32 %v2941, %v2942
        %v2944 = vand.u32 %v2943, 4294901760
        %2945 = vmatmul.f32.gmra.mxu0 %v2944
        %v2946 = vpop.f32.mrf.mxu0
        %v2947 = vadd.f32 %v2898, %v2946
        %v2948 = vand.u32 %v2482, 4294901760
        %v2949 = vsub.f32 %v2482, %v2948
        %v2950 = vand.u32 %v2949, 4294901760
        %v2951 = vsub.f32 %v2949, %v2950
        %v2952 = vand.u32 %v2951, 4294901760
        %2953 = vmatmul.f32.gmra.mxu0 %v2952
        %v2954 = vpop.f32.mrf.mxu0
        %v2955 = vadd.f32 %v2898, %v2954
        %v2956 = vand.u32 %v2486, 4294901760
        %v2957 = vsub.f32 %v2486, %v2956
        %v2958 = vand.u32 %v2957, 4294901760
        %v2959 = vsub.f32 %v2957, %v2958
        %v2960 = vand.u32 %v2959, 4294901760
        %2961 = vmatmul.f32.gmra.mxu0 %v2960
        %v2962 = vpop.f32.mrf.mxu0
        %v2963 = vadd.f32 %v2898, %v2962
        %v2964 = vand.u32 %v2678, 4294901760
        %v2965 = vsub.f32 %v2678, %v2964
        %v2966 = vand.u32 %v2965, 4294901760
        %v2967 = vsub.f32 %v2965, %v2966
        %v2968 = vand.u32 %v2967, 4294901760
        %2969 = vmatmul.f32.gmra.mxu0 %v2968
        %v2970 = vpop.f32.mrf.mxu0
        %v2971 = vadd.f32 %v2898, %v2970
        %v2972 = vand.u32 %v2682, 4294901760
        %v2973 = vsub.f32 %v2682, %v2972
        %v2974 = vand.u32 %v2973, 4294901760
        %v2975 = vsub.f32 %v2973, %v2974
        %v2976 = vand.u32 %v2975, 4294901760
        %2977 = vmatmul.f32.gmra.mxu0 %v2976
        %v2978 = vpop.f32.mrf.mxu0
        %v2979 = vadd.f32 %v2898, %v2978
        %v2980 = vand.u32 %v2874, 4294901760
        %v2981 = vsub.f32 %v2874, %v2980
        %v2982 = vand.u32 %v2981, 4294901760
        %v2983 = vsub.f32 %v2981, %v2982
        %v2984 = vand.u32 %v2983, 4294901760
        %2985 = vmatmul.f32.gmra.mxu0 %v2984
        %v2986 = vpop.f32.mrf.mxu0
        %v2987 = vadd.f32 %v2898, %v2986
        %v2988 = vand.u32 %v2878, 4294901760
        %v2989 = vsub.f32 %v2878, %v2988
        %v2990 = vand.u32 %v2989, 4294901760
        %v2991 = vsub.f32 %v2989, %v2990
        %v2992 = vand.u32 %v2991, 4294901760
        %2993 = vmatmul.f32.gmra.mxu0 %v2992
        %v2994 = vpop.f32.mrf.mxu0
        %v2995 = vadd.f32 %v2898, %v2994
        %2996 = vdwg.mxu0
        %v2997 = vand.u32 %v2895, 4294901760
        %v2998 = vsub.f32 %v2895, %v2997
        %v2999 = vand.u32 %v2998, 4294901760
        %v3000 = vsub.f32 %v2998, %v2999
        %v3001 = vand.u32 %v3000, 4294901760
        %3002 = vmatpush.xpose.msra.mxu0 %v3001
        %v3003 = vand.u32 %v2894, 4294901760
        %v3004 = vsub.f32 %v2894, %v3003
        %v3005 = vand.u32 %v3004, 4294901760
        %v3006 = vsub.f32 %v3004, %v3005
        %v3007 = vand.u32 %v3006, 4294901760
        %3008 = vmatpush.xpose.msra.mxu0 %v3007
        %v3009 = vand.u32 %v2893, 4294901760
        %v3010 = vsub.f32 %v2893, %v3009
        %v3011 = vand.u32 %v3010, 4294901760
        %v3012 = vsub.f32 %v3010, %v3011
        %v3013 = vand.u32 %v3012, 4294901760
        %3014 = vmatpush.xpose.msra.mxu0 %v3013
        %v3015 = vand.u32 %v2892, 4294901760
        %v3016 = vsub.f32 %v2892, %v3015
        %v3017 = vand.u32 %v3016, 4294901760
        %v3018 = vsub.f32 %v3016, %v3017
        %v3019 = vand.u32 %v3018, 4294901760
        %3020 = vmatpush.xpose.msra.mxu0 %v3019
        %v3021 = vand.u32 %v2891, 4294901760
        %v3022 = vsub.f32 %v2891, %v3021
        %v3023 = vand.u32 %v3022, 4294901760
        %v3024 = vsub.f32 %v3022, %v3023
        %v3025 = vand.u32 %v3024, 4294901760
        %3026 = vmatpush.xpose.msra.mxu0 %v3025
        %v3027 = vand.u32 %v2890, 4294901760
        %v3028 = vsub.f32 %v2890, %v3027
        %v3029 = vand.u32 %v3028, 4294901760
        %v3030 = vsub.f32 %v3028, %v3029
        %v3031 = vand.u32 %v3030, 4294901760
        %3032 = vmatpush.xpose.msra.mxu0 %v3031
        %v3033 = vand.u32 %v2889, 4294901760
        %v3034 = vsub.f32 %v2889, %v3033
        %v3035 = vand.u32 %v3034, 4294901760
        %v3036 = vsub.f32 %v3034, %v3035
        %v3037 = vand.u32 %v3036, 4294901760
        %3038 = vmatpush.xpose.msra.mxu0 %v3037
        %v3039 = vand.u32 %v2888, 4294901760
        %v3040 = vsub.f32 %v2888, %v3039
        %v3041 = vand.u32 %v3040, 4294901760
        %v3042 = vsub.f32 %v3040, %v3041
        %v3043 = vand.u32 %v3042, 4294901760
        %3044 = vmatpush.xpose.msra.mxu0 %v3043
        %v3045 = vand.u32 %v2887, 4294901760
        %v3046 = vsub.f32 %v2887, %v3045
        %v3047 = vand.u32 %v3046, 4294901760
        %v3048 = vsub.f32 %v3046, %v3047
        %v3049 = vand.u32 %v3048, 4294901760
        %3050 = vmatpush.xpose.msra.mxu0 %v3049
        %v3051 = vand.u32 %v2886, 4294901760
        %v3052 = vsub.f32 %v2886, %v3051
        %v3053 = vand.u32 %v3052, 4294901760
        %v3054 = vsub.f32 %v3052, %v3053
        %v3055 = vand.u32 %v3054, 4294901760
        %3056 = vmatpush.xpose.msra.mxu0 %v3055
        %v3057 = vand.u32 %v2885, 4294901760
        %v3058 = vsub.f32 %v2885, %v3057
        %v3059 = vand.u32 %v3058, 4294901760
        %v3060 = vsub.f32 %v3058, %v3059
        %v3061 = vand.u32 %v3060, 4294901760
        %3062 = vmatpush.xpose.msra.mxu0 %v3061
        %v3063 = vand.u32 %v2884, 4294901760
        %v3064 = vsub.f32 %v2884, %v3063
        %v3065 = vand.u32 %v3064, 4294901760
        %v3066 = vsub.f32 %v3064, %v3065
        %v3067 = vand.u32 %v3066, 4294901760
        %3068 = vmatpush.xpose.msra.mxu0 %v3067
        %v3069 = vand.u32 %v2883, 4294901760
        %v3070 = vsub.f32 %v2883, %v3069
        %v3071 = vand.u32 %v3070, 4294901760
        %v3072 = vsub.f32 %v3070, %v3071
        %v3073 = vand.u32 %v3072, 4294901760
        %3074 = vmatpush.xpose.msra.mxu0 %v3073
        %v3075 = vand.u32 %v2882, 4294901760
        %v3076 = vsub.f32 %v2882, %v3075
        %v3077 = vand.u32 %v3076, 4294901760
        %v3078 = vsub.f32 %v3076, %v3077
        %v3079 = vand.u32 %v3078, 4294901760
        %3080 = vmatpush.xpose.msra.mxu0 %v3079
        %v3081 = vand.u32 %v2881, 4294901760
        %v3082 = vsub.f32 %v2881, %v3081
        %v3083 = vand.u32 %v3082, 4294901760
        %v3084 = vsub.f32 %v3082, %v3083
        %v3085 = vand.u32 %v3084, 4294901760
        %3086 = vmatpush.xpose.msra.mxu0 %v3085
        %v3087 = vand.u32 %v2880, 4294901760
        %v3088 = vsub.f32 %v2880, %v3087
        %v3089 = vand.u32 %v3088, 4294901760
        %v3090 = vsub.f32 %v3088, %v3089
        %v3091 = vand.u32 %v3090, 4294901760
        %3092 = vmatpush.xpose.msra.mxu0 %v3091
        %v3093 = vand.u32 %v2286, 4294901760
        %3094 = vmatmul.f32.gmra.mxu0 %v3093
        %v3095 = vpop.f32.mrf.mxu0
        %v3096 = vadd.f32 %v2939, %v3095
        %v3097 = vand.u32 %v2290, 4294901760
        %3098 = vmatmul.f32.gmra.mxu0 %v3097
        %v3099 = vpop.f32.mrf.mxu0
        %v3100 = vadd.f32 %v2947, %v3099
        %v3101 = vand.u32 %v2482, 4294901760
        %3102 = vmatmul.f32.gmra.mxu0 %v3101
        %v3103 = vpop.f32.mrf.mxu0
        %v3104 = vadd.f32 %v2955, %v3103
        %v3105 = vand.u32 %v2486, 4294901760
        %3106 = vmatmul.f32.gmra.mxu0 %v3105
        %v3107 = vpop.f32.mrf.mxu0
        %v3108 = vadd.f32 %v2963, %v3107
        %v3109 = vand.u32 %v2678, 4294901760
        %3110 = vmatmul.f32.gmra.mxu0 %v3109
        %v3111 = vpop.f32.mrf.mxu0
        %v3112 = vadd.f32 %v2971, %v3111
        %v3113 = vand.u32 %v2682, 4294901760
        %3114 = vmatmul.f32.gmra.mxu0 %v3113
        %v3115 = vpop.f32.mrf.mxu0
        %v3116 = vadd.f32 %v2979, %v3115
        %v3117 = vand.u32 %v2874, 4294901760
        %3118 = vmatmul.f32.gmra.mxu0 %v3117
        %v3119 = vpop.f32.mrf.mxu0
        %v3120 = vadd.f32 %v2987, %v3119
        %v3121 = vand.u32 %v2878, 4294901760
        %3122 = vmatmul.f32.gmra.mxu0 %v3121
        %v3123 = vpop.f32.mrf.mxu0
        %v3124 = vadd.f32 %v2995, %v3123
        %3125 = vdwg.mxu0
        %v3126 = vand.u32 %v2895, 4294901760
        %v3127 = vsub.f32 %v2895, %v3126
        %3128 = vmatpush.xpose.msra.mxu0 %v3127
        %v3129 = vand.u32 %v2894, 4294901760
        %v3130 = vsub.f32 %v2894, %v3129
        %3131 = vmatpush.xpose.msra.mxu0 %v3130
        %v3132 = vand.u32 %v2893, 4294901760
        %v3133 = vsub.f32 %v2893, %v3132
        %3134 = vmatpush.xpose.msra.mxu0 %v3133
        %v3135 = vand.u32 %v2892, 4294901760
        %v3136 = vsub.f32 %v2892, %v3135
        %3137 = vmatpush.xpose.msra.mxu0 %v3136
        %v3138 = vand.u32 %v2891, 4294901760
        %v3139 = vsub.f32 %v2891, %v3138
        %3140 = vmatpush.xpose.msra.mxu0 %v3139
        %v3141 = vand.u32 %v2890, 4294901760
        %v3142 = vsub.f32 %v2890, %v3141
        %3143 = vmatpush.xpose.msra.mxu0 %v3142
        %v3144 = vand.u32 %v2889, 4294901760
        %v3145 = vsub.f32 %v2889, %v3144
        %3146 = vmatpush.xpose.msra.mxu0 %v3145
        %v3147 = vand.u32 %v2888, 4294901760
        %v3148 = vsub.f32 %v2888, %v3147
        %3149 = vmatpush.xpose.msra.mxu0 %v3148
        %v3150 = vand.u32 %v2887, 4294901760
        %v3151 = vsub.f32 %v2887, %v3150
        %3152 = vmatpush.xpose.msra.mxu0 %v3151
        %v3153 = vand.u32 %v2886, 4294901760
        %v3154 = vsub.f32 %v2886, %v3153
        %3155 = vmatpush.xpose.msra.mxu0 %v3154
        %v3156 = vand.u32 %v2885, 4294901760
        %v3157 = vsub.f32 %v2885, %v3156
        %3158 = vmatpush.xpose.msra.mxu0 %v3157
        %v3159 = vand.u32 %v2884, 4294901760
        %v3160 = vsub.f32 %v2884, %v3159
        %3161 = vmatpush.xpose.msra.mxu0 %v3160
        %v3162 = vand.u32 %v2883, 4294901760
        %v3163 = vsub.f32 %v2883, %v3162
        %3164 = vmatpush.xpose.msra.mxu0 %v3163
        %v3165 = vand.u32 %v2882, 4294901760
        %v3166 = vsub.f32 %v2882, %v3165
        %3167 = vmatpush.xpose.msra.mxu0 %v3166
        %v3168 = vand.u32 %v2881, 4294901760
        %v3169 = vsub.f32 %v2881, %v3168
        %3170 = vmatpush.xpose.msra.mxu0 %v3169
        %v3171 = vand.u32 %v2880, 4294901760
        %v3172 = vsub.f32 %v2880, %v3171
        %3173 = vmatpush.xpose.msra.mxu0 %v3172
        %v3174 = vand.u32 %v2286, 4294901760
        %v3175 = vsub.f32 %v2286, %v3174
        %3176 = vmatmul.f32.gmra.mxu0 %v3175
        %v3177 = vpop.f32.mrf.mxu0
        %v3178 = vadd.f32 %v3096, %v3177
        %v3179 = vand.u32 %v2290, 4294901760
        %v3180 = vsub.f32 %v2290, %v3179
        %3181 = vmatmul.f32.gmra.mxu0 %v3180
        %v3182 = vpop.f32.mrf.mxu0
        %v3183 = vadd.f32 %v3100, %v3182
        %v3184 = vand.u32 %v2482, 4294901760
        %v3185 = vsub.f32 %v2482, %v3184
        %3186 = vmatmul.f32.gmra.mxu0 %v3185
        %v3187 = vpop.f32.mrf.mxu0
        %v3188 = vadd.f32 %v3104, %v3187
        %v3189 = vand.u32 %v2486, 4294901760
        %v3190 = vsub.f32 %v2486, %v3189
        %3191 = vmatmul.f32.gmra.mxu0 %v3190
        %v3192 = vpop.f32.mrf.mxu0
        %v3193 = vadd.f32 %v3108, %v3192
        %v3194 = vand.u32 %v2678, 4294901760
        %v3195 = vsub.f32 %v2678, %v3194
        %3196 = vmatmul.f32.gmra.mxu0 %v3195
        %v3197 = vpop.f32.mrf.mxu0
        %v3198 = vadd.f32 %v3112, %v3197
        %v3199 = vand.u32 %v2682, 4294901760
        %v3200 = vsub.f32 %v2682, %v3199
        %3201 = vmatmul.f32.gmra.mxu0 %v3200
        %v3202 = vpop.f32.mrf.mxu0
        %v3203 = vadd.f32 %v3116, %v3202
        %v3204 = vand.u32 %v2874, 4294901760
        %v3205 = vsub.f32 %v2874, %v3204
        %3206 = vmatmul.f32.gmra.mxu0 %v3205
        %v3207 = vpop.f32.mrf.mxu0
        %v3208 = vadd.f32 %v3120, %v3207
        %v3209 = vand.u32 %v2878, 4294901760
        %v3210 = vsub.f32 %v2878, %v3209
        %3211 = vmatmul.f32.gmra.mxu0 %v3210
        %v3212 = vpop.f32.mrf.mxu0
        %v3213 = vadd.f32 %v3124, %v3212
        %3214 = vdwg.mxu0
        %v3215 = vand.u32 %v2895, 4294901760
        %3216 = vmatpush.xpose.msra.mxu0 %v3215
        %v3217 = vand.u32 %v2894, 4294901760
        %3218 = vmatpush.xpose.msra.mxu0 %v3217
        %v3219 = vand.u32 %v2893, 4294901760
        %3220 = vmatpush.xpose.msra.mxu0 %v3219
        %v3221 = vand.u32 %v2892, 4294901760
        %3222 = vmatpush.xpose.msra.mxu0 %v3221
        %v3223 = vand.u32 %v2891, 4294901760
        %3224 = vmatpush.xpose.msra.mxu0 %v3223
        %v3225 = vand.u32 %v2890, 4294901760
        %3226 = vmatpush.xpose.msra.mxu0 %v3225
        %v3227 = vand.u32 %v2889, 4294901760
        %3228 = vmatpush.xpose.msra.mxu0 %v3227
        %v3229 = vand.u32 %v2888, 4294901760
        %3230 = vmatpush.xpose.msra.mxu0 %v3229
        %v3231 = vand.u32 %v2887, 4294901760
        %3232 = vmatpush.xpose.msra.mxu0 %v3231
        %v3233 = vand.u32 %v2886, 4294901760
        %3234 = vmatpush.xpose.msra.mxu0 %v3233
        %v3235 = vand.u32 %v2885, 4294901760
        %3236 = vmatpush.xpose.msra.mxu0 %v3235
        %v3237 = vand.u32 %v2884, 4294901760
        %3238 = vmatpush.xpose.msra.mxu0 %v3237
        %v3239 = vand.u32 %v2883, 4294901760
        %3240 = vmatpush.xpose.msra.mxu0 %v3239
        %v3241 = vand.u32 %v2882, 4294901760
        %3242 = vmatpush.xpose.msra.mxu0 %v3241
        %v3243 = vand.u32 %v2881, 4294901760
        %3244 = vmatpush.xpose.msra.mxu0 %v3243
        %v3245 = vand.u32 %v2880, 4294901760
        %3246 = vmatpush.xpose.msra.mxu0 %v3245
        %v3247 = vand.u32 %v2286, 4294901760
        %v3248 = vsub.f32 %v2286, %v3247
        %v3249 = vand.u32 %v3248, 4294901760
        %3250 = vmatmul.f32.gmra.mxu0 %v3249
        %v3251 = vpop.f32.mrf.mxu0
        %v3252 = vadd.f32 %v3178, %v3251
        %v3253 = vand.u32 %v2290, 4294901760
        %v3254 = vsub.f32 %v2290, %v3253
        %v3255 = vand.u32 %v3254, 4294901760
        %3256 = vmatmul.f32.gmra.mxu0 %v3255
        %v3257 = vpop.f32.mrf.mxu0
        %v3258 = vadd.f32 %v3183, %v3257
        %v3259 = vand.u32 %v2482, 4294901760
        %v3260 = vsub.f32 %v2482, %v3259
        %v3261 = vand.u32 %v3260, 4294901760
        %3262 = vmatmul.f32.gmra.mxu0 %v3261
        %v3263 = vpop.f32.mrf.mxu0
        %v3264 = vadd.f32 %v3188, %v3263
        %v3265 = vand.u32 %v2486, 4294901760
        %v3266 = vsub.f32 %v2486, %v3265
        %v3267 = vand.u32 %v3266, 4294901760
        %3268 = vmatmul.f32.gmra.mxu0 %v3267
        %v3269 = vpop.f32.mrf.mxu0
        %v3270 = vadd.f32 %v3193, %v3269
        %v3271 = vand.u32 %v2678, 4294901760
        %v3272 = vsub.f32 %v2678, %v3271
        %v3273 = vand.u32 %v3272, 4294901760
        %3274 = vmatmul.f32.gmra.mxu0 %v3273
        %v3275 = vpop.f32.mrf.mxu0
        %v3276 = vadd.f32 %v3198, %v3275
        %v3277 = vand.u32 %v2682, 4294901760
        %v3278 = vsub.f32 %v2682, %v3277
        %v3279 = vand.u32 %v3278, 4294901760
        %3280 = vmatmul.f32.gmra.mxu0 %v3279
        %v3281 = vpop.f32.mrf.mxu0
        %v3282 = vadd.f32 %v3203, %v3281
        %v3283 = vand.u32 %v2874, 4294901760
        %v3284 = vsub.f32 %v2874, %v3283
        %v3285 = vand.u32 %v3284, 4294901760
        %3286 = vmatmul.f32.gmra.mxu0 %v3285
        %v3287 = vpop.f32.mrf.mxu0
        %v3288 = vadd.f32 %v3208, %v3287
        %v3289 = vand.u32 %v2878, 4294901760
        %v3290 = vsub.f32 %v2878, %v3289
        %v3291 = vand.u32 %v3290, 4294901760
        %3292 = vmatmul.f32.gmra.mxu0 %v3291
        %v3293 = vpop.f32.mrf.mxu0
        %v3294 = vadd.f32 %v3213, %v3293
        %3295 = vdwg.mxu0
        %v3296 = vand.u32 %v2895, 4294901760
        %v3297 = vsub.f32 %v2895, %v3296
        %v3298 = vand.u32 %v3297, 4294901760
        %3299 = vmatpush.xpose.msra.mxu0 %v3298
        %v3300 = vand.u32 %v2894, 4294901760
        %v3301 = vsub.f32 %v2894, %v3300
        %v3302 = vand.u32 %v3301, 4294901760
        %3303 = vmatpush.xpose.msra.mxu0 %v3302
        %v3304 = vand.u32 %v2893, 4294901760
        %v3305 = vsub.f32 %v2893, %v3304
        %v3306 = vand.u32 %v3305, 4294901760
        %3307 = vmatpush.xpose.msra.mxu0 %v3306
        %v3308 = vand.u32 %v2892, 4294901760
        %v3309 = vsub.f32 %v2892, %v3308
        %v3310 = vand.u32 %v3309, 4294901760
        %3311 = vmatpush.xpose.msra.mxu0 %v3310
        %v3312 = vand.u32 %v2891, 4294901760
        %v3313 = vsub.f32 %v2891, %v3312
        %v3314 = vand.u32 %v3313, 4294901760
        %3315 = vmatpush.xpose.msra.mxu0 %v3314
        %v3316 = vand.u32 %v2890, 4294901760
        %v3317 = vsub.f32 %v2890, %v3316
        %v3318 = vand.u32 %v3317, 4294901760
        %3319 = vmatpush.xpose.msra.mxu0 %v3318
        %v3320 = vand.u32 %v2889, 4294901760
        %v3321 = vsub.f32 %v2889, %v3320
        %v3322 = vand.u32 %v3321, 4294901760
        %3323 = vmatpush.xpose.msra.mxu0 %v3322
        %v3324 = vand.u32 %v2888, 4294901760
        %v3325 = vsub.f32 %v2888, %v3324
        %v3326 = vand.u32 %v3325, 4294901760
        %3327 = vmatpush.xpose.msra.mxu0 %v3326
        %v3328 = vand.u32 %v2887, 4294901760
        %v3329 = vsub.f32 %v2887, %v3328
        %v3330 = vand.u32 %v3329, 4294901760
        %3331 = vmatpush.xpose.msra.mxu0 %v3330
        %v3332 = vand.u32 %v2886, 4294901760
        %v3333 = vsub.f32 %v2886, %v3332
        %v3334 = vand.u32 %v3333, 4294901760
        %3335 = vmatpush.xpose.msra.mxu0 %v3334
        %v3336 = vand.u32 %v2885, 4294901760
        %v3337 = vsub.f32 %v2885, %v3336
        %v3338 = vand.u32 %v3337, 4294901760
        %3339 = vmatpush.xpose.msra.mxu0 %v3338
        %v3340 = vand.u32 %v2884, 4294901760
        %v3341 = vsub.f32 %v2884, %v3340
        %v3342 = vand.u32 %v3341, 4294901760
        %3343 = vmatpush.xpose.msra.mxu0 %v3342
        %v3344 = vand.u32 %v2883, 4294901760
        %v3345 = vsub.f32 %v2883, %v3344
        %v3346 = vand.u32 %v3345, 4294901760
        %3347 = vmatpush.xpose.msra.mxu0 %v3346
        %v3348 = vand.u32 %v2882, 4294901760
        %v3349 = vsub.f32 %v2882, %v3348
        %v3350 = vand.u32 %v3349, 4294901760
        %3351 = vmatpush.xpose.msra.mxu0 %v3350
        %v3352 = vand.u32 %v2881, 4294901760
        %v3353 = vsub.f32 %v2881, %v3352
        %v3354 = vand.u32 %v3353, 4294901760
        %3355 = vmatpush.xpose.msra.mxu0 %v3354
        %v3356 = vand.u32 %v2880, 4294901760
        %v3357 = vsub.f32 %v2880, %v3356
        %v3358 = vand.u32 %v3357, 4294901760
        %3359 = vmatpush.xpose.msra.mxu0 %v3358
        %v3360 = vand.u32 %v2286, 4294901760
        %3361 = vmatmul.f32.gmra.mxu0 %v3360
        %v3362 = vpop.f32.mrf.mxu0
        %v3363 = vadd.f32 %v3252, %v3362
        %v3364 = vand.u32 %v2290, 4294901760
        %3365 = vmatmul.f32.gmra.mxu0 %v3364
        %v3366 = vpop.f32.mrf.mxu0
        %v3367 = vadd.f32 %v3258, %v3366
        %v3368 = vand.u32 %v2482, 4294901760
        %3369 = vmatmul.f32.gmra.mxu0 %v3368
        %v3370 = vpop.f32.mrf.mxu0
        %v3371 = vadd.f32 %v3264, %v3370
        %v3372 = vand.u32 %v2486, 4294901760
        %3373 = vmatmul.f32.gmra.mxu0 %v3372
        %v3374 = vpop.f32.mrf.mxu0
        %v3375 = vadd.f32 %v3270, %v3374
        %v3376 = vand.u32 %v2678, 4294901760
        %3377 = vmatmul.f32.gmra.mxu0 %v3376
        %v3378 = vpop.f32.mrf.mxu0
        %v3379 = vadd.f32 %v3276, %v3378
        %v3380 = vand.u32 %v2682, 4294901760
        %3381 = vmatmul.f32.gmra.mxu0 %v3380
        %v3382 = vpop.f32.mrf.mxu0
        %v3383 = vadd.f32 %v3282, %v3382
        %v3384 = vand.u32 %v2874, 4294901760
        %3385 = vmatmul.f32.gmra.mxu0 %v3384
        %v3386 = vpop.f32.mrf.mxu0
        %v3387 = vadd.f32 %v3288, %v3386
        %v3388 = vand.u32 %v2878, 4294901760
        %3389 = vmatmul.f32.gmra.mxu0 %v3388
        %v3390 = vpop.f32.mrf.mxu0
        %v3391 = vadd.f32 %v3294, %v3390
        %3392 = vdwg.mxu0
        %v3393 = vand.u32 %v2895, 4294901760
        %3394 = vmatpush.xpose.msra.mxu0 %v3393
        %v3395 = vand.u32 %v2894, 4294901760
        %3396 = vmatpush.xpose.msra.mxu0 %v3395
        %v3397 = vand.u32 %v2893, 4294901760
        %3398 = vmatpush.xpose.msra.mxu0 %v3397
        %v3399 = vand.u32 %v2892, 4294901760
        %3400 = vmatpush.xpose.msra.mxu0 %v3399
        %v3401 = vand.u32 %v2891, 4294901760
        %3402 = vmatpush.xpose.msra.mxu0 %v3401
        %v3403 = vand.u32 %v2890, 4294901760
        %3404 = vmatpush.xpose.msra.mxu0 %v3403
        %v3405 = vand.u32 %v2889, 4294901760
        %3406 = vmatpush.xpose.msra.mxu0 %v3405
        %v3407 = vand.u32 %v2888, 4294901760
        %3408 = vmatpush.xpose.msra.mxu0 %v3407
        %v3409 = vand.u32 %v2887, 4294901760
        %3410 = vmatpush.xpose.msra.mxu0 %v3409
        %v3411 = vand.u32 %v2886, 4294901760
        %3412 = vmatpush.xpose.msra.mxu0 %v3411
        %v3413 = vand.u32 %v2885, 4294901760
        %3414 = vmatpush.xpose.msra.mxu0 %v3413
        %v3415 = vand.u32 %v2884, 4294901760
        %3416 = vmatpush.xpose.msra.mxu0 %v3415
        %v3417 = vand.u32 %v2883, 4294901760
        %3418 = vmatpush.xpose.msra.mxu0 %v3417
        %v3419 = vand.u32 %v2882, 4294901760
        %3420 = vmatpush.xpose.msra.mxu0 %v3419
        %v3421 = vand.u32 %v2881, 4294901760
        %3422 = vmatpush.xpose.msra.mxu0 %v3421
        %v3423 = vand.u32 %v2880, 4294901760
        %3424 = vmatpush.xpose.msra.mxu0 %v3423
        %v3425 = vand.u32 %v2286, 4294901760
        %3426 = vmatmul.f32.gmra.mxu0 %v3425
        %v3427 = vpop.f32.mrf.mxu0
        %v3428 = vadd.f32 %v3363, %v3427
        %v3429 = vand.u32 %v2290, 4294901760
        %3430 = vmatmul.f32.gmra.mxu0 %v3429
        %v3431 = vpop.f32.mrf.mxu0
        %v3432 = vadd.f32 %v3367, %v3431
        %v3433 = vand.u32 %v2482, 4294901760
        %3434 = vmatmul.f32.gmra.mxu0 %v3433
        %v3435 = vpop.f32.mrf.mxu0
        %v3436 = vadd.f32 %v3371, %v3435
        %v3437 = vand.u32 %v2486, 4294901760
        %3438 = vmatmul.f32.gmra.mxu0 %v3437
        %v3439 = vpop.f32.mrf.mxu0
        %v3440 = vadd.f32 %v3375, %v3439
        %v3441 = vand.u32 %v2678, 4294901760
        %3442 = vmatmul.f32.gmra.mxu0 %v3441
        %v3443 = vpop.f32.mrf.mxu0
        %v3444 = vadd.f32 %v3379, %v3443
        %v3445 = vand.u32 %v2682, 4294901760
        %3446 = vmatmul.f32.gmra.mxu0 %v3445
        %v3447 = vpop.f32.mrf.mxu0
        %v3448 = vadd.f32 %v3383, %v3447
        %v3449 = vand.u32 %v2874, 4294901760
        %3450 = vmatmul.f32.gmra.mxu0 %v3449
        %v3451 = vpop.f32.mrf.mxu0
        %v3452 = vadd.f32 %v3387, %v3451
        %v3453 = vand.u32 %v2878, 4294901760
        %3454 = vmatmul.f32.gmra.mxu0 %v3453
        %v3455 = vpop.f32.mrf.mxu0
        %v3456 = vadd.f32 %v3391, %v3455
        %3457 = vdwg.mxu0
        %v3458 = vmax.f32 %v3428, 0.0
        %v3459 = vmax.f32 %v3432, 0.0
        %v3460 = vmax.f32 %v3436, 0.0
        %v3461 = vmax.f32 %v3440, 0.0
        %v3462 = vmax.f32 %v3444, 0.0
        %v3463 = vmax.f32 %v3448, 0.0
        %v3464 = vmax.f32 %v3452, 0.0
        %v3465 = vmax.f32 %v3456, 0.0
        %v3466 = vadd.f32 %v3458, %v2286
        %v3467 = vadd.f32 %v3459, %v2290
        %v3468 = vadd.f32 %v3460, %v2482
        %v3469 = vadd.f32 %v3461, %v2486
        %v3470 = vadd.f32 %v3462, %v2678
        %v3471 = vadd.f32 %v3463, %v2682
        %v3472 = vadd.f32 %v3464, %v2874
        %v3473 = vadd.f32 %v3465, %v2878
        %v3474 = vld [vmem:[#allocation14] sm:$0xff]
        %v3475 = vld [vmem:[#allocation14 + $0x8] sm:$0xff]
        %v3476 = vld [vmem:[#allocation14 + $0x10] sm:$0xff]
        %v3477 = vld [vmem:[#allocation14 + $0x18] sm:$0xff]
        %3478 = vmatpush.xpose.msra.mxu0 0.0
        %3479 = vmatpush.xpose.msra.mxu0 0.0
        %3480 = vmatpush.xpose.msra.mxu0 0.0
        %3481 = vmatpush.xpose.msra.mxu0 0.0
        %3482 = vmatpush.xpose.msra.mxu0 0.0
        %3483 = vmatpush.xpose.msra.mxu0 0.0
        %3484 = vmatpush.xpose.msra.mxu0 0.0
        %3485 = vmatpush.xpose.msra.mxu0 0.0
        %3486 = vmatpush.xpose.msra.mxu0 0.0
        %3487 = vmatpush.xpose.msra.mxu0 0.0
        %3488 = vmatpush.xpose.msra.mxu0 0.0
        %3489 = vmatpush.xpose.msra.mxu0 0.0
        %v3490 = vand.u32 %v3477, 4294901760
        %3491 = vmatpush.xpose.msra.mxu0 %v3490
        %v3492 = vand.u32 %v3476, 4294901760
        %3493 = vmatpush.xpose.msra.mxu0 %v3492
        %v3494 = vand.u32 %v3475, 4294901760
        %3495 = vmatpush.xpose.msra.mxu0 %v3494
        %v3496 = vand.u32 %v3474, 4294901760
        %3497 = vmatpush.xpose.msra.mxu0 %v3496
        %v3498 = vand.u32 %v3466, 4294901760
        %v3499 = vsub.f32 %v3466, %v3498
        %v3500 = vand.u32 %v3499, 4294901760
        %v3501 = vsub.f32 %v3499, %v3500
        %v3502 = vand.u32 %v3501, 4294901760
        %3503 = vmatmul.f32.gmra.mxu0 %v3502
        %v3504 = vpop.f32.mrf.mxu0
        %v3505 = vadd.f32 0.0, %v3504
        %v3506 = vand.u32 %v3467, 4294901760
        %v3507 = vsub.f32 %v3467, %v3506
        %v3508 = vand.u32 %v3507, 4294901760
        %v3509 = vsub.f32 %v3507, %v3508
        %v3510 = vand.u32 %v3509, 4294901760
        %3511 = vmatmul.f32.gmra.mxu0 %v3510
        %v3512 = vpop.f32.mrf.mxu0
        %v3513 = vadd.f32 0.0, %v3512
        %v3514 = vand.u32 %v3468, 4294901760
        %v3515 = vsub.f32 %v3468, %v3514
        %v3516 = vand.u32 %v3515, 4294901760
        %v3517 = vsub.f32 %v3515, %v3516
        %v3518 = vand.u32 %v3517, 4294901760
        %3519 = vmatmul.f32.gmra.mxu0 %v3518
        %v3520 = vpop.f32.mrf.mxu0
        %v3521 = vadd.f32 0.0, %v3520
        %v3522 = vand.u32 %v3469, 4294901760
        %v3523 = vsub.f32 %v3469, %v3522
        %v3524 = vand.u32 %v3523, 4294901760
        %v3525 = vsub.f32 %v3523, %v3524
        %v3526 = vand.u32 %v3525, 4294901760
        %3527 = vmatmul.f32.gmra.mxu0 %v3526
        %v3528 = vpop.f32.mrf.mxu0
        %v3529 = vadd.f32 0.0, %v3528
        %v3530 = vand.u32 %v3470, 4294901760
        %v3531 = vsub.f32 %v3470, %v3530
        %v3532 = vand.u32 %v3531, 4294901760
        %v3533 = vsub.f32 %v3531, %v3532
        %v3534 = vand.u32 %v3533, 4294901760
        %3535 = vmatmul.f32.gmra.mxu0 %v3534
        %v3536 = vpop.f32.mrf.mxu0
        %v3537 = vadd.f32 0.0, %v3536
        %v3538 = vand.u32 %v3471, 4294901760
        %v3539 = vsub.f32 %v3471, %v3538
        %v3540 = vand.u32 %v3539, 4294901760
        %v3541 = vsub.f32 %v3539, %v3540
        %v3542 = vand.u32 %v3541, 4294901760
        %3543 = vmatmul.f32.gmra.mxu0 %v3542
        %v3544 = vpop.f32.mrf.mxu0
        %v3545 = vadd.f32 0.0, %v3544
        %v3546 = vand.u32 %v3472, 4294901760
        %v3547 = vsub.f32 %v3472, %v3546
        %v3548 = vand.u32 %v3547, 4294901760
        %v3549 = vsub.f32 %v3547, %v3548
        %v3550 = vand.u32 %v3549, 4294901760
        %3551 = vmatmul.f32.gmra.mxu0 %v3550
        %v3552 = vpop.f32.mrf.mxu0
        %v3553 = vadd.f32 0.0, %v3552
        %v3554 = vand.u32 %v3473, 4294901760
        %v3555 = vsub.f32 %v3473, %v3554
        %v3556 = vand.u32 %v3555, 4294901760
        %v3557 = vsub.f32 %v3555, %v3556
        %v3558 = vand.u32 %v3557, 4294901760
        %3559 = vmatmul.f32.gmra.mxu0 %v3558
        %v3560 = vpop.f32.mrf.mxu0
        %v3561 = vadd.f32 0.0, %v3560
        %3562 = vdwg.mxu0
        %3563 = vmatpush.xpose.msra.mxu0 0.0
        %3564 = vmatpush.xpose.msra.mxu0 0.0
        %3565 = vmatpush.xpose.msra.mxu0 0.0
        %3566 = vmatpush.xpose.msra.mxu0 0.0
        %3567 = vmatpush.xpose.msra.mxu0 0.0
        %3568 = vmatpush.xpose.msra.mxu0 0.0
        %3569 = vmatpush.xpose.msra.mxu0 0.0
        %3570 = vmatpush.xpose.msra.mxu0 0.0
        %3571 = vmatpush.xpose.msra.mxu0 0.0
        %3572 = vmatpush.xpose.msra.mxu0 0.0
        %3573 = vmatpush.xpose.msra.mxu0 0.0
        %3574 = vmatpush.xpose.msra.mxu0 0.0
        %v3575 = vand.u32 %v3477, 4294901760
        %v3576 = vsub.f32 %v3477, %v3575
        %v3577 = vand.u32 %v3576, 4294901760
        %v3578 = vsub.f32 %v3576, %v3577
        %v3579 = vand.u32 %v3578, 4294901760
        %3580 = vmatpush.xpose.msra.mxu0 %v3579
        %v3581 = vand.u32 %v3476, 4294901760
        %v3582 = vsub.f32 %v3476, %v3581
        %v3583 = vand.u32 %v3582, 4294901760
        %v3584 = vsub.f32 %v3582, %v3583
        %v3585 = vand.u32 %v3584, 4294901760
        %3586 = vmatpush.xpose.msra.mxu0 %v3585
        %v3587 = vand.u32 %v3475, 4294901760
        %v3588 = vsub.f32 %v3475, %v3587
        %v3589 = vand.u32 %v3588, 4294901760
        %v3590 = vsub.f32 %v3588, %v3589
        %v3591 = vand.u32 %v3590, 4294901760
        %3592 = vmatpush.xpose.msra.mxu0 %v3591
        %v3593 = vand.u32 %v3474, 4294901760
        %v3594 = vsub.f32 %v3474, %v3593
        %v3595 = vand.u32 %v3594, 4294901760
        %v3596 = vsub.f32 %v3594, %v3595
        %v3597 = vand.u32 %v3596, 4294901760
        %3598 = vmatpush.xpose.msra.mxu0 %v3597
        %v3599 = vand.u32 %v3466, 4294901760
        %3600 = vmatmul.f32.gmra.mxu0 %v3599
        %v3601 = vpop.f32.mrf.mxu0
        %v3602 = vadd.f32 %v3505, %v3601
        %v3603 = vand.u32 %v3467, 4294901760
        %3604 = vmatmul.f32.gmra.mxu0 %v3603
        %v3605 = vpop.f32.mrf.mxu0
        %v3606 = vadd.f32 %v3513, %v3605
        %v3607 = vand.u32 %v3468, 4294901760
        %3608 = vmatmul.f32.gmra.mxu0 %v3607
        %v3609 = vpop.f32.mrf.mxu0
        %v3610 = vadd.f32 %v3521, %v3609
        %v3611 = vand.u32 %v3469, 4294901760
        %3612 = vmatmul.f32.gmra.mxu0 %v3611
        %v3613 = vpop.f32.mrf.mxu0
        %v3614 = vadd.f32 %v3529, %v3613
        %v3615 = vand.u32 %v3470, 4294901760
        %3616 = vmatmul.f32.gmra.mxu0 %v3615
        %v3617 = vpop.f32.mrf.mxu0
        %v3618 = vadd.f32 %v3537, %v3617
        %v3619 = vand.u32 %v3471, 4294901760
        %3620 = vmatmul.f32.gmra.mxu0 %v3619
        %v3621 = vpop.f32.mrf.mxu0
        %v3622 = vadd.f32 %v3545, %v3621
        %v3623 = vand.u32 %v3472, 4294901760
        %3624 = vmatmul.f32.gmra.mxu0 %v3623
        %v3625 = vpop.f32.mrf.mxu0
        %v3626 = vadd.f32 %v3553, %v3625
        %v3627 = vand.u32 %v3473, 4294901760
        %3628 = vmatmul.f32.gmra.mxu0 %v3627
        %v3629 = vpop.f32.mrf.mxu0
        %v3630 = vadd.f32 %v3561, %v3629
        %3631 = vdwg.mxu0
        %3632 = vmatpush.xpose.msra.mxu0 0.0
        %3633 = vmatpush.xpose.msra.mxu0 0.0
        %3634 = vmatpush.xpose.msra.mxu0 0.0
        %3635 = vmatpush.xpose.msra.mxu0 0.0
        %3636 = vmatpush.xpose.msra.mxu0 0.0
        %3637 = vmatpush.xpose.msra.mxu0 0.0
        %3638 = vmatpush.xpose.msra.mxu0 0.0
        %3639 = vmatpush.xpose.msra.mxu0 0.0
        %3640 = vmatpush.xpose.msra.mxu0 0.0
        %3641 = vmatpush.xpose.msra.mxu0 0.0
        %3642 = vmatpush.xpose.msra.mxu0 0.0
        %3643 = vmatpush.xpose.msra.mxu0 0.0
        %v3644 = vand.u32 %v3477, 4294901760
        %v3645 = vsub.f32 %v3477, %v3644
        %3646 = vmatpush.xpose.msra.mxu0 %v3645
        %v3647 = vand.u32 %v3476, 4294901760
        %v3648 = vsub.f32 %v3476, %v3647
        %3649 = vmatpush.xpose.msra.mxu0 %v3648
        %v3650 = vand.u32 %v3475, 4294901760
        %v3651 = vsub.f32 %v3475, %v3650
        %3652 = vmatpush.xpose.msra.mxu0 %v3651
        %v3653 = vand.u32 %v3474, 4294901760
        %v3654 = vsub.f32 %v3474, %v3653
        %3655 = vmatpush.xpose.msra.mxu0 %v3654
        %v3656 = vand.u32 %v3466, 4294901760
        %v3657 = vsub.f32 %v3466, %v3656
        %3658 = vmatmul.f32.gmra.mxu0 %v3657
        %v3659 = vpop.f32.mrf.mxu0
        %v3660 = vadd.f32 %v3602, %v3659
        %v3661 = vand.u32 %v3467, 4294901760
        %v3662 = vsub.f32 %v3467, %v3661
        %3663 = vmatmul.f32.gmra.mxu0 %v3662
        %v3664 = vpop.f32.mrf.mxu0
        %v3665 = vadd.f32 %v3606, %v3664
        %v3666 = vand.u32 %v3468, 4294901760
        %v3667 = vsub.f32 %v3468, %v3666
        %3668 = vmatmul.f32.gmra.mxu0 %v3667
        %v3669 = vpop.f32.mrf.mxu0
        %v3670 = vadd.f32 %v3610, %v3669
        %v3671 = vand.u32 %v3469, 4294901760
        %v3672 = vsub.f32 %v3469, %v3671
        %3673 = vmatmul.f32.gmra.mxu0 %v3672
        %v3674 = vpop.f32.mrf.mxu0
        %v3675 = vadd.f32 %v3614, %v3674
        %v3676 = vand.u32 %v3470, 4294901760
        %v3677 = vsub.f32 %v3470, %v3676
        %3678 = vmatmul.f32.gmra.mxu0 %v3677
        %v3679 = vpop.f32.mrf.mxu0
        %v3680 = vadd.f32 %v3618, %v3679
        %v3681 = vand.u32 %v3471, 4294901760
        %v3682 = vsub.f32 %v3471, %v3681
        %3683 = vmatmul.f32.gmra.mxu0 %v3682
        %v3684 = vpop.f32.mrf.mxu0
        %v3685 = vadd.f32 %v3622, %v3684
        %v3686 = vand.u32 %v3472, 4294901760
        %v3687 = vsub.f32 %v3472, %v3686
        %3688 = vmatmul.f32.gmra.mxu0 %v3687
        %v3689 = vpop.f32.mrf.mxu0
        %v3690 = vadd.f32 %v3626, %v3689
        %v3691 = vand.u32 %v3473, 4294901760
        %v3692 = vsub.f32 %v3473, %v3691
        %3693 = vmatmul.f32.gmra.mxu0 %v3692
        %v3694 = vpop.f32.mrf.mxu0
        %v3695 = vadd.f32 %v3630, %v3694
        %3696 = vdwg.mxu0
        %3697 = vmatpush.xpose.msra.mxu0 0.0
        %3698 = vmatpush.xpose.msra.mxu0 0.0
        %3699 = vmatpush.xpose.msra.mxu0 0.0
        %3700 = vmatpush.xpose.msra.mxu0 0.0
        %3701 = vmatpush.xpose.msra.mxu0 0.0
        %3702 = vmatpush.xpose.msra.mxu0 0.0
        %3703 = vmatpush.xpose.msra.mxu0 0.0
        %3704 = vmatpush.xpose.msra.mxu0 0.0
        %3705 = vmatpush.xpose.msra.mxu0 0.0
        %3706 = vmatpush.xpose.msra.mxu0 0.0
        %3707 = vmatpush.xpose.msra.mxu0 0.0
        %3708 = vmatpush.xpose.msra.mxu0 0.0
        %v3709 = vand.u32 %v3477, 4294901760
        %3710 = vmatpush.xpose.msra.mxu0 %v3709
        %v3711 = vand.u32 %v3476, 4294901760
        %3712 = vmatpush.xpose.msra.mxu0 %v3711
        %v3713 = vand.u32 %v3475, 4294901760
        %3714 = vmatpush.xpose.msra.mxu0 %v3713
        %v3715 = vand.u32 %v3474, 4294901760
        %3716 = vmatpush.xpose.msra.mxu0 %v3715
        %v3717 = vand.u32 %v3466, 4294901760
        %v3718 = vsub.f32 %v3466, %v3717
        %v3719 = vand.u32 %v3718, 4294901760
        %3720 = vmatmul.f32.gmra.mxu0 %v3719
        %v3721 = vpop.f32.mrf.mxu0
        %v3722 = vadd.f32 %v3660, %v3721
        %v3723 = vand.u32 %v3467, 4294901760
        %v3724 = vsub.f32 %v3467, %v3723
        %v3725 = vand.u32 %v3724, 4294901760
        %3726 = vmatmul.f32.gmra.mxu0 %v3725
        %v3727 = vpop.f32.mrf.mxu0
        %v3728 = vadd.f32 %v3665, %v3727
        %v3729 = vand.u32 %v3468, 4294901760
        %v3730 = vsub.f32 %v3468, %v3729
        %v3731 = vand.u32 %v3730, 4294901760
        %3732 = vmatmul.f32.gmra.mxu0 %v3731
        %v3733 = vpop.f32.mrf.mxu0
        %v3734 = vadd.f32 %v3670, %v3733
        %v3735 = vand.u32 %v3469, 4294901760
        %v3736 = vsub.f32 %v3469, %v3735
        %v3737 = vand.u32 %v3736, 4294901760
        %3738 = vmatmul.f32.gmra.mxu0 %v3737
        %v3739 = vpop.f32.mrf.mxu0
        %v3740 = vadd.f32 %v3675, %v3739
        %v3741 = vand.u32 %v3470, 4294901760
        %v3742 = vsub.f32 %v3470, %v3741
        %v3743 = vand.u32 %v3742, 4294901760
        %3744 = vmatmul.f32.gmra.mxu0 %v3743
        %v3745 = vpop.f32.mrf.mxu0
        %v3746 = vadd.f32 %v3680, %v3745
        %v3747 = vand.u32 %v3471, 4294901760
        %v3748 = vsub.f32 %v3471, %v3747
        %v3749 = vand.u32 %v3748, 4294901760
        %3750 = vmatmul.f32.gmra.mxu0 %v3749
        %v3751 = vpop.f32.mrf.mxu0
        %v3752 = vadd.f32 %v3685, %v3751
        %v3753 = vand.u32 %v3472, 4294901760
        %v3754 = vsub.f32 %v3472, %v3753
        %v3755 = vand.u32 %v3754, 4294901760
        %3756 = vmatmul.f32.gmra.mxu0 %v3755
        %v3757 = vpop.f32.mrf.mxu0
        %v3758 = vadd.f32 %v3690, %v3757
        %v3759 = vand.u32 %v3473, 4294901760
        %v3760 = vsub.f32 %v3473, %v3759
        %v3761 = vand.u32 %v3760, 4294901760
        %3762 = vmatmul.f32.gmra.mxu0 %v3761
        %v3763 = vpop.f32.mrf.mxu0
        %v3764 = vadd.f32 %v3695, %v3763
        %3765 = vdwg.mxu0
        %3766 = vmatpush.xpose.msra.mxu0 0.0
        %3767 = vmatpush.xpose.msra.mxu0 0.0
        %3768 = vmatpush.xpose.msra.mxu0 0.0
        %3769 = vmatpush.xpose.msra.mxu0 0.0
        %3770 = vmatpush.xpose.msra.mxu0 0.0
        %3771 = vmatpush.xpose.msra.mxu0 0.0
        %3772 = vmatpush.xpose.msra.mxu0 0.0
        %3773 = vmatpush.xpose.msra.mxu0 0.0
        %3774 = vmatpush.xpose.msra.mxu0 0.0
        %3775 = vmatpush.xpose.msra.mxu0 0.0
        %3776 = vmatpush.xpose.msra.mxu0 0.0
        %3777 = vmatpush.xpose.msra.mxu0 0.0
        %v3778 = vand.u32 %v3477, 4294901760
        %v3779 = vsub.f32 %v3477, %v3778
        %v3780 = vand.u32 %v3779, 4294901760
        %3781 = vmatpush.xpose.msra.mxu0 %v3780
        %v3782 = vand.u32 %v3476, 4294901760
        %v3783 = vsub.f32 %v3476, %v3782
        %v3784 = vand.u32 %v3783, 4294901760
        %3785 = vmatpush.xpose.msra.mxu0 %v3784
        %v3786 = vand.u32 %v3475, 4294901760
        %v3787 = vsub.f32 %v3475, %v3786
        %v3788 = vand.u32 %v3787, 4294901760
        %3789 = vmatpush.xpose.msra.mxu0 %v3788
        %v3790 = vand.u32 %v3474, 4294901760
        %v3791 = vsub.f32 %v3474, %v3790
        %v3792 = vand.u32 %v3791, 4294901760
        %3793 = vmatpush.xpose.msra.mxu0 %v3792
        %v3794 = vand.u32 %v3466, 4294901760
        %3795 = vmatmul.f32.gmra.mxu0 %v3794
        %v3796 = vpop.f32.mrf.mxu0
        %v3797 = vadd.f32 %v3722, %v3796
        %v3798 = vand.u32 %v3467, 4294901760
        %3799 = vmatmul.f32.gmra.mxu0 %v3798
        %v3800 = vpop.f32.mrf.mxu0
        %v3801 = vadd.f32 %v3728, %v3800
        %v3802 = vand.u32 %v3468, 4294901760
        %3803 = vmatmul.f32.gmra.mxu0 %v3802
        %v3804 = vpop.f32.mrf.mxu0
        %v3805 = vadd.f32 %v3734, %v3804
        %v3806 = vand.u32 %v3469, 4294901760
        %3807 = vmatmul.f32.gmra.mxu0 %v3806
        %v3808 = vpop.f32.mrf.mxu0
        %v3809 = vadd.f32 %v3740, %v3808
        %v3810 = vand.u32 %v3470, 4294901760
        %3811 = vmatmul.f32.gmra.mxu0 %v3810
        %v3812 = vpop.f32.mrf.mxu0
        %v3813 = vadd.f32 %v3746, %v3812
        %v3814 = vand.u32 %v3471, 4294901760
        %3815 = vmatmul.f32.gmra.mxu0 %v3814
        %v3816 = vpop.f32.mrf.mxu0
        %v3817 = vadd.f32 %v3752, %v3816
        %v3818 = vand.u32 %v3472, 4294901760
        %3819 = vmatmul.f32.gmra.mxu0 %v3818
        %v3820 = vpop.f32.mrf.mxu0
        %v3821 = vadd.f32 %v3758, %v3820
        %v3822 = vand.u32 %v3473, 4294901760
        %3823 = vmatmul.f32.gmra.mxu0 %v3822
        %v3824 = vpop.f32.mrf.mxu0
        %v3825 = vadd.f32 %v3764, %v3824
        %3826 = vdwg.mxu0
        %3827 = vmatpush.xpose.msra.mxu0 0.0
        %3828 = vmatpush.xpose.msra.mxu0 0.0
        %3829 = vmatpush.xpose.msra.mxu0 0.0
        %3830 = vmatpush.xpose.msra.mxu0 0.0
        %3831 = vmatpush.xpose.msra.mxu0 0.0
        %3832 = vmatpush.xpose.msra.mxu0 0.0
        %3833 = vmatpush.xpose.msra.mxu0 0.0
        %3834 = vmatpush.xpose.msra.mxu0 0.0
        %3835 = vmatpush.xpose.msra.mxu0 0.0
        %3836 = vmatpush.xpose.msra.mxu0 0.0
        %3837 = vmatpush.xpose.msra.mxu0 0.0
        %3838 = vmatpush.xpose.msra.mxu0 0.0
        %v3839 = vand.u32 %v3477, 4294901760
        %3840 = vmatpush.xpose.msra.mxu0 %v3839
        %v3841 = vand.u32 %v3476, 4294901760
        %3842 = vmatpush.xpose.msra.mxu0 %v3841
        %v3843 = vand.u32 %v3475, 4294901760
        %3844 = vmatpush.xpose.msra.mxu0 %v3843
        %v3845 = vand.u32 %v3474, 4294901760
        %3846 = vmatpush.xpose.msra.mxu0 %v3845
        %v3847 = vand.u32 %v3466, 4294901760
        %3848 = vmatmul.f32.gmra.mxu0 %v3847
        %v3849 = vpop.f32.mrf.mxu0
        %v3850 = vadd.f32 %v3797, %v3849
        %v3851 = vand.u32 %v3467, 4294901760
        %3852 = vmatmul.f32.gmra.mxu0 %v3851
        %v3853 = vpop.f32.mrf.mxu0
        %v3854 = vadd.f32 %v3801, %v3853
        %v3855 = vand.u32 %v3468, 4294901760
        %3856 = vmatmul.f32.gmra.mxu0 %v3855
        %v3857 = vpop.f32.mrf.mxu0
        %v3858 = vadd.f32 %v3805, %v3857
        %v3859 = vand.u32 %v3469, 4294901760
        %3860 = vmatmul.f32.gmra.mxu0 %v3859
        %v3861 = vpop.f32.mrf.mxu0
        %v3862 = vadd.f32 %v3809, %v3861
        %v3863 = vand.u32 %v3470, 4294901760
        %3864 = vmatmul.f32.gmra.mxu0 %v3863
        %v3865 = vpop.f32.mrf.mxu0
        %v3866 = vadd.f32 %v3813, %v3865
        %v3867 = vand.u32 %v3471, 4294901760
        %3868 = vmatmul.f32.gmra.mxu0 %v3867
        %v3869 = vpop.f32.mrf.mxu0
        %v3870 = vadd.f32 %v3817, %v3869
        %v3871 = vand.u32 %v3472, 4294901760
        %3872 = vmatmul.f32.gmra.mxu0 %v3871
        %v3873 = vpop.f32.mrf.mxu0
        %v3874 = vadd.f32 %v3821, %v3873
        %v3875 = vand.u32 %v3473, 4294901760
        %3876 = vmatmul.f32.gmra.mxu0 %v3875
        %v3877 = vpop.f32.mrf.mxu0
        %v3878 = vadd.f32 %v3825, %v3877
        %3879 = vdwg.mxu0
        %v3880 = vrot.slane %v1256, 1
        %v3881 = vrot.slane %v1256, 3
        %v3882 = vrot.slane %v1256, 5
        %v3883 = vrot.slane %v1256, 7
        %v3884 = vperm.slane %v1256, 0
        %v3885 = vperm.slane %v3880, 0
        %v3886 = vperm.slane %v1259, 0
        %v3887 = vperm.slane %v3881, 0
        %v3888 = vperm.slane %v1260, 0
        %v3889 = vperm.slane %v3882, 0
        %v3890 = vperm.slane %v1261, 0
        %v3891 = vperm.slane %v3883, 0
        %3892 = vrot.lane.b32.xlu0 %v3884, 96
        %v3893 = vpop.permute.xlu0 %3892
        %3894 = vrot.lane.b32.xlu0 %v3885, 96
        %v3895 = vpop.permute.xlu0 %3894
        %3896 = vrot.lane.b32.xlu0 %v3886, 96
        %v3897 = vpop.permute.xlu0 %3896
        %3898 = vrot.lane.b32.xlu0 %v3887, 96
        %v3899 = vpop.permute.xlu0 %3898
        %3900 = vrot.lane.b32.xlu0 %v3888, 96
        %v3901 = vpop.permute.xlu0 %3900
        %3902 = vrot.lane.b32.xlu0 %v3889, 96
        %v3903 = vpop.permute.xlu0 %3902
        %3904 = vrot.lane.b32.xlu0 %v3890, 96
        %v3905 = vpop.permute.xlu0 %3904
        %3906 = vrot.lane.b32.xlu0 %v3891, 96
        %v3907 = vpop.permute.xlu0 %3906
        %v3916 = vmul.f32 %v3850, %v3893
        %v3917 = vmul.f32 %v3854, %v3895
        %v3918 = vmul.f32 %v3858, %v3897
        %v3919 = vmul.f32 %v3862, %v3899
        %v3920 = vmul.f32 %v3866, %v3901
        %v3921 = vmul.f32 %v3870, %v3903
        %v3922 = vmul.f32 %v3874, %v3905
        %v3923 = vmul.f32 %v3878, %v3907
        %v3924 = vsel %vm1262, %v3916, 0.0
        %3925 = vadd.xlane.f32.xlu0 %v3924
        %v3926 = vpop.xlane.xlu0 %3925
        %v3927 = vsel %vm1262, %v3917, 0.0
        %3928 = vadd.xlane.f32.xlu0 %v3927
        %v3929 = vpop.xlane.xlu0 %3928
        %v3930 = vsel %vm1262, %v3918, 0.0
        %3931 = vadd.xlane.f32.xlu0 %v3930
        %v3932 = vpop.xlane.xlu0 %3931
        %v3933 = vsel %vm1262, %v3919, 0.0
        %3934 = vadd.xlane.f32.xlu0 %v3933
        %v3935 = vpop.xlane.xlu0 %3934
        %v3936 = vsel %vm1262, %v3920, 0.0
        %3937 = vadd.xlane.f32.xlu0 %v3936
        %v3938 = vpop.xlane.xlu0 %3937
        %v3939 = vsel %vm1262, %v3921, 0.0
        %3940 = vadd.xlane.f32.xlu0 %v3939
        %v3941 = vpop.xlane.xlu0 %3940
        %v3942 = vsel %vm1262, %v3922, 0.0
        %3943 = vadd.xlane.f32.xlu0 %v3942
        %v3944 = vpop.xlane.xlu0 %3943
        %v3945 = vsel %vm1262, %v3923, 0.0
        %3946 = vadd.xlane.f32.xlu0 %v3945
        %v3947 = vpop.xlane.xlu0 %3946
        %v3948 = vmul.f32 %v3926, 0.17677669
        %v3949 = vmul.f32 %v3929, 0.17677669
        %v3950 = vmul.f32 %v3932, 0.17677669
        %v3951 = vmul.f32 %v3935, 0.17677669
        %v3952 = vmul.f32 %v3938, 0.17677669
        %v3953 = vmul.f32 %v3941, 0.17677669
        %v3954 = vmul.f32 %v3944, 0.17677669
        %v3955 = vmul.f32 %v3947, 0.17677669
        %v3956 = vld [vmem:[%s496] sm:$0x1]
        %v3957 = vld [vmem:[%s496 + $0x1] sm:$0x1]
        %v3958 = vld [vmem:[%s496 + $0x2] sm:$0x1]
        %v3959 = vld [vmem:[%s496 + $0x3] sm:$0x1]
        %v3964 = vperm.slane %v3956, 0
        %v3965 = vperm.slane %v3957, 0
        %v3966 = vperm.slane %v3958, 0
        %v3967 = vperm.slane %v3959, 0
        %v3968 = vlaneseq
        %v3969 = vshrl.u32 %v3968, 7
        %3971 = vset.pattern.permute.xlu0 %v3969
        %3972 = vperm.xlu0 %3971, %v3964
        %v3973 = vpop.permute.xlu0 %3972
        %v3974 = vlaneseq
        %v3975 = vshrl.u32 %v3974, 7
        %3977 = vset.pattern.permute.xlu0 %v3975
        %3978 = vperm.xlu0 %3977, %v3965
        %v3979 = vpop.permute.xlu0 %3978
        %v3980 = vlaneseq
        %v3981 = vshrl.u32 %v3980, 7
        %3983 = vset.pattern.permute.xlu0 %v3981
        %3984 = vperm.xlu0 %3983, %v3966
        %v3985 = vpop.permute.xlu0 %3984
        %v3986 = vlaneseq
        %v3987 = vshrl.u32 %v3986, 7
        %3989 = vset.pattern.permute.xlu0 %v3987
        %3990 = vperm.xlu0 %3989, %v3967
        %v3991 = vpop.permute.xlu0 %3990
        %v3996 = vadd.f32 %v3948, %v3973
        %v3997 = vadd.f32 %v3949, %v3973
        %v3998 = vadd.f32 %v3950, %v3979
        %v3999 = vadd.f32 %v3951, %v3979
        %v4000 = vadd.f32 %v3952, %v3985
        %v4001 = vadd.f32 %v3953, %v3985
        %v4002 = vadd.f32 %v3954, %v3991
        %v4003 = vadd.f32 %v3955, %v3991
        %4012 = vset.pattern.permute.xlu0 0
        %4013 = vperm.xlu0 %4012, %v3996
        %v4014 = vpop.permute.xlu0 %4013
        %4015 = vset.pattern.permute.xlu0 0
        %4016 = vperm.xlu0 %4015, %v3997
        %v4017 = vpop.permute.xlu0 %4016
        %4018 = vset.pattern.permute.xlu0 0
        %4019 = vperm.xlu0 %4018, %v3998
        %v4020 = vpop.permute.xlu0 %4019
        %4021 = vset.pattern.permute.xlu0 0
        %4022 = vperm.xlu0 %4021, %v3999
        %v4023 = vpop.permute.xlu0 %4022
        %4024 = vset.pattern.permute.xlu0 0
        %4025 = vperm.xlu0 %4024, %v4000
        %v4026 = vpop.permute.xlu0 %4025
        %4027 = vset.pattern.permute.xlu0 0
        %4028 = vperm.xlu0 %4027, %v4001
        %v4029 = vpop.permute.xlu0 %4028
        %4030 = vset.pattern.permute.xlu0 0
        %4031 = vperm.xlu0 %4030, %v4002
        %v4032 = vpop.permute.xlu0 %4031
        %4033 = vset.pattern.permute.xlu0 0
        %4034 = vperm.xlu0 %4033, %v4003
        %v4035 = vpop.permute.xlu0 %4034
        %v4036 = vlaneseq
        %v4037 = vand.u32 %v4036, 127
        %v4038 = vperm.slane %v4014, %v4037
        %v4039 = vperm.slane %v4017, %v4037
        %v4040 = vperm.slane %v4020, %v4037
        %v4041 = vperm.slane %v4023, %v4037
        %v4042 = vperm.slane %v4026, %v4037
        %v4043 = vperm.slane %v4029, %v4037
        %v4044 = vperm.slane %v4032, %v4037
        %v4045 = vperm.slane %v4035, %v4037
        %vm4046 = vcmask 1041409
        %v4047 = vsel %vm4046, %v4039, %v4038
        %v4048 = vsel %vm4046, %v4041, %v4040
        %v4049 = vsel %vm4046, %v4043, %v4042
        %v4050 = vsel %vm4046, %v4045, %v4044
        %vm4055 = vcmask 58368
        %v4056 = vsel %vm4055, %v4047, -inf
        %4057 = vmax.xlane.f32.xlu0 %v4056
        %v4058 = vpop.xlane.xlu0 %4057
        %v4059 = vsel %vm4055, %v4048, -inf
        %4060 = vmax.xlane.f32.xlu0 %v4059
        %v4061 = vpop.xlane.xlu0 %4060
        %v4062 = vsel %vm4055, %v4049, -inf
        %4063 = vmax.xlane.f32.xlu0 %v4062
        %v4064 = vpop.xlane.xlu0 %4063
        %v4065 = vsel %vm4055, %v4050, -inf
        %4066 = vmax.xlane.f32.xlu0 %v4065
        %v4067 = vpop.xlane.xlu0 %4066
        %v4072 = vperm.slane %v4058, 0
        %v4073 = vperm.slane %v4058, 1
        %v4074 = vperm.slane %v4061, 0
        %v4075 = vperm.slane %v4061, 1
        %v4076 = vperm.slane %v4064, 0
        %v4077 = vperm.slane %v4064, 1
        %v4078 = vperm.slane %v4067, 0
        %v4079 = vperm.slane %v4067, 1
        %v4088 = vsub.f32 %v3996, %v4072
        %v4089 = vsub.f32 %v3997, %v4073
        %v4090 = vsub.f32 %v3998, %v4074
        %v4091 = vsub.f32 %v3999, %v4075
        %v4092 = vsub.f32 %v4000, %v4076
        %v4093 = vsub.f32 %v4001, %v4077
        %v4094 = vsub.f32 %v4002, %v4078
        %v4095 = vsub.f32 %v4003, %v4079
        %v4096 = vmul.f32 %v4088, 1.442695
        %v4097 = vpow.pop %v4096
        %v4098 = vmul.f32 %v4089, 1.442695
        %v4099 = vpow.pop %v4098
        %v4100 = vmul.f32 %v4090, 1.442695
        %v4101 = vpow.pop %v4100
        %v4102 = vmul.f32 %v4091, 1.442695
        %v4103 = vpow.pop %v4102
        %v4104 = vmul.f32 %v4092, 1.442695
        %v4105 = vpow.pop %v4104
        %v4106 = vmul.f32 %v4093, 1.442695
        %v4107 = vpow.pop %v4106
        %v4108 = vmul.f32 %v4094, 1.442695
        %v4109 = vpow.pop %v4108
        %v4110 = vmul.f32 %v4095, 1.442695
        %v4111 = vpow.pop %v4110
        %4120 = vset.pattern.permute.xlu0 0
        %4121 = vperm.xlu0 %4120, %v4097
        %v4122 = vpop.permute.xlu0 %4121
        %4123 = vset.pattern.permute.xlu0 0
        %4124 = vperm.xlu0 %4123, %v4099
        %v4125 = vpop.permute.xlu0 %4124
        %4126 = vset.pattern.permute.xlu0 0
        %4127 = vperm.xlu0 %4126, %v4101
        %v4128 = vpop.permute.xlu0 %4127
        %4129 = vset.pattern.permute.xlu0 0
        %4130 = vperm.xlu0 %4129, %v4103
        %v4131 = vpop.permute.xlu0 %4130
        %4132 = vset.pattern.permute.xlu0 0
        %4133 = vperm.xlu0 %4132, %v4105
        %v4134 = vpop.permute.xlu0 %4133
        %4135 = vset.pattern.permute.xlu0 0
        %4136 = vperm.xlu0 %4135, %v4107
        %v4137 = vpop.permute.xlu0 %4136
        %4138 = vset.pattern.permute.xlu0 0
        %4139 = vperm.xlu0 %4138, %v4109
        %v4140 = vpop.permute.xlu0 %4139
        %4141 = vset.pattern.permute.xlu0 0
        %4142 = vperm.xlu0 %4141, %v4111
        %v4143 = vpop.permute.xlu0 %4142
        %v4144 = vperm.slane %v4122, %v4037
        %v4145 = vperm.slane %v4125, %v4037
        %v4146 = vperm.slane %v4128, %v4037
        %v4147 = vperm.slane %v4131, %v4037
        %v4148 = vperm.slane %v4134, %v4037
        %v4149 = vperm.slane %v4137, %v4037
        %v4150 = vperm.slane %v4140, %v4037
        %v4151 = vperm.slane %v4143, %v4037
        %v4152 = vsel %vm4046, %v4145, %v4144
        %v4153 = vsel %vm4046, %v4147, %v4146
        %v4154 = vsel %vm4046, %v4149, %v4148
        %v4155 = vsel %vm4046, %v4151, %v4150
        %v4160 = vsel %vm4055, %v4152, 0.0
        %4161 = vadd.xlane.f32.xlu0 %v4160
        %v4162 = vpop.xlane.xlu0 %4161
        %v4163 = vsel %vm4055, %v4153, 0.0
        %4164 = vadd.xlane.f32.xlu0 %v4163
        %v4165 = vpop.xlane.xlu0 %4164
        %v4166 = vsel %vm4055, %v4154, 0.0
        %4167 = vadd.xlane.f32.xlu0 %v4166
        %v4168 = vpop.xlane.xlu0 %4167
        %v4169 = vsel %vm4055, %v4155, 0.0
        %4170 = vadd.xlane.f32.xlu0 %v4169
        %v4171 = vpop.xlane.xlu0 %4170
        %v4172 = vrcp.pop %v4162
        %v4173 = vrcp.pop %v4165
        %v4174 = vrcp.pop %v4168
        %v4175 = vrcp.pop %v4171
        %v4180 = vperm.slane %v4172, 0
        %v4181 = vperm.slane %v4172, 1
        %v4182 = vperm.slane %v4173, 0
        %v4183 = vperm.slane %v4173, 1
        %v4184 = vperm.slane %v4174, 0
        %v4185 = vperm.slane %v4174, 1
        %v4186 = vperm.slane %v4175, 0
        %v4187 = vperm.slane %v4175, 1
        %v4196 = vmul.f32 %v4097, %v4180
        %v4197 = vmul.f32 %v4099, %v4181
        %v4198 = vmul.f32 %v4101, %v4182
        %v4199 = vmul.f32 %v4103, %v4183
        %v4200 = vmul.f32 %v4105, %v4184
        %v4201 = vmul.f32 %v4107, %v4185
        %v4202 = vmul.f32 %v4109, %v4186
        %v4203 = vmul.f32 %v4111, %v4187
        %4205 = vset.pattern.permute.xlu0 0
        %4206 = vperm.xlu0 %4205, %v4196
        %v4207 = vpop.permute.xlu0 %4206
        %4210 = vset.pattern.permute.xlu0 0
        %4211 = vperm.xlu0 %4210, %v4197
        %v4212 = vpop.permute.xlu0 %4211
        %4215 = vset.pattern.permute.xlu0 0
        %4216 = vperm.xlu0 %4215, %v4198
        %v4217 = vpop.permute.xlu0 %4216
        %4220 = vset.pattern.permute.xlu0 0
        %4221 = vperm.xlu0 %4220, %v4199
        %v4222 = vpop.permute.xlu0 %4221
        %4225 = vset.pattern.permute.xlu0 0
        %4226 = vperm.xlu0 %4225, %v4200
        %v4227 = vpop.permute.xlu0 %4226
        %4230 = vset.pattern.permute.xlu0 0
        %4231 = vperm.xlu0 %4230, %v4201
        %v4232 = vpop.permute.xlu0 %4231
        %4235 = vset.pattern.permute.xlu0 0
        %4236 = vperm.xlu0 %4235, %v4202
        %v4237 = vpop.permute.xlu0 %4236
        %4240 = vset.pattern.permute.xlu0 0
        %4241 = vperm.xlu0 %4240, %v4203
        %v4242 = vpop.permute.xlu0 %4241
        %v4244 = vmul.f32 %v4207, %v3466
        %v4245 = vmul.f32 %v4212, %v3467
        %v4246 = vmul.f32 %v4217, %v3468
        %v4247 = vmul.f32 %v4222, %v3469
        %v4248 = vmul.f32 %v4227, %v3470
        %v4249 = vmul.f32 %v4232, %v3471
        %v4250 = vmul.f32 %v4237, %v3472
        %v4251 = vmul.f32 %v4242, %v3473
        %v4252 = vrot.slane %v4244, 4
        %v4253 = vadd.f32 %v4244, %v4252
        %v4254 = vrot.slane %v4253, 2
        %v4255 = vadd.f32 %v4253, %v4254
        %v4256 = vrot.slane %v4255, 1
        %v4257 = vadd.f32 %v4255, %v4256
        %v4258 = vrot.slane %v4245, 4
        %v4259 = vadd.f32 %v4245, %v4258
        %v4260 = vrot.slane %v4259, 2
        %v4261 = vadd.f32 %v4259, %v4260
        %v4262 = vrot.slane %v4261, 1
        %v4263 = vadd.f32 %v4261, %v4262
        %v4264 = vrot.slane %v4246, 4
        %v4265 = vadd.f32 %v4246, %v4264
        %v4266 = vrot.slane %v4265, 2
        %v4267 = vadd.f32 %v4265, %v4266
        %v4268 = vrot.slane %v4267, 1
        %v4269 = vadd.f32 %v4267, %v4268
        %v4270 = vrot.slane %v4247, 4
        %v4271 = vadd.f32 %v4247, %v4270
        %v4272 = vrot.slane %v4271, 2
        %v4273 = vadd.f32 %v4271, %v4272
        %v4274 = vrot.slane %v4273, 1
        %v4275 = vadd.f32 %v4273, %v4274
        %v4276 = vrot.slane %v4248, 4
        %v4277 = vadd.f32 %v4248, %v4276
        %v4278 = vrot.slane %v4277, 2
        %v4279 = vadd.f32 %v4277, %v4278
        %v4280 = vrot.slane %v4279, 1
        %v4281 = vadd.f32 %v4279, %v4280
        %v4282 = vrot.slane %v4249, 4
        %v4283 = vadd.f32 %v4249, %v4282
        %v4284 = vrot.slane %v4283, 2
        %v4285 = vadd.f32 %v4283, %v4284
        %v4286 = vrot.slane %v4285, 1
        %v4287 = vadd.f32 %v4285, %v4286
        %v4288 = vrot.slane %v4250, 4
        %v4289 = vadd.f32 %v4250, %v4288
        %v4290 = vrot.slane %v4289, 2
        %v4291 = vadd.f32 %v4289, %v4290
        %v4292 = vrot.slane %v4291, 1
        %v4293 = vadd.f32 %v4291, %v4292
        %v4294 = vrot.slane %v4251, 4
        %v4295 = vadd.f32 %v4251, %v4294
        %v4296 = vrot.slane %v4295, 2
        %v4297 = vadd.f32 %v4295, %v4296
        %v4298 = vrot.slane %v4297, 1
        %v4299 = vadd.f32 %v4297, %v4298
        %v4308 = vsel %vm4046, %v4263, %v4257
        %v4309 = vsel %vm4046, %v4275, %v4269
        %v4310 = vsel %vm4046, %v4287, %v4281
        %v4311 = vsel %vm4046, %v4299, %v4293
        %4316 = vst [vmem:[%s568] sm:$0x3] %v4308
        %4317 = vst [vmem:[%s568 + $0x2] sm:$0x3] %v4309
        %4318 = vst [vmem:[%s568 + $0x4] sm:$0x3] %v4310
        %4319 = vst [vmem:[%s568 + $0x6] sm:$0x3] %v4311
        %s4320 = sand.u32 %s273, 1
        %s4321 = scalar_lea.sflag [#allocation4], %s4320
        %s4322 = sand.u32 %s273, 1
        %s4323 = smul.addr %s4322, 8
        %s4324 = scalar_lea.vmem [#allocation16], %s4323
        // Predicated region
        $region93: #{tpu_custom_call.1} parent=59 // pred_check
          %p4325 = pneg %p283
        $region94: #{tpu_custom_call.1} parent=59 // pred_check_branch
          %4327 = sbr.rel (%p4325) target = $region96
        $region95: #{tpu_custom_call.1} parent=59 // pred_region
          %s4328 = smul.u32 4, %s35
          %4330 = vsyncadd %s4321, 0
          %s4331 = smul.addr %s4328, 2
          %s4332 = scalar_lea.hbm %s10, %s4331
          %s4333 = sshll.u32 %s4324, 4
          %s4334 = int_to_ptr.vmem [resolvable:$true] %s4333
          %s4335 = sshll.u32 %s4332, 4
          %s4336 = int_to_ptr.hbm [resolvable:$true] %s4335
          %4341 = dma.vmem_to_hbm [thread:$0]  %s4334, 128, %s4336, %s4321, 32, 32, 2
        $region96: #{tpu_custom_call.1} parent=59 // pred_fallthru
          _
      $region60: #{tpu_custom_call.1} parent=5 // pred_fallthru
        _
      %p4342 = scmp.le.s32.totalorder 2, %s30
      // Predicated region
      $region97: #{tpu_custom_call.1} parent=5 // pred_check
        %p4343 = pneg %p4342
      $region98: #{tpu_custom_call.1} parent=5 // pred_check_branch
        %4345 = sbr.rel (%p4343) target = $region100
      $region99: #{tpu_custom_call.1} parent=5 // pred_region
        %s4346 = ssub.s32 %s30, 2
        // Predicated region
        $region101: #{tpu_custom_call.1} parent=99 // pred_check
          %p4347 = pneg %p289
        $region102: #{tpu_custom_call.1} parent=99 // pred_check_branch
          %4349 = sbr.rel (%p4347) target = $region104
        $region103: #{tpu_custom_call.1} parent=99 // pred_region
          %s4350 = sand.u32 %s274, 1
          %s4351 = scalar_lea.sflag [#allocation4], %s4350
          %s4352 = sand.u32 %s274, 1
          %s4353 = smul.addr %s4352, 8
          %s4354 = scalar_lea.vmem [#allocation16], %s4353
          %4356 = dma.done %s4351, 128
        $region104: #{tpu_custom_call.1} parent=99 // pred_fallthru
          _
      $region100: #{tpu_custom_call.1} parent=5 // pred_fallthru
        _
    $region6: #{tpu_custom_call.1} parent=1 // loop_footer
      %s34 = sadd.s32 1, %s30
    $region7: #{tpu_custom_call.1} parent=1 // loop_footer_branch
      %29 = sbr.rel target = $region3
    $region8: #{tpu_custom_call.1} parent=1 // loop_exit
      _
    %4357 = vsyncpa [#allocation3], 1
    %s4358 = scalar_lea.sflag [#allocation3], 1
    %4359 = vsyncpa %s4358, 1
    %4360 = vsyncpa [#allocation6], 1
    %s4361 = scalar_lea.sflag [#allocation6], 1
    %4362 = vsyncpa %s4361, 1
    %4363 = vsyncpa [#allocation9], 1
    %s4364 = scalar_lea.sflag [#allocation9], 1
    %4365 = vsyncpa %s4364, 1
    %4366 = vsyncpa [#allocation12], 1
    %4367 = vsyncpa [#allocation15], 1
    %4368 = vsyncpa [#allocation4], 1
    %s4369 = scalar_lea.sflag [#allocation4], 1
    %4370 = vsyncpa %s4369, 1

</llo_original>
